<compile_context>
chip_gen: v6e
topology: v6e:2x2x1
jax: 0.10.0
libtpu: 0.0.40
codegen_flags: <defaults>
</compile_context>

<pallas_src>
import functools
import numpy as np
import jax
import jax.numpy as jnp
from jax.experimental import pallas as pl
from jax.experimental.pallas import tpu as pltpu

LN_EPS = 1e-5
BF16 = jnp.bfloat16


def _layernorm(x, gamma, beta):
    mu = jnp.mean(x, axis=-1, keepdims=True)
    xc = x - mu
    var = jnp.mean(xc * xc, axis=-1, keepdims=True)
    return xc * jax.lax.rsqrt(var + LN_EPS) * gamma + beta


def _full_spec(arr):
    nd = arr.ndim
    return pl.BlockSpec(arr.shape, lambda i, _nd=nd: (0,) * _nd)


# ----------------------------------------------------------------------------------
# Fused Pallas kernel: norm1 + W-MCA (frame0 -> frame1) + proj residual
#                      + outer residual + norm2 + MLP + residual,
#                      processing bw windows (bw*N tokens) per grid step.
# ----------------------------------------------------------------------------------
def _block_kernel(xq_ref, xkv_ref,
                  g1_ref, b1_ref, wq_ref, bq_ref, wkv_ref, bkv_ref,
                  wp_blk_ref, bp_ref, bias_ref, hmask_ref,
                  g2_ref, b2_ref, w1_ref, bb1_ref, w2_ref, bb2_ref,
                  out_ref):
    Bw, N, C = xq_ref.shape
    nH = bias_ref.shape[0]
    R = Bw * N

    # pre-norm frame-0 tokens double as the outer shortcut.
    x_short = xq_ref[...].reshape(R, C).astype(jnp.float32)
    xkv = xkv_ref[...].reshape(R, C).astype(jnp.float32)

    g1 = g1_ref[...]
    b1 = b1_ref[...]
    xq_n = _layernorm(x_short, g1, b1)     # also the q_copy residual of WindowAttention3D02
    xkv_n = _layernorm(xkv, g1, b1)

    # q / kv projections: bf16 operands, f32 accumulation (qk scale folded into wq/bq).
    q = jnp.dot(xq_n.astype(BF16), wq_ref[...],
                preferred_element_type=jnp.float32) + bq_ref[...]
    kv = jnp.dot(xkv_n.astype(BF16), wkv_ref[...],
                 preferred_element_type=jnp.float32) + bkv_ref[...]
    k = kv[:, :C]
    v = kv[:, C:]

    # Fold head-concat + output projection: one lane-dense matmul against the
    # block-diagonal Wp -> (R, nH*C); per-head 32-lane-aligned slices are taken below.
    vwp_all = jnp.dot(v.astype(BF16), wp_blk_ref[...],
                      preferred_element_type=jnp.float32).astype(BF16)

    q_f = q.reshape(Bw, N, C)                  # f32 (masked in f32, then cast)
    k_bf = k.astype(BF16).reshape(Bw, N, C)

    acc = jnp.zeros((Bw, N, C), jnp.float32)
    for h in range(nH):                        # nH is small & static
        # per-head 0/1 lane mask instead of a width-hd lane slice; contraction over full C
        # is mathematically identical to q_h . k_h.
        qh = (q_f * hmask_ref[h]).astype(BF16)
        s = jnp.einsum("bnc,bmc->bnm", qh, k_bf,
                       preferred_element_type=jnp.float32)          # (Bw, N, N)
        s = s + bias_ref[h][None]
        s = s - jnp.max(s, axis=-1, keepdims=True)
        p = jnp.exp(s)
        attn = p * pl.reciprocal(jnp.sum(p, axis=-1, keepdims=True), approx=True)
        vwp_h = vwp_all[:, h * C:(h + 1) * C].reshape(Bw, N, C)
        acc = acc + jnp.einsum("bnm,bmc->bnc", attn.astype(BF16), vwp_h,
                               preferred_element_type=jnp.float32)

    xo = acc.reshape(R, C) + bp_ref[...] + xq_n       # proj bias + q_copy residual
    x1 = xo + x_short                                  # fused outer residual (shortcut)

    # Fused MLP: x1 + mlp(norm2(x1)), per-token (commutes with window_reverse).
    y = _layernorm(x1, g2_ref[...], b2_ref[...])
    h1 = jnp.dot(y.astype(BF16), w1_ref[...],
                 preferred_element_type=jnp.float32) + bb1_ref[...]
    # TODO(synk): the repo's custom GELU class may be exact-erf; tanh approximation used here.
    h1 = jax.nn.gelu(h1, approximate=True)
    y2 = jnp.dot(h1.astype(BF16), w2_ref[...],
                 preferred_element_type=jnp.float32) + bb2_ref[...]

    out_ref[...] = (x1 + y2).reshape(Bw, N, C).astype(out_ref.dtype)


def _choose_bw(n_windows, requested):
    """Pick windows-per-step: exact divisor of n_windows, >=2 grid steps when possible (v7x)."""
    cap = max(1, min(requested, n_windows))
    if n_windows >= 2 and n_windows // cap < 2:
        cap = max(1, n_windows // 2)
    bw = 1
    for cand in range(cap, 0, -1):
        if n_windows % cand == 0:
            bw = cand
            break
    if bw * 2 < cap:            # divisor too small -> accept tail padding instead
        bw = cap
    return bw


def vstsr_block_pallas(xq, xkv, p, bw=16):
    """xq, xkv: (B_, N, C) windows of the PRE-norm input (frame 0 / frame 1)."""
    B_, N, C = xq.shape
    bw = _choose_bw(B_, bw)
    Bp = ((B_ + bw - 1) // bw) * bw
    if Bp != B_:
        xq = jnp.pad(xq, ((0, Bp - B_), (0, 0), (0, 0)))
        xkv = jnp.pad(xkv, ((0, Bp - B_), (0, 0), (0, 0)))

    # VMEM note: per step ~ 6 * bw*N*C*4 B pipelined blocks + ~3 * bw*N*N*4 B softmax temps;
    # at demo sizes this is << the scoped default, so no vmem_limit_bytes override is needed.
    out = pl.pallas_call(
        _block_kernel,
        out_shape=jax.ShapeDtypeStruct((Bp, N, C), xq.dtype),
        grid=(Bp // bw,),
        in_specs=[
            pl.BlockSpec((bw, N, C), lambda i: (i, 0, 0)),
            pl.BlockSpec((bw, N, C), lambda i: (i, 0, 0)),
            _full_spec(p["g1"]), _full_spec(p["b1"]),
            _full_spec(p["wq"]), _full_spec(p["bq"]),
            _full_spec(p["wkv"]), _full_spec(p["bkv"]),
            _full_spec(p["wp_blk"]), _full_spec(p["bp"]),
            _full_spec(p["rel_bias"]), _full_spec(p["head_mask"]),
            _full_spec(p["g2"]), _full_spec(p["b2"]),
            _full_spec(p["w1"]), _full_spec(p["bb1"]),
            _full_spec(p["w2"]), _full_spec(p["bb2"]),
        ],
        out_specs=pl.BlockSpec((bw, N, C), lambda i: (i, 0, 0)),
        compiler_params=pltpu.CompilerParams(dimension_semantics=("parallel",)),
    )(xq, xkv,
      p["g1"], p["b1"], p["wq"], p["bq"], p["wkv"], p["bkv"],
      p["wp_blk"], p["bp"], p["rel_bias"], p["head_mask"],
      p["g2"], p["b2"], p["w1"], p["bb1"], p["w2"], p["bb2"])
    return out[:B_]


# ----------------------------------------------------------------------------------
# Plain-JAX glue (window partition / reverse, relative-position index, params)
# ----------------------------------------------------------------------------------
def get_window_size(x_size, window_size, shift_size=None):
    use_window_size = list(window_size)
    use_shift_size = list(shift_size) if shift_size is not None else None
    for i in range(len(x_size)):
        if x_size[i] <= window_size[i]:
            use_window_size[i] = x_size[i]
            if shift_size is not None:
                use_shift_size[i] = 0
    if shift_size is None:
        return tuple(use_window_size)
    return tuple(use_window_size), tuple(use_shift_size)


def window_partition(x, window_size):
    B, D, H, W, C = x.shape
    x = x.reshape(B, D, H // window_size[0], window_size[0], W // window_size[1], window_size[1], C)
    return x.transpose(0, 2, 4, 1, 3, 5, 6).reshape(-1, D, window_size[0], window_size[1], C)


def window_reverse(windows, window_size, B, D, H, W):
    C = windows.shape[-1]
    x = windows.reshape(B, H // window_size[0], W // window_size[1], D, window_size[0], window_size[1], C)
    return x.transpose(0, 3, 1, 4, 2, 5, 6).reshape(B, D, H, W, C)


def _relative_position_index(num_frames_q, num_frames_kv, window_size):
    coords_d_q = np.arange(num_frames_q)
    coords_d_kv = np.arange(0, num_frames_q, (num_frames_q + 1) // num_frames_kv)
    coords_h = np.arange(window_size[0])
    coords_w = np.arange(window_size[1])
    coords_q = np.stack(np.meshgrid(coords_d_q, coords_h, coords_w, indexing="ij"))
    coords_kv = np.stack(np.meshgrid(coords_d_kv, coords_h, coords_w, indexing="ij"))
    cq = coords_q.reshape(3, -1)
    ckv = coords_kv.reshape(3, -1)
    rel = (cq[:, :, None] - ckv[:, None, :]).transpose(1, 2, 0).astype(np.int64)
    rel[:, :, 0] += num_frames_q - 1
    rel[:, :, 1] += window_size[0] - 1
    rel[:, :, 2] += window_size[1] - 1
    rel[:, :, 0] *= (2 * window_size[0] - 1) * (2 * window_size[1] - 1)
    rel[:, :, 1] *= 2 * window_size[1] - 1
    return rel.sum(-1)                                            # (N1, N2)


def init_params(key, dim, num_heads, window_size, mlp_ratio=4.0):
    hidden = int(dim * mlp_ratio)
    N = window_size[0] * window_size[1]
    ks = jax.random.split(key, 11)
    nrm = lambda k, shp, s=0.02: (s * jax.random.normal(k, shp)).astype(jnp.float32)
    table = nrm(ks[0], ((2 * 1 - 1) * (2 * window_size[0] - 1) * (2 * window_size[1] - 1), num_heads))
    idx = _relative_position_index(1, 1, window_size)
    rel_bias = table[idx.reshape(-1)].reshape(N, N, num_heads).transpose(2, 0, 1)   # (nH, N, N)
    return dict(
        g1=jnp.ones((1, dim), jnp.float32), b1=jnp.zeros((1, dim), jnp.float32),
        wq=nrm(ks[1], (dim, dim)), bq=nrm(ks[2], (1, dim)),
        wkv=nrm(ks[3], (dim, 2 * dim)), bkv=nrm(ks[4], (1, 2 * dim)),
        wp=nrm(ks[5], (dim, dim)), bp=nrm(ks[6], (1, dim)),
        rel_bias=jnp.asarray(rel_bias),
        g2=jnp.ones((1, dim), jnp.float32), b2=jnp.zeros((1, dim), jnp.float32),
        w1=nrm(ks[7], (dim, hidden)), bb1=nrm(ks[8], (1, hidden)),
        w2=nrm(ks[9], (hidden, dim)), bb2=nrm(ks[10], (1, dim)),
    )


def prepare_params(p, dim, num_heads):
    """One-time prep: fold qk scale into wq/bq, build block-diagonal Wp and per-head lane
    masks, and store the matmul weights as bf16 (f32 accumulation happens in-kernel)."""
    hd = dim // num_heads
    scale = float(hd) ** -0.5
    q = dict(p)
    q["wq"] = (p["wq"] * scale).astype(BF16)
    q["bq"] = (p["bq"] * scale).astype(jnp.float32)
    q["wkv"] = p["wkv"].astype(BF16)
    # Block-diagonal Wp: (C, nH*C); block h sits at rows h*hd:(h+1)*hd, cols h*C:(h+1)*C.
    wp_blk = np.zeros((dim, num_heads * dim), np.float32)
    wp_np = np.asarray(p["wp"], np.float32)
    for h in range(num_heads):
        wp_blk[h * hd:(h + 1) * hd, h * dim:(h + 1) * dim] = wp_np[h * hd:(h + 1) * hd, :]
    q["wp_blk"] = jnp.asarray(wp_blk).astype(BF16)
    # Per-head 0/1 lane masks (nH, C), kept in f32 (portable elementwise path on v5e).
    ids = np.arange(dim)
    hmask = np.stack([(ids // hd) == h for h in range(num_heads)]).astype(np.float32)
    q["head_mask"] = jnp.asarray(hmask)
    q["w1"] = p["w1"].astype(BF16)
    q["w2"] = p["w2"].astype(BF16)
    return q


# ----------------------------------------------------------------------------------
# Full block forward (one fused Pallas kernel on the hot path)
# ----------------------------------------------------------------------------------
def vstsr_encoder_block_forward(x, mask_matrix, params, window_size=(8, 8), shift_size=(0, 0),
                                attn_window_batch=16):
    B, D, H, W, C = x.shape
    window_size, shift_size = get_window_size((H, W), window_size, shift_size)
    pad_b = (window_size[0] - H % window_size[0]) % window_size[0]
    pad_r = (window_size[1] - W % window_size[1]) % window_size[1]
    # TODO(synk): original pads AFTER norm1; norm1 is fused into the kernel here, which is
    # exact whenever H, W are multiples of the window size (pad_b == pad_r == 0, as in the demo).
    xp = jnp.pad(x, ((0, 0), (0, 0), (0, pad_b), (0, pad_r), (0, 0)))
    _, _, Hp, Wp, _ = xp.shape
    if any(i > 0 for i in shift_size):
        # TODO(synk): shifted-window + attention-mask path not implemented (shift_size == (0, 0) here).
        raise NotImplementedError("shifted-window path not implemented")

    # Single window partition of the PRE-norm input: frame 0 windows serve as attention query
    # (norm1 fused in-kernel) AND as the outer shortcut consumed by the fused residual/MLP tail.
    windows = window_partition(xp, window_size)            # (B*nW, D, Wh, Ww, C)
    N = window_size[0] * window_size[1]
    xq_w = windows[:, 0].reshape(-1, N, C)
    xkv_w = windows[:, 1].reshape(-1, N, C)

    tok = vstsr_block_pallas(xq_w, xkv_w, params, bw=attn_window_batch)   # (B*nW, N, C)

    out_windows = tok.reshape(-1, 1, window_size[0], window_size[1], C)
    xo = window_reverse(out_windows, window_size, B, 1, Hp, Wp)[:, :, :H, :W, :]
    if xo.shape[1] == 1:                                   # torch .squeeze(1) semantics
        xo = jnp.squeeze(xo, axis=1)
    return xo


# ----------------------------------------------------------------------------------
# Pure-JAX reference (same math, raw/unscaled params) for verification
# ----------------------------------------------------------------------------------
def reference_forward(x, mask_matrix, p, num_heads, window_size=(8, 8), shift_size=(0, 0)):
    B, D, H, W, C = x.shape
    window_size, shift_size = get_window_size((H, W), window_size, shift_size)
    shortcut = x[:, 0]
    xn = _layernorm(x, p["g1"][0], p["b1"][0])
    windows = window_partition(xn, window_size)
    N = window_size[0] * window_size[1]
    xq = windows[:, 0].reshape(-1, N, C)
    xkv = windows[:, 1].reshape(-1, N, C)
    nH, hd = num_heads, C // num_heads
    scale = float(hd) ** -0.5
    q = xq @ p["wq"] + p["bq"]
    kv = xkv @ p["wkv"] + p["bkv"]
    k, v = kv[..., :C], kv[..., C:]
    qh = q.reshape(-1, N, nH, hd).transpose(0, 2, 1, 3) * scale
    kh = k.reshape(-1, N, nH, hd).transpose(0, 2, 1, 3)
    vh = v.reshape(-1, N, nH, hd).transpose(0, 2, 1, 3)
    attn = jnp.einsum("bhnd,bhmd->bhnm", qh, kh) + p["rel_bias"][None]
    attn = jax.nn.softmax(attn, axis=-1)
    o = jnp.einsum("bhnm,bhmd->bhnd", attn, vh).transpose(0, 2, 1, 3).reshape(-1, N, C)
    o = o @ p["wp"] + p["bp"] + xq
    attn_windows = o.reshape(-1, 1, window_size[0], window_size[1], C)
    xo = window_reverse(attn_windows, window_size, B, 1, H, W)
    xo = shortcut[:, None] + xo            # matches torch exactly for B == 1 (demo case)
    y = _layernorm(xo, p["g2"][0], p["b2"][0])
    h = jax.nn.gelu(y @ p["w1"] + p["bb1"], approximate=True)
    xo = xo + (h @ p["w2"] + p["bb2"])
    if xo.shape[1] == 1:
        xo = jnp.squeeze(xo, axis=1)
    return xo


if __name__ == "__main__":
    key = jax.random.PRNGKey(0)
    dim, num_heads, window = 32, 4, (8, 8)
    B, D, H, W = 1, 2, 16, 16                              # D=2: frame0 = query, frame1 = key/value
    kx, kp = jax.random.split(key)
    x = jax.random.normal(kx, (B, D, H, W, dim), dtype=jnp.float32)
    raw_params = init_params(kp, dim, num_heads, window)
    params = prepare_params(raw_params, dim, num_heads)    # fold scale / block-diag Wp / bf16 cast
    nW = (H // window[0]) * (W // window[1])
    N = window[0] * window[1]
    mask_matrix = jnp.zeros((nW * B, N, N), jnp.float32)   # unused: shift_size == (0, 0)

    fwd = jax.jit(functools.partial(vstsr_encoder_block_forward,
                                    window_size=window, shift_size=(0, 0)))
    out = jax.block_until_ready(fwd(x, mask_matrix, params))

    with jax.default_matmul_precision("float32"):
        ref = jax.block_until_ready(
            reference_forward(x, mask_matrix, raw_params, num_heads, window, (0, 0)))

    np.testing.assert_allclose(np.asarray(out), np.asarray(ref), rtol=1e-2, atol=1e-2)
    print("KERNEL_OK")
</pallas_src>

<mosaic_0001>
module attributes {stable_mosaic.version = 11 : i64} {
  func.func @_block_kernel(%arg0: i32, %arg1: memref<2x64x32xf32, #tpu.memory_space<vmem>>, %arg2: memref<2x64x32xf32, #tpu.memory_space<vmem>>, %arg3: memref<1x32xf32, #tpu.memory_space<vmem>>, %arg4: memref<1x32xf32, #tpu.memory_space<vmem>>, %arg5: memref<32x32xbf16, #tpu.memory_space<vmem>>, %arg6: memref<1x32xf32, #tpu.memory_space<vmem>>, %arg7: memref<32x64xbf16, #tpu.memory_space<vmem>>, %arg8: memref<1x64xf32, #tpu.memory_space<vmem>>, %arg9: memref<32x128xbf16, #tpu.memory_space<vmem>>, %arg10: memref<1x32xf32, #tpu.memory_space<vmem>>, %arg11: memref<4x64x64xf32, #tpu.memory_space<vmem>>, %arg12: memref<4x32xf32, #tpu.memory_space<vmem>>, %arg13: memref<1x32xf32, #tpu.memory_space<vmem>>, %arg14: memref<1x32xf32, #tpu.memory_space<vmem>>, %arg15: memref<32x128xbf16, #tpu.memory_space<vmem>>, %arg16: memref<1x128xf32, #tpu.memory_space<vmem>>, %arg17: memref<128x32xbf16, #tpu.memory_space<vmem>>, %arg18: memref<1x32xf32, #tpu.memory_space<vmem>>, %arg19: memref<2x64x32xf32, #tpu.memory_space<vmem>>) attributes {dimension_semantics = [#tpu.dimension_semantics<parallel>], iteration_bounds = array<i64: 2>, scalar_prefetch = 0 : i64, scratch_operands = 0 : i64, tpu.core_type = #tpu.core_type<tc>, window_params = [{transform_indices = @transform_0, window_bounds = array<i64: 2, 64, 32>}, {transform_indices = @transform_1, window_bounds = array<i64: 2, 64, 32>}, {pipeline_mode = #tpu.pipeline_mode<synchronous>, transform_indices = @transform_2, window_bounds = array<i64: 1, 32>}, {pipeline_mode = #tpu.pipeline_mode<synchronous>, transform_indices = @transform_3, window_bounds = array<i64: 1, 32>}, {pipeline_mode = #tpu.pipeline_mode<synchronous>, transform_indices = @transform_4, window_bounds = array<i64: 32, 32>}, {pipeline_mode = #tpu.pipeline_mode<synchronous>, transform_indices = @transform_5, window_bounds = array<i64: 1, 32>}, {pipeline_mode = #tpu.pipeline_mode<synchronous>, transform_indices = @transform_6, window_bounds = array<i64: 32, 64>}, {pipeline_mode = #tpu.pipeline_mode<synchronous>, transform_indices = @transform_7, window_bounds = array<i64: 1, 64>}, {pipeline_mode = #tpu.pipeline_mode<synchronous>, transform_indices = @transform_8, window_bounds = array<i64: 32, 128>}, {pipeline_mode = #tpu.pipeline_mode<synchronous>, transform_indices = @transform_9, window_bounds = array<i64: 1, 32>}, {pipeline_mode = #tpu.pipeline_mode<synchronous>, transform_indices = @transform_10, window_bounds = array<i64: 4, 64, 64>}, {pipeline_mode = #tpu.pipeline_mode<synchronous>, transform_indices = @transform_11, window_bounds = array<i64: 4, 32>}, {pipeline_mode = #tpu.pipeline_mode<synchronous>, transform_indices = @transform_12, window_bounds = array<i64: 1, 32>}, {pipeline_mode = #tpu.pipeline_mode<synchronous>, transform_indices = @transform_13, window_bounds = array<i64: 1, 32>}, {pipeline_mode = #tpu.pipeline_mode<synchronous>, transform_indices = @transform_14, window_bounds = array<i64: 32, 128>}, {pipeline_mode = #tpu.pipeline_mode<synchronous>, transform_indices = @transform_15, window_bounds = array<i64: 1, 128>}, {pipeline_mode = #tpu.pipeline_mode<synchronous>, transform_indices = @transform_16, window_bounds = array<i64: 128, 32>}, {pipeline_mode = #tpu.pipeline_mode<synchronous>, transform_indices = @transform_17, window_bounds = array<i64: 1, 32>}, {transform_indices = @transform_18, window_bounds = array<i64: 2, 64, 32>}]} {
    %c0 = arith.constant 0 : index
    %c0_0 = arith.constant 0 : index
    %c0_1 = arith.constant 0 : index
    %0 = vector.load %arg1[%c0, %c0_0, %c0_1] : memref<2x64x32xf32, #tpu.memory_space<vmem>>, vector<2x64x32xf32>
    %1 = vector.shape_cast %0 : vector<2x64x32xf32> to vector<128x32xf32>
    %c0_2 = arith.constant 0 : index
    %c0_3 = arith.constant 0 : index
    %c0_4 = arith.constant 0 : index
    %2 = vector.load %arg2[%c0_2, %c0_3, %c0_4] : memref<2x64x32xf32, #tpu.memory_space<vmem>>, vector<2x64x32xf32>
    %3 = vector.shape_cast %2 : vector<2x64x32xf32> to vector<128x32xf32>
    %c0_5 = arith.constant 0 : index
    %c0_6 = arith.constant 0 : index
    %4 = vector.load %arg3[%c0_5, %c0_6] : memref<1x32xf32, #tpu.memory_space<vmem>>, vector<1x32xf32>
    %c0_7 = arith.constant 0 : index
    %c0_8 = arith.constant 0 : index
    %5 = vector.load %arg4[%c0_7, %c0_8] : memref<1x32xf32, #tpu.memory_space<vmem>>, vector<1x32xf32>
    %cst = arith.constant dense<0.000000e+00> : vector<128xf32>
    %6 = vector.multi_reduction <add>, %1, %cst [1] : vector<128x32xf32> to vector<128xf32>
    %7 = vector.shape_cast %6 : vector<128xf32> to vector<128x1xf32>
    %cst_9 = arith.constant 3.200000e+01 : f32
    %8 = vector.broadcast %cst_9 : f32 to vector<128x1xf32>
    %9 = arith.divf %7, %8 : vector<128x1xf32>
    %10 = vector.broadcast %9 : vector<128x1xf32> to vector<128x32xf32>
    %11 = arith.subf %1, %10 : vector<128x32xf32>
    %12 = arith.mulf %11, %11 : vector<128x32xf32>
    %cst_10 = arith.constant dense<0.000000e+00> : vector<128xf32>
    %13 = vector.multi_reduction <add>, %12, %cst_10 [1] : vector<128x32xf32> to vector<128xf32>
    %14 = vector.shape_cast %13 : vector<128xf32> to vector<128x1xf32>
    %cst_11 = arith.constant 3.200000e+01 : f32
    %15 = vector.broadcast %cst_11 : f32 to vector<128x1xf32>
    %16 = arith.divf %14, %15 : vector<128x1xf32>
    %cst_12 = arith.constant 9.99999974E-6 : f32
    %17 = vector.broadcast %cst_12 : f32 to vector<128x1xf32>
    %18 = arith.addf %16, %17 : vector<128x1xf32>
    %19 = math.rsqrt %18 : vector<128x1xf32>
    %20 = vector.broadcast %19 : vector<128x1xf32> to vector<128x32xf32>
    %21 = arith.mulf %11, %20 : vector<128x32xf32>
    %22 = vector.broadcast %4 : vector<1x32xf32> to vector<128x32xf32>
    %23 = arith.mulf %21, %22 : vector<128x32xf32>
    %24 = vector.broadcast %5 : vector<1x32xf32> to vector<128x32xf32>
    %25 = arith.addf %23, %24 : vector<128x32xf32>
    %cst_13 = arith.constant dense<0.000000e+00> : vector<128xf32>
    %26 = vector.multi_reduction <add>, %3, %cst_13 [1] : vector<128x32xf32> to vector<128xf32>
    %27 = vector.shape_cast %26 : vector<128xf32> to vector<128x1xf32>
    %cst_14 = arith.constant 3.200000e+01 : f32
    %28 = vector.broadcast %cst_14 : f32 to vector<128x1xf32>
    %29 = arith.divf %27, %28 : vector<128x1xf32>
    %30 = vector.broadcast %29 : vector<128x1xf32> to vector<128x32xf32>
    %31 = arith.subf %3, %30 : vector<128x32xf32>
    %32 = arith.mulf %31, %31 : vector<128x32xf32>
    %cst_15 = arith.constant dense<0.000000e+00> : vector<128xf32>
    %33 = vector.multi_reduction <add>, %32, %cst_15 [1] : vector<128x32xf32> to vector<128xf32>
    %34 = vector.shape_cast %33 : vector<128xf32> to vector<128x1xf32>
    %cst_16 = arith.constant 3.200000e+01 : f32
    %35 = vector.broadcast %cst_16 : f32 to vector<128x1xf32>
    %36 = arith.divf %34, %35 : vector<128x1xf32>
    %cst_17 = arith.constant 9.99999974E-6 : f32
    %37 = vector.broadcast %cst_17 : f32 to vector<128x1xf32>
    %38 = arith.addf %36, %37 : vector<128x1xf32>
    %39 = math.rsqrt %38 : vector<128x1xf32>
    %40 = vector.broadcast %39 : vector<128x1xf32> to vector<128x32xf32>
    %41 = arith.mulf %31, %40 : vector<128x32xf32>
    %42 = vector.broadcast %4 : vector<1x32xf32> to vector<128x32xf32>
    %43 = arith.mulf %41, %42 : vector<128x32xf32>
    %44 = vector.broadcast %5 : vector<1x32xf32> to vector<128x32xf32>
    %45 = arith.addf %43, %44 : vector<128x32xf32>
    %46 = arith.truncf %25 : vector<128x32xf32> to vector<128x32xbf16>
    %c0_18 = arith.constant 0 : index
    %c0_19 = arith.constant 0 : index
    %47 = vector.load %arg5[%c0_18, %c0_19] : memref<32x32xbf16, #tpu.memory_space<vmem>>, vector<32x32xbf16>
    %cst_20 = arith.constant dense<0.000000e+00> : vector<128x32xf32>
    %48 = tpu.matmul %46, %47, %cst_20 {dimension_numbers = #tpu.dot_dimension_numbers<[1], [0], [0], [1], [0, 0, 1, 1], [], []>} : vector<128x32xbf16>, vector<32x32xbf16>, vector<128x32xf32> -> vector<128x32xf32>
    %c0_21 = arith.constant 0 : index
    %c0_22 = arith.constant 0 : index
    %49 = vector.load %arg6[%c0_21, %c0_22] : memref<1x32xf32, #tpu.memory_space<vmem>>, vector<1x32xf32>
    %50 = vector.broadcast %49 : vector<1x32xf32> to vector<128x32xf32>
    %51 = arith.addf %48, %50 : vector<128x32xf32>
    %52 = arith.truncf %45 : vector<128x32xf32> to vector<128x32xbf16>
    %c0_23 = arith.constant 0 : index
    %c0_24 = arith.constant 0 : index
    %53 = vector.load %arg7[%c0_23, %c0_24] : memref<32x64xbf16, #tpu.memory_space<vmem>>, vector<32x64xbf16>
    %cst_25 = arith.constant dense<0.000000e+00> : vector<128x64xf32>
    %54 = tpu.matmul %52, %53, %cst_25 {dimension_numbers = #tpu.dot_dimension_numbers<[1], [0], [0], [1], [0, 0, 1, 1], [], []>} : vector<128x32xbf16>, vector<32x64xbf16>, vector<128x64xf32> -> vector<128x64xf32>
    %c0_26 = arith.constant 0 : index
    %c0_27 = arith.constant 0 : index
    %55 = vector.load %arg8[%c0_26, %c0_27] : memref<1x64xf32, #tpu.memory_space<vmem>>, vector<1x64xf32>
    %56 = vector.broadcast %55 : vector<1x64xf32> to vector<128x64xf32>
    %57 = arith.addf %54, %56 : vector<128x64xf32>
    %58 = vector.extract_strided_slice %57 {offsets = [0, 0], sizes = [128, 32], strides = [1, 1]} : vector<128x64xf32> to vector<128x32xf32>
    %59 = vector.extract_strided_slice %57 {offsets = [0, 32], sizes = [128, 32], strides = [1, 1]} : vector<128x64xf32> to vector<128x32xf32>
    %60 = arith.truncf %59 : vector<128x32xf32> to vector<128x32xbf16>
    %c0_28 = arith.constant 0 : index
    %c0_29 = arith.constant 0 : index
    %61 = vector.load %arg9[%c0_28, %c0_29] : memref<32x128xbf16, #tpu.memory_space<vmem>>, vector<32x128xbf16>
    %cst_30 = arith.constant dense<0.000000e+00> : vector<128x128xf32>
    %62 = tpu.matmul %60, %61, %cst_30 {dimension_numbers = #tpu.dot_dimension_numbers<[1], [0], [0], [1], [0, 0, 1, 1], [], []>} : vector<128x32xbf16>, vector<32x128xbf16>, vector<128x128xf32> -> vector<128x128xf32>
    %63 = arith.truncf %62 : vector<128x128xf32> to vector<128x128xbf16>
    %64 = vector.shape_cast %51 : vector<128x32xf32> to vector<2x64x32xf32>
    %65 = arith.truncf %58 : vector<128x32xf32> to vector<128x32xbf16>
    %66 = vector.shape_cast %65 : vector<128x32xbf16> to vector<2x64x32xbf16>
    %cst_31 = arith.constant 0.000000e+00 : f32
    %67 = vector.broadcast %cst_31 : f32 to vector<2x64x32xf32>
    %c0_32 = arith.constant 0 : index
    %c0_33 = arith.constant 0 : index
    %68 = vector.load %arg12[%c0_32, %c0_33] : memref<4x32xf32, #tpu.memory_space<vmem>>, vector<1x32xf32>
    %69 = vector.shape_cast %68 : vector<1x32xf32> to vector<32xf32>
    %70 = vector.shape_cast %69 : vector<32xf32> to vector<1x1x32xf32>
    %71 = vector.broadcast %70 : vector<1x1x32xf32> to vector<2x64x32xf32>
    %72 = arith.mulf %64, %71 : vector<2x64x32xf32>
    %73 = arith.truncf %72 : vector<2x64x32xf32> to vector<2x64x32xbf16>
    "tpu.trace_start"() <{level = 10 : i32, message = "bnc,bmc->bnm"}> : () -> ()
    %cst_34 = arith.constant dense<0.000000e+00> : vector<2x64x64xf32>
    %74 = tpu.matmul %73, %66, %cst_34 {dimension_numbers = #tpu.dot_dimension_numbers<[2], [2], [1], [1], [0, 0, 0, 1, 1, 1], [0], [0]>} : vector<2x64x32xbf16>, vector<2x64x32xbf16>, vector<2x64x64xf32> -> vector<2x64x64xf32>
    "tpu.trace_stop"() : () -> ()
    %c0_35 = arith.constant 0 : index
    %c0_36 = arith.constant 0 : index
    %c0_37 = arith.constant 0 : index
    %75 = vector.load %arg11[%c0_35, %c0_36, %c0_37] : memref<4x64x64xf32, #tpu.memory_space<vmem>>, vector<1x64x64xf32>
    %76 = vector.shape_cast %75 : vector<1x64x64xf32> to vector<64x64xf32>
    %77 = vector.shape_cast %76 : vector<64x64xf32> to vector<1x64x64xf32>
    %78 = vector.broadcast %77 : vector<1x64x64xf32> to vector<2x64x64xf32>
    %79 = arith.addf %74, %78 : vector<2x64x64xf32>
    %cst_38 = arith.constant dense<0xFF800000> : vector<2x64xf32>
    %80 = vector.multi_reduction <maximumf>, %79, %cst_38 [2] : vector<2x64x64xf32> to vector<2x64xf32>
    %81 = vector.shape_cast %80 : vector<2x64xf32> to vector<2x64x1xf32>
    %82 = vector.broadcast %81 : vector<2x64x1xf32> to vector<2x64x64xf32>
    %83 = arith.subf %79, %82 : vector<2x64x64xf32>
    %84 = math.exp %83 : vector<2x64x64xf32>
    %cst_39 = arith.constant dense<0.000000e+00> : vector<2x64xf32>
    %85 = vector.multi_reduction <add>, %84, %cst_39 [2] : vector<2x64x64xf32> to vector<2x64xf32>
    %86 = vector.shape_cast %85 : vector<2x64xf32> to vector<2x64x1xf32>
    %87 = tpu.reciprocal %86 {approx = true} : vector<2x64x1xf32> -> vector<2x64x1xf32>
    %88 = vector.broadcast %87 : vector<2x64x1xf32> to vector<2x64x64xf32>
    %89 = arith.mulf %84, %88 : vector<2x64x64xf32>
    %90 = vector.extract_strided_slice %63 {offsets = [0, 0], sizes = [128, 32], strides = [1, 1]} : vector<128x128xbf16> to vector<128x32xbf16>
    %91 = vector.shape_cast %90 : vector<128x32xbf16> to vector<2x64x32xbf16>
    %92 = arith.truncf %89 : vector<2x64x64xf32> to vector<2x64x64xbf16>
    "tpu.trace_start"() <{level = 10 : i32, message = "bnm,bmc->bnc"}> : () -> ()
    %cst_40 = arith.constant dense<0.000000e+00> : vector<2x64x32xf32>
    %93 = tpu.matmul %92, %91, %cst_40 {dimension_numbers = #tpu.dot_dimension_numbers<[2], [1], [1], [2], [0, 0, 0, 1, 1, 2], [0], [0]>} : vector<2x64x64xbf16>, vector<2x64x32xbf16>, vector<2x64x32xf32> -> vector<2x64x32xf32>
    "tpu.trace_stop"() : () -> ()
    %94 = arith.addf %67, %93 : vector<2x64x32xf32>
    %c1 = arith.constant 1 : index
    %c0_41 = arith.constant 0 : index
    %95 = vector.load %arg12[%c1, %c0_41] : memref<4x32xf32, #tpu.memory_space<vmem>>, vector<1x32xf32>
    %96 = vector.shape_cast %95 : vector<1x32xf32> to vector<32xf32>
    %97 = vector.shape_cast %96 : vector<32xf32> to vector<1x1x32xf32>
    %98 = vector.broadcast %97 : vector<1x1x32xf32> to vector<2x64x32xf32>
    %99 = arith.mulf %64, %98 : vector<2x64x32xf32>
    %100 = arith.truncf %99 : vector<2x64x32xf32> to vector<2x64x32xbf16>
    "tpu.trace_start"() <{level = 10 : i32, message = "bnc,bmc->bnm"}> : () -> ()
    %cst_42 = arith.constant dense<0.000000e+00> : vector<2x64x64xf32>
    %101 = tpu.matmul %100, %66, %cst_42 {dimension_numbers = #tpu.dot_dimension_numbers<[2], [2], [1], [1], [0, 0, 0, 1, 1, 1], [0], [0]>} : vector<2x64x32xbf16>, vector<2x64x32xbf16>, vector<2x64x64xf32> -> vector<2x64x64xf32>
    "tpu.trace_stop"() : () -> ()
    %c1_43 = arith.constant 1 : index
    %c0_44 = arith.constant 0 : index
    %c0_45 = arith.constant 0 : index
    %102 = vector.load %arg11[%c1_43, %c0_44, %c0_45] : memref<4x64x64xf32, #tpu.memory_space<vmem>>, vector<1x64x64xf32>
    %103 = vector.shape_cast %102 : vector<1x64x64xf32> to vector<64x64xf32>
    %104 = vector.shape_cast %103 : vector<64x64xf32> to vector<1x64x64xf32>
    %105 = vector.broadcast %104 : vector<1x64x64xf32> to vector<2x64x64xf32>
    %106 = arith.addf %101, %105 : vector<2x64x64xf32>
    %cst_46 = arith.constant dense<0xFF800000> : vector<2x64xf32>
    %107 = vector.multi_reduction <maximumf>, %106, %cst_46 [2] : vector<2x64x64xf32> to vector<2x64xf32>
    %108 = vector.shape_cast %107 : vector<2x64xf32> to vector<2x64x1xf32>
    %109 = vector.broadcast %108 : vector<2x64x1xf32> to vector<2x64x64xf32>
    %110 = arith.subf %106, %109 : vector<2x64x64xf32>
    %111 = math.exp %110 : vector<2x64x64xf32>
    %cst_47 = arith.constant dense<0.000000e+00> : vector<2x64xf32>
    %112 = vector.multi_reduction <add>, %111, %cst_47 [2] : vector<2x64x64xf32> to vector<2x64xf32>
    %113 = vector.shape_cast %112 : vector<2x64xf32> to vector<2x64x1xf32>
    %114 = tpu.reciprocal %113 {approx = true} : vector<2x64x1xf32> -> vector<2x64x1xf32>
    %115 = vector.broadcast %114 : vector<2x64x1xf32> to vector<2x64x64xf32>
    %116 = arith.mulf %111, %115 : vector<2x64x64xf32>
    %117 = vector.extract_strided_slice %63 {offsets = [0, 32], sizes = [128, 32], strides = [1, 1]} : vector<128x128xbf16> to vector<128x32xbf16>
    %118 = vector.shape_cast %117 : vector<128x32xbf16> to vector<2x64x32xbf16>
    %119 = arith.truncf %116 : vector<2x64x64xf32> to vector<2x64x64xbf16>
    "tpu.trace_start"() <{level = 10 : i32, message = "bnm,bmc->bnc"}> : () -> ()
    %cst_48 = arith.constant dense<0.000000e+00> : vector<2x64x32xf32>
    %120 = tpu.matmul %119, %118, %cst_48 {dimension_numbers = #tpu.dot_dimension_numbers<[2], [1], [1], [2], [0, 0, 0, 1, 1, 2], [0], [0]>} : vector<2x64x64xbf16>, vector<2x64x32xbf16>, vector<2x64x32xf32> -> vector<2x64x32xf32>
    "tpu.trace_stop"() : () -> ()
    %121 = arith.addf %94, %120 : vector<2x64x32xf32>
    %c2 = arith.constant 2 : index
    %c0_49 = arith.constant 0 : index
    %122 = vector.load %arg12[%c2, %c0_49] : memref<4x32xf32, #tpu.memory_space<vmem>>, vector<1x32xf32>
    %123 = vector.shape_cast %122 : vector<1x32xf32> to vector<32xf32>
    %124 = vector.shape_cast %123 : vector<32xf32> to vector<1x1x32xf32>
    %125 = vector.broadcast %124 : vector<1x1x32xf32> to vector<2x64x32xf32>
    %126 = arith.mulf %64, %125 : vector<2x64x32xf32>
    %127 = arith.truncf %126 : vector<2x64x32xf32> to vector<2x64x32xbf16>
    "tpu.trace_start"() <{level = 10 : i32, message = "bnc,bmc->bnm"}> : () -> ()
    %cst_50 = arith.constant dense<0.000000e+00> : vector<2x64x64xf32>
    %128 = tpu.matmul %127, %66, %cst_50 {dimension_numbers = #tpu.dot_dimension_numbers<[2], [2], [1], [1], [0, 0, 0, 1, 1, 1], [0], [0]>} : vector<2x64x32xbf16>, vector<2x64x32xbf16>, vector<2x64x64xf32> -> vector<2x64x64xf32>
    "tpu.trace_stop"() : () -> ()
    %c2_51 = arith.constant 2 : index
    %c0_52 = arith.constant 0 : index
    %c0_53 = arith.constant 0 : index
    %129 = vector.load %arg11[%c2_51, %c0_52, %c0_53] : memref<4x64x64xf32, #tpu.memory_space<vmem>>, vector<1x64x64xf32>
    %130 = vector.shape_cast %129 : vector<1x64x64xf32> to vector<64x64xf32>
    %131 = vector.shape_cast %130 : vector<64x64xf32> to vector<1x64x64xf32>
    %132 = vector.broadcast %131 : vector<1x64x64xf32> to vector<2x64x64xf32>
    %133 = arith.addf %128, %132 : vector<2x64x64xf32>
    %cst_54 = arith.constant dense<0xFF800000> : vector<2x64xf32>
    %134 = vector.multi_reduction <maximumf>, %133, %cst_54 [2] : vector<2x64x64xf32> to vector<2x64xf32>
    %135 = vector.shape_cast %134 : vector<2x64xf32> to vector<2x64x1xf32>
    %136 = vector.broadcast %135 : vector<2x64x1xf32> to vector<2x64x64xf32>
    %137 = arith.subf %133, %136 : vector<2x64x64xf32>
    %138 = math.exp %137 : vector<2x64x64xf32>
    %cst_55 = arith.constant dense<0.000000e+00> : vector<2x64xf32>
    %139 = vector.multi_reduction <add>, %138, %cst_55 [2] : vector<2x64x64xf32> to vector<2x64xf32>
    %140 = vector.shape_cast %139 : vector<2x64xf32> to vector<2x64x1xf32>
    %141 = tpu.reciprocal %140 {approx = true} : vector<2x64x1xf32> -> vector<2x64x1xf32>
    %142 = vector.broadcast %141 : vector<2x64x1xf32> to vector<2x64x64xf32>
    %143 = arith.mulf %138, %142 : vector<2x64x64xf32>
    %144 = vector.extract_strided_slice %63 {offsets = [0, 64], sizes = [128, 32], strides = [1, 1]} : vector<128x128xbf16> to vector<128x32xbf16>
    %145 = vector.shape_cast %144 : vector<128x32xbf16> to vector<2x64x32xbf16>
    %146 = arith.truncf %143 : vector<2x64x64xf32> to vector<2x64x64xbf16>
    "tpu.trace_start"() <{level = 10 : i32, message = "bnm,bmc->bnc"}> : () -> ()
    %cst_56 = arith.constant dense<0.000000e+00> : vector<2x64x32xf32>
    %147 = tpu.matmul %146, %145, %cst_56 {dimension_numbers = #tpu.dot_dimension_numbers<[2], [1], [1], [2], [0, 0, 0, 1, 1, 2], [0], [0]>} : vector<2x64x64xbf16>, vector<2x64x32xbf16>, vector<2x64x32xf32> -> vector<2x64x32xf32>
    "tpu.trace_stop"() : () -> ()
    %148 = arith.addf %121, %147 : vector<2x64x32xf32>
    %c3 = arith.constant 3 : index
    %c0_57 = arith.constant 0 : index
    %149 = vector.load %arg12[%c3, %c0_57] : memref<4x32xf32, #tpu.memory_space<vmem>>, vector<1x32xf32>
    %150 = vector.shape_cast %149 : vector<1x32xf32> to vector<32xf32>
    %151 = vector.shape_cast %150 : vector<32xf32> to vector<1x1x32xf32>
    %152 = vector.broadcast %151 : vector<1x1x32xf32> to vector<2x64x32xf32>
    %153 = arith.mulf %64, %152 : vector<2x64x32xf32>
    %154 = arith.truncf %153 : vector<2x64x32xf32> to vector<2x64x32xbf16>
    "tpu.trace_start"() <{level = 10 : i32, message = "bnc,bmc->bnm"}> : () -> ()
    %cst_58 = arith.constant dense<0.000000e+00> : vector<2x64x64xf32>
    %155 = tpu.matmul %154, %66, %cst_58 {dimension_numbers = #tpu.dot_dimension_numbers<[2], [2], [1], [1], [0, 0, 0, 1, 1, 1], [0], [0]>} : vector<2x64x32xbf16>, vector<2x64x32xbf16>, vector<2x64x64xf32> -> vector<2x64x64xf32>
    "tpu.trace_stop"() : () -> ()
    %c3_59 = arith.constant 3 : index
    %c0_60 = arith.constant 0 : index
    %c0_61 = arith.constant 0 : index
    %156 = vector.load %arg11[%c3_59, %c0_60, %c0_61] : memref<4x64x64xf32, #tpu.memory_space<vmem>>, vector<1x64x64xf32>
    %157 = vector.shape_cast %156 : vector<1x64x64xf32> to vector<64x64xf32>
    %158 = vector.shape_cast %157 : vector<64x64xf32> to vector<1x64x64xf32>
    %159 = vector.broadcast %158 : vector<1x64x64xf32> to vector<2x64x64xf32>
    %160 = arith.addf %155, %159 : vector<2x64x64xf32>
    %cst_62 = arith.constant dense<0xFF800000> : vector<2x64xf32>
    %161 = vector.multi_reduction <maximumf>, %160, %cst_62 [2] : vector<2x64x64xf32> to vector<2x64xf32>
    %162 = vector.shape_cast %161 : vector<2x64xf32> to vector<2x64x1xf32>
    %163 = vector.broadcast %162 : vector<2x64x1xf32> to vector<2x64x64xf32>
    %164 = arith.subf %160, %163 : vector<2x64x64xf32>
    %165 = math.exp %164 : vector<2x64x64xf32>
    %cst_63 = arith.constant dense<0.000000e+00> : vector<2x64xf32>
    %166 = vector.multi_reduction <add>, %165, %cst_63 [2] : vector<2x64x64xf32> to vector<2x64xf32>
    %167 = vector.shape_cast %166 : vector<2x64xf32> to vector<2x64x1xf32>
    %168 = tpu.reciprocal %167 {approx = true} : vector<2x64x1xf32> -> vector<2x64x1xf32>
    %169 = vector.broadcast %168 : vector<2x64x1xf32> to vector<2x64x64xf32>
    %170 = arith.mulf %165, %169 : vector<2x64x64xf32>
    %171 = vector.extract_strided_slice %63 {offsets = [0, 96], sizes = [128, 32], strides = [1, 1]} : vector<128x128xbf16> to vector<128x32xbf16>
    %172 = vector.shape_cast %171 : vector<128x32xbf16> to vector<2x64x32xbf16>
    %173 = arith.truncf %170 : vector<2x64x64xf32> to vector<2x64x64xbf16>
    "tpu.trace_start"() <{level = 10 : i32, message = "bnm,bmc->bnc"}> : () -> ()
    %cst_64 = arith.constant dense<0.000000e+00> : vector<2x64x32xf32>
    %174 = tpu.matmul %173, %172, %cst_64 {dimension_numbers = #tpu.dot_dimension_numbers<[2], [1], [1], [2], [0, 0, 0, 1, 1, 2], [0], [0]>} : vector<2x64x64xbf16>, vector<2x64x32xbf16>, vector<2x64x32xf32> -> vector<2x64x32xf32>
    "tpu.trace_stop"() : () -> ()
    %175 = arith.addf %148, %174 : vector<2x64x32xf32>
    %176 = vector.shape_cast %175 : vector<2x64x32xf32> to vector<128x32xf32>
    %c0_65 = arith.constant 0 : index
    %c0_66 = arith.constant 0 : index
    %177 = vector.load %arg10[%c0_65, %c0_66] : memref<1x32xf32, #tpu.memory_space<vmem>>, vector<1x32xf32>
    %178 = vector.broadcast %177 : vector<1x32xf32> to vector<128x32xf32>
    %179 = arith.addf %176, %178 : vector<128x32xf32>
    %180 = arith.addf %179, %25 : vector<128x32xf32>
    %181 = arith.addf %180, %1 : vector<128x32xf32>
    %c0_67 = arith.constant 0 : index
    %c0_68 = arith.constant 0 : index
    %182 = vector.load %arg13[%c0_67, %c0_68] : memref<1x32xf32, #tpu.memory_space<vmem>>, vector<1x32xf32>
    %c0_69 = arith.constant 0 : index
    %c0_70 = arith.constant 0 : index
    %183 = vector.load %arg14[%c0_69, %c0_70] : memref<1x32xf32, #tpu.memory_space<vmem>>, vector<1x32xf32>
    %cst_71 = arith.constant dense<0.000000e+00> : vector<128xf32>
    %184 = vector.multi_reduction <add>, %181, %cst_71 [1] : vector<128x32xf32> to vector<128xf32>
    %185 = vector.shape_cast %184 : vector<128xf32> to vector<128x1xf32>
    %cst_72 = arith.constant 3.200000e+01 : f32
    %186 = vector.broadcast %cst_72 : f32 to vector<128x1xf32>
    %187 = arith.divf %185, %186 : vector<128x1xf32>
    %188 = vector.broadcast %187 : vector<128x1xf32> to vector<128x32xf32>
    %189 = arith.subf %181, %188 : vector<128x32xf32>
    %190 = arith.mulf %189, %189 : vector<128x32xf32>
    %cst_73 = arith.constant dense<0.000000e+00> : vector<128xf32>
    %191 = vector.multi_reduction <add>, %190, %cst_73 [1] : vector<128x32xf32> to vector<128xf32>
    %192 = vector.shape_cast %191 : vector<128xf32> to vector<128x1xf32>
    %cst_74 = arith.constant 3.200000e+01 : f32
    %193 = vector.broadcast %cst_74 : f32 to vector<128x1xf32>
    %194 = arith.divf %192, %193 : vector<128x1xf32>
    %cst_75 = arith.constant 9.99999974E-6 : f32
    %195 = vector.broadcast %cst_75 : f32 to vector<128x1xf32>
    %196 = arith.addf %194, %195 : vector<128x1xf32>
    %197 = math.rsqrt %196 : vector<128x1xf32>
    %198 = vector.broadcast %197 : vector<128x1xf32> to vector<128x32xf32>
    %199 = arith.mulf %189, %198 : vector<128x32xf32>
    %200 = vector.broadcast %182 : vector<1x32xf32> to vector<128x32xf32>
    %201 = arith.mulf %199, %200 : vector<128x32xf32>
    %202 = vector.broadcast %183 : vector<1x32xf32> to vector<128x32xf32>
    %203 = arith.addf %201, %202 : vector<128x32xf32>
    %204 = arith.truncf %203 : vector<128x32xf32> to vector<128x32xbf16>
    %c0_76 = arith.constant 0 : index
    %c0_77 = arith.constant 0 : index
    %205 = vector.load %arg15[%c0_76, %c0_77] : memref<32x128xbf16, #tpu.memory_space<vmem>>, vector<32x128xbf16>
    %cst_78 = arith.constant dense<0.000000e+00> : vector<128x128xf32>
    %206 = tpu.matmul %204, %205, %cst_78 {dimension_numbers = #tpu.dot_dimension_numbers<[1], [0], [0], [1], [0, 0, 1, 1], [], []>} : vector<128x32xbf16>, vector<32x128xbf16>, vector<128x128xf32> -> vector<128x128xf32>
    %c0_79 = arith.constant 0 : index
    %c0_80 = arith.constant 0 : index
    %207 = vector.load %arg16[%c0_79, %c0_80] : memref<1x128xf32, #tpu.memory_space<vmem>>, vector<1x128xf32>
    %208 = vector.broadcast %207 : vector<1x128xf32> to vector<128x128xf32>
    %209 = arith.addf %206, %208 : vector<128x128xf32>
    %210 = arith.mulf %209, %209 : vector<128x128xf32>
    %211 = arith.mulf %209, %210 : vector<128x128xf32>
    %cst_81 = arith.constant 4.471500e-02 : f32
    %212 = vector.broadcast %cst_81 : f32 to vector<128x128xf32>
    %213 = arith.mulf %212, %211 : vector<128x128xf32>
    %214 = arith.addf %209, %213 : vector<128x128xf32>
    %cst_82 = arith.constant 0.797884583 : f32
    %215 = vector.broadcast %cst_82 : f32 to vector<128x128xf32>
    %216 = arith.mulf %215, %214 : vector<128x128xf32>
    %217 = math.tanh %216 : vector<128x128xf32>
    %cst_83 = arith.constant 1.000000e+00 : f32
    %218 = vector.broadcast %cst_83 : f32 to vector<128x128xf32>
    %219 = arith.addf %218, %217 : vector<128x128xf32>
    %cst_84 = arith.constant 5.000000e-01 : f32
    %220 = vector.broadcast %cst_84 : f32 to vector<128x128xf32>
    %221 = arith.mulf %220, %219 : vector<128x128xf32>
    %222 = arith.mulf %209, %221 : vector<128x128xf32>
    %223 = arith.truncf %222 : vector<128x128xf32> to vector<128x128xbf16>
    %c0_85 = arith.constant 0 : index
    %c0_86 = arith.constant 0 : index
    %224 = vector.load %arg17[%c0_85, %c0_86] : memref<128x32xbf16, #tpu.memory_space<vmem>>, vector<128x32xbf16>
    %cst_87 = arith.constant dense<0.000000e+00> : vector<128x32xf32>
    %225 = tpu.matmul %223, %224, %cst_87 {dimension_numbers = #tpu.dot_dimension_numbers<[1], [0], [0], [1], [0, 0, 1, 1], [], []>} : vector<128x128xbf16>, vector<128x32xbf16>, vector<128x32xf32> -> vector<128x32xf32>
    %c0_88 = arith.constant 0 : index
    %c0_89 = arith.constant 0 : index
    %226 = vector.load %arg18[%c0_88, %c0_89] : memref<1x32xf32, #tpu.memory_space<vmem>>, vector<1x32xf32>
    %227 = vector.broadcast %226 : vector<1x32xf32> to vector<128x32xf32>
    %228 = arith.addf %225, %227 : vector<128x32xf32>
    %229 = arith.addf %181, %228 : vector<128x32xf32>
    %230 = vector.shape_cast %229 : vector<128x32xf32> to vector<2x64x32xf32>
    %c0_90 = arith.constant 0 : index
    %c0_91 = arith.constant 0 : index
    %c0_92 = arith.constant 0 : index
    %231 = vector.load %arg19[%c0_90, %c0_91, %c0_92] : memref<2x64x32xf32, #tpu.memory_space<vmem>>, vector<2x64x32xf32>
    tpu.vector_store %arg19[%c0_90, %c0_91, %c0_92], %230 {strides = array<i32>} : memref<2x64x32xf32, #tpu.memory_space<vmem>>, vector<2x64x32xf32>,
    return
  }
  func.func @transform_0(%arg0: i32) -> (i32, i32, i32) {
    %c0_i32 = arith.constant 0 : i32
    %c0_i32_0 = arith.constant 0 : i32
    %c0_i32_1 = arith.constant 0 : i32
    return %arg0, %c0_i32, %c0_i32_0 : i32, i32, i32
  }
  func.func @transform_1(%arg0: i32) -> (i32, i32, i32) {
    %c0_i32 = arith.constant 0 : i32
    %c0_i32_0 = arith.constant 0 : i32
    %c0_i32_1 = arith.constant 0 : i32
    return %arg0, %c0_i32, %c0_i32_0 : i32, i32, i32
  }
  func.func @transform_2(%arg0: i32) -> (i32, i32) {
    %c0_i32 = arith.constant 0 : i32
    %c0_i32_0 = arith.constant 0 : i32
    %c0_i32_1 = arith.constant 0 : i32
    return %c0_i32, %c0_i32_0 : i32, i32
  }
  func.func @transform_3(%arg0: i32) -> (i32, i32) {
    %c0_i32 = arith.constant 0 : i32
    %c0_i32_0 = arith.constant 0 : i32
    %c0_i32_1 = arith.constant 0 : i32
    return %c0_i32, %c0_i32_0 : i32, i32
  }
  func.func @transform_4(%arg0: i32) -> (i32, i32) {
    %c0_i32 = arith.constant 0 : i32
    %c0_i32_0 = arith.constant 0 : i32
    %c0_i32_1 = arith.constant 0 : i32
    return %c0_i32, %c0_i32_0 : i32, i32
  }
  func.func @transform_5(%arg0: i32) -> (i32, i32) {
    %c0_i32 = arith.constant 0 : i32
    %c0_i32_0 = arith.constant 0 : i32
    %c0_i32_1 = arith.constant 0 : i32
    return %c0_i32, %c0_i32_0 : i32, i32
  }
  func.func @transform_6(%arg0: i32) -> (i32, i32) {
    %c0_i32 = arith.constant 0 : i32
    %c0_i32_0 = arith.constant 0 : i32
    %c0_i32_1 = arith.constant 0 : i32
    return %c0_i32, %c0_i32_0 : i32, i32
  }
  func.func @transform_7(%arg0: i32) -> (i32, i32) {
    %c0_i32 = arith.constant 0 : i32
    %c0_i32_0 = arith.constant 0 : i32
    %c0_i32_1 = arith.constant 0 : i32
    return %c0_i32, %c0_i32_0 : i32, i32
  }
  func.func @transform_8(%arg0: i32) -> (i32, i32) {
    %c0_i32 = arith.constant 0 : i32
    %c0_i32_0 = arith.constant 0 : i32
    %c0_i32_1 = arith.constant 0 : i32
    return %c0_i32, %c0_i32_0 : i32, i32
  }
  func.func @transform_9(%arg0: i32) -> (i32, i32) {
    %c0_i32 = arith.constant 0 : i32
    %c0_i32_0 = arith.constant 0 : i32
    %c0_i32_1 = arith.constant 0 : i32
    return %c0_i32, %c0_i32_0 : i32, i32
  }
  func.func @transform_10(%arg0: i32) -> (i32, i32, i32) {
    %c0_i32 = arith.constant 0 : i32
    %c0_i32_0 = arith.constant 0 : i32
    %c0_i32_1 = arith.constant 0 : i32
    %c0_i32_2 = arith.constant 0 : i32
    return %c0_i32, %c0_i32_0, %c0_i32_1 : i32, i32, i32
  }
  func.func @transform_11(%arg0: i32) -> (i32, i32) {
    %c0_i32 = arith.constant 0 : i32
    %c0_i32_0 = arith.constant 0 : i32
    %c0_i32_1 = arith.constant 0 : i32
    return %c0_i32, %c0_i32_0 : i32, i32
  }
  func.func @transform_12(%arg0: i32) -> (i32, i32) {
    %c0_i32 = arith.constant 0 : i32
    %c0_i32_0 = arith.constant 0 : i32
    %c0_i32_1 = arith.constant 0 : i32
    return %c0_i32, %c0_i32_0 : i32, i32
  }
  func.func @transform_13(%arg0: i32) -> (i32, i32) {
    %c0_i32 = arith.constant 0 : i32
    %c0_i32_0 = arith.constant 0 : i32
    %c0_i32_1 = arith.constant 0 : i32
    return %c0_i32, %c0_i32_0 : i32, i32
  }
  func.func @transform_14(%arg0: i32) -> (i32, i32) {
    %c0_i32 = arith.constant 0 : i32
    %c0_i32_0 = arith.constant 0 : i32
    %c0_i32_1 = arith.constant 0 : i32
    return %c0_i32, %c0_i32_0 : i32, i32
  }
  func.func @transform_15(%arg0: i32) -> (i32, i32) {
    %c0_i32 = arith.constant 0 : i32
    %c0_i32_0 = arith.constant 0 : i32
    %c0_i32_1 = arith.constant 0 : i32
    return %c0_i32, %c0_i32_0 : i32, i32
  }
  func.func @transform_16(%arg0: i32) -> (i32, i32) {
    %c0_i32 = arith.constant 0 : i32
    %c0_i32_0 = arith.constant 0 : i32
    %c0_i32_1 = arith.constant 0 : i32
    return %c0_i32, %c0_i32_0 : i32, i32
  }
  func.func @transform_17(%arg0: i32) -> (i32, i32) {
    %c0_i32 = arith.constant 0 : i32
    %c0_i32_0 = arith.constant 0 : i32
    %c0_i32_1 = arith.constant 0 : i32
    return %c0_i32, %c0_i32_0 : i32, i32
  }
  func.func @transform_18(%arg0: i32) -> (i32, i32, i32) {
    %c0_i32 = arith.constant 0 : i32
    %c0_i32_0 = arith.constant 0 : i32
    %c0_i32_1 = arith.constant 0 : i32
    return %arg0, %c0_i32, %c0_i32_0 : i32, i32, i32
  }
}

</mosaic_0001>

<llo_original>
// kernel: vstsr_encoder_block_forward.1
$region0: #{vstsr_encoder_block_forward.1}
  #allocation0 [shape = 'u32[]', space=smem, size = 0x4, offset = 0x4, fixed_abs, tag = 'smem constant byte address 0x4 - core index']
  #allocation1 [shape = 'u32[144,128]{1,0:T(1,128)}', space=vmem, size = 0x12000, scoped, tag = 'internal scratch']
  %s0 = inlined_call_operand.vmem [shape: f32[4,64,32], index: 0, kind: input, shape index: {}]
  %s1 = inlined_call_operand.vmem [shape: f32[4,64,32], index: 1, kind: input, shape index: {}]
  %s2 = inlined_call_operand.vmem [shape: f32[1,32], index: 2, kind: input, shape index: {}]
  %s3 = inlined_call_operand.vmem [shape: f32[1,32], index: 3, kind: input, shape index: {}]
  %s4 = inlined_call_operand.vmem [shape: bf16[32,32], index: 4, kind: input, shape index: {}]
  %s5 = inlined_call_operand.vmem [shape: f32[1,32], index: 5, kind: input, shape index: {}]
  %s6 = inlined_call_operand.vmem [shape: bf16[32,64], index: 6, kind: input, shape index: {}]
  %s7 = inlined_call_operand.vmem [shape: f32[1,64], index: 7, kind: input, shape index: {}]
  %s8 = inlined_call_operand.vmem [shape: bf16[32,128], index: 8, kind: input, shape index: {}]
  %s9 = inlined_call_operand.vmem [shape: f32[1,32], index: 9, kind: input, shape index: {}]
  %s10 = inlined_call_operand.vmem [shape: f32[4,64,64], index: 10, kind: input, shape index: {}]
  %s11 = inlined_call_operand.vmem [shape: f32[4,32], index: 11, kind: input, shape index: {}]
  %s12 = inlined_call_operand.vmem [shape: f32[1,32], index: 12, kind: input, shape index: {}]
  %s13 = inlined_call_operand.vmem [shape: f32[1,32], index: 13, kind: input, shape index: {}]
  %s14 = inlined_call_operand.vmem [shape: bf16[32,128], index: 14, kind: input, shape index: {}]
  %s15 = inlined_call_operand.vmem [shape: f32[1,128], index: 15, kind: input, shape index: {}]
  %s16 = inlined_call_operand.vmem [shape: bf16[128,32], index: 16, kind: input, shape index: {}]
  %s17 = inlined_call_operand.vmem [shape: f32[1,32], index: 17, kind: input, shape index: {}]
  %s18 = inlined_call_operand.vmem [shape: f32[4,64,32], index: 18, kind: output, shape index: {}]
  %s19 = sld [smem:[#allocation0]]
  $region105: #{vstsr_encoder_block_forward.1} parent=0
    _
  %s21 = ssub.s32 1, %s19
  %s22 = scalar_select 0, %s21, %s19
  loop: start=0, step=1, limit=4
  $region2: #{vstsr_encoder_block_forward.1} parent=0 // loop_pre_header
    _
  $region3: #{vstsr_encoder_block_forward.1} parent=0 // loop_header
    %s24 = sphi 0, %s28
    %p25 = scmp.ge.s32.totalorder %s24, 4
    %s34 = sphi 0, %s36
    %s37 = sphi 0, %s34
    %s38 = sphi 0, %s37
    %s54 = sphi 0, %s38
    %s60 = sphi 0, %s62
    %s63 = sphi 0, %s60
    %s64 = sphi 0, %s63
    %s80 = sphi 0, %s64
    %s84 = sphi 0, %s84
    %s86 = sphi 0, %s84
    %s87 = sphi 0, %s86
    %s101 = sphi 0, %s87
    %s105 = sphi 0, %s105
    %s107 = sphi 0, %s105
    %s108 = sphi 0, %s107
    %s122 = sphi 0, %s108
    %s126 = sphi 0, %s126
    %s128 = sphi 0, %s126
    %s129 = sphi 0, %s128
    %s143 = sphi 0, %s129
    %s147 = sphi 0, %s147
    %s149 = sphi 0, %s147
    %s150 = sphi 0, %s149
    %s164 = sphi 0, %s150
    %s168 = sphi 0, %s168
    %s170 = sphi 0, %s168
    %s171 = sphi 0, %s170
    %s185 = sphi 0, %s171
    %s189 = sphi 0, %s189
    %s191 = sphi 0, %s189
    %s192 = sphi 0, %s191
    %s206 = sphi 0, %s192
    %s210 = sphi 0, %s210
    %s212 = sphi 0, %s210
    %s213 = sphi 0, %s212
    %s227 = sphi 0, %s213
    %s231 = sphi 0, %s231
    %s233 = sphi 0, %s231
    %s234 = sphi 0, %s233
    %s248 = sphi 0, %s234
    %s252 = sphi 0, %s252
    %s254 = sphi 0, %s252
    %s255 = sphi 0, %s254
    %s269 = sphi 0, %s255
    %s273 = sphi 0, %s273
    %s275 = sphi 0, %s273
    %s276 = sphi 0, %s275
    %s290 = sphi 0, %s276
    %s294 = sphi 0, %s294
    %s296 = sphi 0, %s294
    %s297 = sphi 0, %s296
    %s311 = sphi 0, %s297
    %s315 = sphi 0, %s315
    %s317 = sphi 0, %s315
    %s318 = sphi 0, %s317
    %s332 = sphi 0, %s318
    %s336 = sphi 0, %s336
    %s338 = sphi 0, %s336
    %s339 = sphi 0, %s338
    %s353 = sphi 0, %s339
    %s357 = sphi 0, %s357
    %s359 = sphi 0, %s357
    %s360 = sphi 0, %s359
    %s374 = sphi 0, %s360
    %s378 = sphi 0, %s378
    %s380 = sphi 0, %s378
    %s381 = sphi 0, %s380
    %s395 = sphi 0, %s381
    %s399 = sphi 0, %s399
    %s401 = sphi 0, %s399
    %s402 = sphi 0, %s401
    %s416 = sphi 0, %s402
    %s422 = sphi 0, %s424
    %s425 = sphi 0, %s422
    %s426 = sphi 0, %s425
    %s442 = sphi 0, %s426
  $region4: #{vstsr_encoder_block_forward.1} parent=0 // loop_header_branch
    %27 = sbr.rel (%p25) target = $region8
  $region5: #{vstsr_encoder_block_forward.1} parent=0 // loop_body
    %s29 = ssub.s32 %s24, 1
    %s30 = ssub.s32 %s24, 2
    %s31 = sadd.s32 %s24, 1
    %s32 = ssub.s32 %s24, %s31
    %p33 = scmp.eq.s32.totalorder %s32, 0
    %s35 = sadd.s32 %s34, 1
    %s36 = scalar_select %p33, %s34, %s35
    %p39 = pneg %p33
    %p40 = scmp.eq.s32.totalorder %s24, 1
    %p41 = por %p39, %p40
    %p42 = scmp.ne.s32.totalorder %s34, %s37
    %p43 = scmp.eq.s32.totalorder %s24, 0
    %p44 = por %p42, %p43
    %p45 = scmp.ne.s32.totalorder %s34, %s37
    %p46 = scmp.eq.s32.totalorder %s29, 1
    %p47 = por %p45, %p46
    %p48 = scmp.ne.s32.totalorder %s37, %s38
    %p49 = scmp.eq.s32.totalorder %s29, 0
    %p50 = por %p48, %p49
    %p51 = scmp.ne.s32.totalorder %s37, %s38
    %p52 = scmp.eq.s32.totalorder %s30, 1
    %p53 = por %p51, %p52
    %p55 = scmp.ne.s32.totalorder %s38, %s54
    %p56 = scmp.eq.s32.totalorder %s30, 0
    %p57 = por %p55, %p56
    %s58 = ssub.s32 %s24, %s31
    %p59 = scmp.eq.s32.totalorder %s58, 0
    %s61 = sadd.s32 %s60, 1
    %s62 = scalar_select %p59, %s60, %s61
    %p65 = pneg %p59
    %p66 = scmp.eq.s32.totalorder %s24, 1
    %p67 = por %p65, %p66
    %p68 = scmp.ne.s32.totalorder %s60, %s63
    %p69 = scmp.eq.s32.totalorder %s24, 0
    %p70 = por %p68, %p69
    %p71 = scmp.ne.s32.totalorder %s60, %s63
    %p72 = scmp.eq.s32.totalorder %s29, 1
    %p73 = por %p71, %p72
    %p74 = scmp.ne.s32.totalorder %s63, %s64
    %p75 = scmp.eq.s32.totalorder %s29, 0
    %p76 = por %p74, %p75
    %p77 = scmp.ne.s32.totalorder %s63, %s64
    %p78 = scmp.eq.s32.totalorder %s30, 1
    %p79 = por %p77, %p78
    %p81 = scmp.ne.s32.totalorder %s64, %s80
    %p82 = scmp.eq.s32.totalorder %s30, 0
    %p83 = por %p81, %p82
    %s85 = sadd.s32 %s84, 1
    %p88 = scmp.eq.s32.totalorder %s24, 1
    %p89 = scmp.ne.s32.totalorder %s84, %s86
    %p90 = scmp.eq.s32.totalorder %s24, 0
    %p91 = por %p89, %p90
    %p92 = scmp.ne.s32.totalorder %s84, %s86
    %p93 = scmp.eq.s32.totalorder %s29, 1
    %p94 = por %p92, %p93
    %p95 = scmp.ne.s32.totalorder %s86, %s87
    %p96 = scmp.eq.s32.totalorder %s29, 0
    %p97 = por %p95, %p96
    %p98 = scmp.ne.s32.totalorder %s86, %s87
    %p99 = scmp.eq.s32.totalorder %s30, 1
    %p100 = por %p98, %p99
    %p102 = scmp.ne.s32.totalorder %s87, %s101
    %p103 = scmp.eq.s32.totalorder %s30, 0
    %p104 = por %p102, %p103
    %s106 = sadd.s32 %s105, 1
    %p109 = scmp.eq.s32.totalorder %s24, 1
    %p110 = scmp.ne.s32.totalorder %s105, %s107
    %p111 = scmp.eq.s32.totalorder %s24, 0
    %p112 = por %p110, %p111
    %p113 = scmp.ne.s32.totalorder %s105, %s107
    %p114 = scmp.eq.s32.totalorder %s29, 1
    %p115 = por %p113, %p114
    %p116 = scmp.ne.s32.totalorder %s107, %s108
    %p117 = scmp.eq.s32.totalorder %s29, 0
    %p118 = por %p116, %p117
    %p119 = scmp.ne.s32.totalorder %s107, %s108
    %p120 = scmp.eq.s32.totalorder %s30, 1
    %p121 = por %p119, %p120
    %p123 = scmp.ne.s32.totalorder %s108, %s122
    %p124 = scmp.eq.s32.totalorder %s30, 0
    %p125 = por %p123, %p124
    %s127 = sadd.s32 %s126, 1
    %p130 = scmp.eq.s32.totalorder %s24, 1
    %p131 = scmp.ne.s32.totalorder %s126, %s128
    %p132 = scmp.eq.s32.totalorder %s24, 0
    %p133 = por %p131, %p132
    %p134 = scmp.ne.s32.totalorder %s126, %s128
    %p135 = scmp.eq.s32.totalorder %s29, 1
    %p136 = por %p134, %p135
    %p137 = scmp.ne.s32.totalorder %s128, %s129
    %p138 = scmp.eq.s32.totalorder %s29, 0
    %p139 = por %p137, %p138
    %p140 = scmp.ne.s32.totalorder %s128, %s129
    %p141 = scmp.eq.s32.totalorder %s30, 1
    %p142 = por %p140, %p141
    %p144 = scmp.ne.s32.totalorder %s129, %s143
    %p145 = scmp.eq.s32.totalorder %s30, 0
    %p146 = por %p144, %p145
    %s148 = sadd.s32 %s147, 1
    %p151 = scmp.eq.s32.totalorder %s24, 1
    %p152 = scmp.ne.s32.totalorder %s147, %s149
    %p153 = scmp.eq.s32.totalorder %s24, 0
    %p154 = por %p152, %p153
    %p155 = scmp.ne.s32.totalorder %s147, %s149
    %p156 = scmp.eq.s32.totalorder %s29, 1
    %p157 = por %p155, %p156
    %p158 = scmp.ne.s32.totalorder %s149, %s150
    %p159 = scmp.eq.s32.totalorder %s29, 0
    %p160 = por %p158, %p159
    %p161 = scmp.ne.s32.totalorder %s149, %s150
    %p162 = scmp.eq.s32.totalorder %s30, 1
    %p163 = por %p161, %p162
    %p165 = scmp.ne.s32.totalorder %s150, %s164
    %p166 = scmp.eq.s32.totalorder %s30, 0
    %p167 = por %p165, %p166
    %s169 = sadd.s32 %s168, 1
    %p172 = scmp.eq.s32.totalorder %s24, 1
    %p173 = scmp.ne.s32.totalorder %s168, %s170
    %p174 = scmp.eq.s32.totalorder %s24, 0
    %p175 = por %p173, %p174
    %p176 = scmp.ne.s32.totalorder %s168, %s170
    %p177 = scmp.eq.s32.totalorder %s29, 1
    %p178 = por %p176, %p177
    %p179 = scmp.ne.s32.totalorder %s170, %s171
    %p180 = scmp.eq.s32.totalorder %s29, 0
    %p181 = por %p179, %p180
    %p182 = scmp.ne.s32.totalorder %s170, %s171
    %p183 = scmp.eq.s32.totalorder %s30, 1
    %p184 = por %p182, %p183
    %p186 = scmp.ne.s32.totalorder %s171, %s185
    %p187 = scmp.eq.s32.totalorder %s30, 0
    %p188 = por %p186, %p187
    %s190 = sadd.s32 %s189, 1
    %p193 = scmp.eq.s32.totalorder %s24, 1
    %p194 = scmp.ne.s32.totalorder %s189, %s191
    %p195 = scmp.eq.s32.totalorder %s24, 0
    %p196 = por %p194, %p195
    %p197 = scmp.ne.s32.totalorder %s189, %s191
    %p198 = scmp.eq.s32.totalorder %s29, 1
    %p199 = por %p197, %p198
    %p200 = scmp.ne.s32.totalorder %s191, %s192
    %p201 = scmp.eq.s32.totalorder %s29, 0
    %p202 = por %p200, %p201
    %p203 = scmp.ne.s32.totalorder %s191, %s192
    %p204 = scmp.eq.s32.totalorder %s30, 1
    %p205 = por %p203, %p204
    %p207 = scmp.ne.s32.totalorder %s192, %s206
    %p208 = scmp.eq.s32.totalorder %s30, 0
    %p209 = por %p207, %p208
    %s211 = sadd.s32 %s210, 1
    %p214 = scmp.eq.s32.totalorder %s24, 1
    %p215 = scmp.ne.s32.totalorder %s210, %s212
    %p216 = scmp.eq.s32.totalorder %s24, 0
    %p217 = por %p215, %p216
    %p218 = scmp.ne.s32.totalorder %s210, %s212
    %p219 = scmp.eq.s32.totalorder %s29, 1
    %p220 = por %p218, %p219
    %p221 = scmp.ne.s32.totalorder %s212, %s213
    %p222 = scmp.eq.s32.totalorder %s29, 0
    %p223 = por %p221, %p222
    %p224 = scmp.ne.s32.totalorder %s212, %s213
    %p225 = scmp.eq.s32.totalorder %s30, 1
    %p226 = por %p224, %p225
    %p228 = scmp.ne.s32.totalorder %s213, %s227
    %p229 = scmp.eq.s32.totalorder %s30, 0
    %p230 = por %p228, %p229
    %s232 = sadd.s32 %s231, 1
    %p235 = scmp.eq.s32.totalorder %s24, 1
    %p236 = scmp.ne.s32.totalorder %s231, %s233
    %p237 = scmp.eq.s32.totalorder %s24, 0
    %p238 = por %p236, %p237
    %p239 = scmp.ne.s32.totalorder %s231, %s233
    %p240 = scmp.eq.s32.totalorder %s29, 1
    %p241 = por %p239, %p240
    %p242 = scmp.ne.s32.totalorder %s233, %s234
    %p243 = scmp.eq.s32.totalorder %s29, 0
    %p244 = por %p242, %p243
    %p245 = scmp.ne.s32.totalorder %s233, %s234
    %p246 = scmp.eq.s32.totalorder %s30, 1
    %p247 = por %p245, %p246
    %p249 = scmp.ne.s32.totalorder %s234, %s248
    %p250 = scmp.eq.s32.totalorder %s30, 0
    %p251 = por %p249, %p250
    %s253 = sadd.s32 %s252, 1
    %p256 = scmp.eq.s32.totalorder %s24, 1
    %p257 = scmp.ne.s32.totalorder %s252, %s254
    %p258 = scmp.eq.s32.totalorder %s24, 0
    %p259 = por %p257, %p258
    %p260 = scmp.ne.s32.totalorder %s252, %s254
    %p261 = scmp.eq.s32.totalorder %s29, 1
    %p262 = por %p260, %p261
    %p263 = scmp.ne.s32.totalorder %s254, %s255
    %p264 = scmp.eq.s32.totalorder %s29, 0
    %p265 = por %p263, %p264
    %p266 = scmp.ne.s32.totalorder %s254, %s255
    %p267 = scmp.eq.s32.totalorder %s30, 1
    %p268 = por %p266, %p267
    %p270 = scmp.ne.s32.totalorder %s255, %s269
    %p271 = scmp.eq.s32.totalorder %s30, 0
    %p272 = por %p270, %p271
    %s274 = sadd.s32 %s273, 1
    %p277 = scmp.eq.s32.totalorder %s24, 1
    %p278 = scmp.ne.s32.totalorder %s273, %s275
    %p279 = scmp.eq.s32.totalorder %s24, 0
    %p280 = por %p278, %p279
    %p281 = scmp.ne.s32.totalorder %s273, %s275
    %p282 = scmp.eq.s32.totalorder %s29, 1
    %p283 = por %p281, %p282
    %p284 = scmp.ne.s32.totalorder %s275, %s276
    %p285 = scmp.eq.s32.totalorder %s29, 0
    %p286 = por %p284, %p285
    %p287 = scmp.ne.s32.totalorder %s275, %s276
    %p288 = scmp.eq.s32.totalorder %s30, 1
    %p289 = por %p287, %p288
    %p291 = scmp.ne.s32.totalorder %s276, %s290
    %p292 = scmp.eq.s32.totalorder %s30, 0
    %p293 = por %p291, %p292
    %s295 = sadd.s32 %s294, 1
    %p298 = scmp.eq.s32.totalorder %s24, 1
    %p299 = scmp.ne.s32.totalorder %s294, %s296
    %p300 = scmp.eq.s32.totalorder %s24, 0
    %p301 = por %p299, %p300
    %p302 = scmp.ne.s32.totalorder %s294, %s296
    %p303 = scmp.eq.s32.totalorder %s29, 1
    %p304 = por %p302, %p303
    %p305 = scmp.ne.s32.totalorder %s296, %s297
    %p306 = scmp.eq.s32.totalorder %s29, 0
    %p307 = por %p305, %p306
    %p308 = scmp.ne.s32.totalorder %s296, %s297
    %p309 = scmp.eq.s32.totalorder %s30, 1
    %p310 = por %p308, %p309
    %p312 = scmp.ne.s32.totalorder %s297, %s311
    %p313 = scmp.eq.s32.totalorder %s30, 0
    %p314 = por %p312, %p313
    %s316 = sadd.s32 %s315, 1
    %p319 = scmp.eq.s32.totalorder %s24, 1
    %p320 = scmp.ne.s32.totalorder %s315, %s317
    %p321 = scmp.eq.s32.totalorder %s24, 0
    %p322 = por %p320, %p321
    %p323 = scmp.ne.s32.totalorder %s315, %s317
    %p324 = scmp.eq.s32.totalorder %s29, 1
    %p325 = por %p323, %p324
    %p326 = scmp.ne.s32.totalorder %s317, %s318
    %p327 = scmp.eq.s32.totalorder %s29, 0
    %p328 = por %p326, %p327
    %p329 = scmp.ne.s32.totalorder %s317, %s318
    %p330 = scmp.eq.s32.totalorder %s30, 1
    %p331 = por %p329, %p330
    %p333 = scmp.ne.s32.totalorder %s318, %s332
    %p334 = scmp.eq.s32.totalorder %s30, 0
    %p335 = por %p333, %p334
    %s337 = sadd.s32 %s336, 1
    %p340 = scmp.eq.s32.totalorder %s24, 1
    %p341 = scmp.ne.s32.totalorder %s336, %s338
    %p342 = scmp.eq.s32.totalorder %s24, 0
    %p343 = por %p341, %p342
    %p344 = scmp.ne.s32.totalorder %s336, %s338
    %p345 = scmp.eq.s32.totalorder %s29, 1
    %p346 = por %p344, %p345
    %p347 = scmp.ne.s32.totalorder %s338, %s339
    %p348 = scmp.eq.s32.totalorder %s29, 0
    %p349 = por %p347, %p348
    %p350 = scmp.ne.s32.totalorder %s338, %s339
    %p351 = scmp.eq.s32.totalorder %s30, 1
    %p352 = por %p350, %p351
    %p354 = scmp.ne.s32.totalorder %s339, %s353
    %p355 = scmp.eq.s32.totalorder %s30, 0
    %p356 = por %p354, %p355
    %s358 = sadd.s32 %s357, 1
    %p361 = scmp.eq.s32.totalorder %s24, 1
    %p362 = scmp.ne.s32.totalorder %s357, %s359
    %p363 = scmp.eq.s32.totalorder %s24, 0
    %p364 = por %p362, %p363
    %p365 = scmp.ne.s32.totalorder %s357, %s359
    %p366 = scmp.eq.s32.totalorder %s29, 1
    %p367 = por %p365, %p366
    %p368 = scmp.ne.s32.totalorder %s359, %s360
    %p369 = scmp.eq.s32.totalorder %s29, 0
    %p370 = por %p368, %p369
    %p371 = scmp.ne.s32.totalorder %s359, %s360
    %p372 = scmp.eq.s32.totalorder %s30, 1
    %p373 = por %p371, %p372
    %p375 = scmp.ne.s32.totalorder %s360, %s374
    %p376 = scmp.eq.s32.totalorder %s30, 0
    %p377 = por %p375, %p376
    %s379 = sadd.s32 %s378, 1
    %p382 = scmp.eq.s32.totalorder %s24, 1
    %p383 = scmp.ne.s32.totalorder %s378, %s380
    %p384 = scmp.eq.s32.totalorder %s24, 0
    %p385 = por %p383, %p384
    %p386 = scmp.ne.s32.totalorder %s378, %s380
    %p387 = scmp.eq.s32.totalorder %s29, 1
    %p388 = por %p386, %p387
    %p389 = scmp.ne.s32.totalorder %s380, %s381
    %p390 = scmp.eq.s32.totalorder %s29, 0
    %p391 = por %p389, %p390
    %p392 = scmp.ne.s32.totalorder %s380, %s381
    %p393 = scmp.eq.s32.totalorder %s30, 1
    %p394 = por %p392, %p393
    %p396 = scmp.ne.s32.totalorder %s381, %s395
    %p397 = scmp.eq.s32.totalorder %s30, 0
    %p398 = por %p396, %p397
    %s400 = sadd.s32 %s399, 1
    %p403 = scmp.eq.s32.totalorder %s24, 1
    %p404 = scmp.ne.s32.totalorder %s399, %s401
    %p405 = scmp.eq.s32.totalorder %s24, 0
    %p406 = por %p404, %p405
    %p407 = scmp.ne.s32.totalorder %s399, %s401
    %p408 = scmp.eq.s32.totalorder %s29, 1
    %p409 = por %p407, %p408
    %p410 = scmp.ne.s32.totalorder %s401, %s402
    %p411 = scmp.eq.s32.totalorder %s29, 0
    %p412 = por %p410, %p411
    %p413 = scmp.ne.s32.totalorder %s401, %s402
    %p414 = scmp.eq.s32.totalorder %s30, 1
    %p415 = por %p413, %p414
    %p417 = scmp.ne.s32.totalorder %s402, %s416
    %p418 = scmp.eq.s32.totalorder %s30, 0
    %p419 = por %p417, %p418
    %s420 = ssub.s32 %s24, %s31
    %p421 = scmp.eq.s32.totalorder %s420, 0
    %s423 = sadd.s32 %s422, 1
    %s424 = scalar_select %p421, %s422, %s423
    %p427 = pneg %p421
    %p428 = scmp.eq.s32.totalorder %s24, 1
    %p429 = por %p427, %p428
    %p430 = scmp.ne.s32.totalorder %s422, %s425
    %p431 = scmp.eq.s32.totalorder %s24, 0
    %p432 = por %p430, %p431
    %p433 = scmp.ne.s32.totalorder %s422, %s425
    %p434 = scmp.eq.s32.totalorder %s29, 1
    %p435 = por %p433, %p434
    %p436 = scmp.ne.s32.totalorder %s425, %s426
    %p437 = scmp.eq.s32.totalorder %s29, 0
    %p438 = por %p436, %p437
    %p439 = scmp.ne.s32.totalorder %s425, %s426
    %p440 = scmp.eq.s32.totalorder %s30, 1
    %p441 = por %p439, %p440
    %p443 = scmp.ne.s32.totalorder %s426, %s442
    %p444 = scmp.eq.s32.totalorder %s30, 0
    %p445 = por %p443, %p444
    %p446 = scmp.le.s32.totalorder 1, %s24
    %p447 = scmp.lt.s32.totalorder %s24, 3
    %p448 = pnand %p446, %p447
    %p449 = pneg %p448
    // Predicated region
    $region9: #{vstsr_encoder_block_forward.1} parent=5 // pred_check
      _
    $region10: #{vstsr_encoder_block_forward.1} parent=5 // pred_check_branch
      %451 = sbr.rel (%p448) target = $region12
    $region11: #{vstsr_encoder_block_forward.1} parent=5 // pred_region
      %s452 = ssub.s32 %s24, 1
      // Predicated region
      $region13: #{vstsr_encoder_block_forward.1} parent=11 // pred_check
        %p453 = pneg %p97
      $region14: #{vstsr_encoder_block_forward.1} parent=11 // pred_check_branch
        %455 = sbr.rel (%p453) target = $region16
      $region15: #{vstsr_encoder_block_forward.1} parent=11 // pred_region
        _
      $region16: #{vstsr_encoder_block_forward.1} parent=11 // pred_fallthru
        _
      // Predicated region
      $region17: #{vstsr_encoder_block_forward.1} parent=11 // pred_check
        %p456 = pneg %p118
      $region18: #{vstsr_encoder_block_forward.1} parent=11 // pred_check_branch
        %458 = sbr.rel (%p456) target = $region20
      $region19: #{vstsr_encoder_block_forward.1} parent=11 // pred_region
        _
      $region20: #{vstsr_encoder_block_forward.1} parent=11 // pred_fallthru
        _
      // Predicated region
      $region21: #{vstsr_encoder_block_forward.1} parent=11 // pred_check
        %p459 = pneg %p139
      $region22: #{vstsr_encoder_block_forward.1} parent=11 // pred_check_branch
        %461 = sbr.rel (%p459) target = $region24
      $region23: #{vstsr_encoder_block_forward.1} parent=11 // pred_region
        _
      $region24: #{vstsr_encoder_block_forward.1} parent=11 // pred_fallthru
        _
      // Predicated region
      $region25: #{vstsr_encoder_block_forward.1} parent=11 // pred_check
        %p462 = pneg %p160
      $region26: #{vstsr_encoder_block_forward.1} parent=11 // pred_check_branch
        %464 = sbr.rel (%p462) target = $region28
      $region27: #{vstsr_encoder_block_forward.1} parent=11 // pred_region
        _
      $region28: #{vstsr_encoder_block_forward.1} parent=11 // pred_fallthru
        _
      // Predicated region
      $region29: #{vstsr_encoder_block_forward.1} parent=11 // pred_check
        %p465 = pneg %p181
      $region30: #{vstsr_encoder_block_forward.1} parent=11 // pred_check_branch
        %467 = sbr.rel (%p465) target = $region32
      $region31: #{vstsr_encoder_block_forward.1} parent=11 // pred_region
        _
      $region32: #{vstsr_encoder_block_forward.1} parent=11 // pred_fallthru
        _
      // Predicated region
      $region33: #{vstsr_encoder_block_forward.1} parent=11 // pred_check
        %p468 = pneg %p202
      $region34: #{vstsr_encoder_block_forward.1} parent=11 // pred_check_branch
        %470 = sbr.rel (%p468) target = $region36
      $region35: #{vstsr_encoder_block_forward.1} parent=11 // pred_region
        _
      $region36: #{vstsr_encoder_block_forward.1} parent=11 // pred_fallthru
        _
      // Predicated region
      $region37: #{vstsr_encoder_block_forward.1} parent=11 // pred_check
        %p471 = pneg %p223
      $region38: #{vstsr_encoder_block_forward.1} parent=11 // pred_check_branch
        %473 = sbr.rel (%p471) target = $region40
      $region39: #{vstsr_encoder_block_forward.1} parent=11 // pred_region
        _
      $region40: #{vstsr_encoder_block_forward.1} parent=11 // pred_fallthru
        _
      // Predicated region
      $region41: #{vstsr_encoder_block_forward.1} parent=11 // pred_check
        %p474 = pneg %p244
      $region42: #{vstsr_encoder_block_forward.1} parent=11 // pred_check_branch
        %476 = sbr.rel (%p474) target = $region44
      $region43: #{vstsr_encoder_block_forward.1} parent=11 // pred_region
        _
      $region44: #{vstsr_encoder_block_forward.1} parent=11 // pred_fallthru
        _
      // Predicated region
      $region45: #{vstsr_encoder_block_forward.1} parent=11 // pred_check
        %p477 = pneg %p265
      $region46: #{vstsr_encoder_block_forward.1} parent=11 // pred_check_branch
        %479 = sbr.rel (%p477) target = $region48
      $region47: #{vstsr_encoder_block_forward.1} parent=11 // pred_region
        _
      $region48: #{vstsr_encoder_block_forward.1} parent=11 // pred_fallthru
        _
      // Predicated region
      $region49: #{vstsr_encoder_block_forward.1} parent=11 // pred_check
        %p480 = pneg %p286
      $region50: #{vstsr_encoder_block_forward.1} parent=11 // pred_check_branch
        %482 = sbr.rel (%p480) target = $region52
      $region51: #{vstsr_encoder_block_forward.1} parent=11 // pred_region
        _
      $region52: #{vstsr_encoder_block_forward.1} parent=11 // pred_fallthru
        _
      // Predicated region
      $region53: #{vstsr_encoder_block_forward.1} parent=11 // pred_check
        %p483 = pneg %p307
      $region54: #{vstsr_encoder_block_forward.1} parent=11 // pred_check_branch
        %485 = sbr.rel (%p483) target = $region56
      $region55: #{vstsr_encoder_block_forward.1} parent=11 // pred_region
        _
      $region56: #{vstsr_encoder_block_forward.1} parent=11 // pred_fallthru
        _
      // Predicated region
      $region57: #{vstsr_encoder_block_forward.1} parent=11 // pred_check
        %p486 = pneg %p328
      $region58: #{vstsr_encoder_block_forward.1} parent=11 // pred_check_branch
        %488 = sbr.rel (%p486) target = $region60
      $region59: #{vstsr_encoder_block_forward.1} parent=11 // pred_region
        _
      $region60: #{vstsr_encoder_block_forward.1} parent=11 // pred_fallthru
        _
      // Predicated region
      $region61: #{vstsr_encoder_block_forward.1} parent=11 // pred_check
        %p489 = pneg %p349
      $region62: #{vstsr_encoder_block_forward.1} parent=11 // pred_check_branch
        %491 = sbr.rel (%p489) target = $region64
      $region63: #{vstsr_encoder_block_forward.1} parent=11 // pred_region
        _
      $region64: #{vstsr_encoder_block_forward.1} parent=11 // pred_fallthru
        _
      // Predicated region
      $region65: #{vstsr_encoder_block_forward.1} parent=11 // pred_check
        %p492 = pneg %p370
      $region66: #{vstsr_encoder_block_forward.1} parent=11 // pred_check_branch
        %494 = sbr.rel (%p492) target = $region68
      $region67: #{vstsr_encoder_block_forward.1} parent=11 // pred_region
        _
      $region68: #{vstsr_encoder_block_forward.1} parent=11 // pred_fallthru
        _
      // Predicated region
      $region69: #{vstsr_encoder_block_forward.1} parent=11 // pred_check
        %p495 = pneg %p391
      $region70: #{vstsr_encoder_block_forward.1} parent=11 // pred_check_branch
        %497 = sbr.rel (%p495) target = $region72
      $region71: #{vstsr_encoder_block_forward.1} parent=11 // pred_region
        _
      $region72: #{vstsr_encoder_block_forward.1} parent=11 // pred_fallthru
        _
      // Predicated region
      $region73: #{vstsr_encoder_block_forward.1} parent=11 // pred_check
        %p498 = pneg %p412
      $region74: #{vstsr_encoder_block_forward.1} parent=11 // pred_check_branch
        %500 = sbr.rel (%p498) target = $region76
      $region75: #{vstsr_encoder_block_forward.1} parent=11 // pred_region
        _
      $region76: #{vstsr_encoder_block_forward.1} parent=11 // pred_fallthru
        _
    $region12: #{vstsr_encoder_block_forward.1} parent=5 // pred_fallthru
      _
    %p501 = scmp.lt.s32.totalorder %s24, 2
    // Predicated region
    $region77: #{vstsr_encoder_block_forward.1} parent=5 // pred_check
      %p502 = pneg %p501
    $region78: #{vstsr_encoder_block_forward.1} parent=5 // pred_check_branch
      %504 = sbr.rel (%p502) target = $region80
    $region79: #{vstsr_encoder_block_forward.1} parent=5 // pred_region
      // Predicated region
      $region81: #{vstsr_encoder_block_forward.1} parent=79 // pred_check
        %p505 = pneg %p44
      $region82: #{vstsr_encoder_block_forward.1} parent=79 // pred_check_branch
        %507 = sbr.rel (%p505) target = $region84
      $region83: #{vstsr_encoder_block_forward.1} parent=79 // pred_region
        %s508 = smul.u32 2, %s24
        %p509 = scmp.lt.s32.totalorder %s508, 3
        %s510 = scalar_select %p509, %s508, 3
        %s511 = smul.addr %s510, 8
        %s512 = smul.addr %s511, 8
        %s513 = scalar_lea.vmem %s0, %s512
        %s514 = smul.u32 2, %s24
      $region84: #{vstsr_encoder_block_forward.1} parent=79 // pred_fallthru
        _
      // Predicated region
      $region85: #{vstsr_encoder_block_forward.1} parent=79 // pred_check
        %p515 = pneg %p70
      $region86: #{vstsr_encoder_block_forward.1} parent=79 // pred_check_branch
        %517 = sbr.rel (%p515) target = $region88
      $region87: #{vstsr_encoder_block_forward.1} parent=79 // pred_region
        %s518 = smul.u32 2, %s24
        %p519 = scmp.lt.s32.totalorder %s518, 3
        %s520 = scalar_select %p519, %s518, 3
        %s521 = smul.addr %s520, 8
        %s522 = smul.addr %s521, 8
        %s523 = scalar_lea.vmem %s1, %s522
        %s524 = smul.u32 2, %s24
      $region88: #{vstsr_encoder_block_forward.1} parent=79 // pred_fallthru
        _
    $region80: #{vstsr_encoder_block_forward.1} parent=5 // pred_fallthru
      _
    %p525 = scmp.le.s32.totalorder 1, %s24
    %p526 = scmp.lt.s32.totalorder %s24, 3
    %p527 = pnand %p525, %p526
    %p528 = pneg %p527
    // Predicated region
    $region89: #{vstsr_encoder_block_forward.1} parent=5 // pred_check
      _
    $region90: #{vstsr_encoder_block_forward.1} parent=5 // pred_check_branch
      %530 = sbr.rel (%p527) target = $region92
    $region91: #{vstsr_encoder_block_forward.1} parent=5 // pred_region
      %s531 = ssub.s32 %s24, 1
      %s532 = smul.u32 2, %s29
      %p533 = scmp.lt.s32.totalorder %s532, 3
      %s534 = scalar_select %p533, %s532, 3
      %s535 = smul.addr %s534, 8
      %s536 = smul.addr %s535, 8
      %s537 = scalar_lea.vmem %s0, %s536
      %p538 = pneg %p50
      %p539 = pneg %p47
      %s540 = smul.u32 2, %s29
      %p541 = scmp.lt.s32.totalorder %s540, 3
      %s542 = scalar_select %p541, %s540, 3
      %s543 = smul.addr %s542, 8
      %s544 = smul.addr %s543, 8
      %s545 = scalar_lea.vmem %s1, %s544
      %p546 = pneg %p76
      %p547 = pneg %p73
      %p548 = pneg %p97
      %p549 = pneg %p94
      %p550 = pneg %p118
      %p551 = pneg %p115
      %p552 = pneg %p139
      %p553 = pneg %p136
      %p554 = pneg %p160
      %p555 = pneg %p157
      %p556 = pneg %p181
      %p557 = pneg %p178
      %p558 = pneg %p202
      %p559 = pneg %p199
      %p560 = pneg %p223
      %p561 = pneg %p220
      %p562 = pneg %p244
      %p563 = pneg %p241
      %p564 = pneg %p265
      %p565 = pneg %p262
      %p566 = pneg %p286
      %p567 = pneg %p283
      %p568 = pneg %p307
      %p569 = pneg %p304
      %p570 = pneg %p328
      %p571 = pneg %p325
      %p572 = pneg %p349
      %p573 = pneg %p346
      %p574 = pneg %p370
      %p575 = pneg %p367
      %p576 = pneg %p391
      %p577 = pneg %p388
      %p578 = pneg %p412
      %p579 = pneg %p409
      %p580 = pneg %p438
      %p581 = pneg %p435
      %s582 = smul.u32 2, %s29
      %p583 = scmp.lt.s32.totalorder %s582, 3
      %s584 = scalar_select %p583, %s582, 3
      %s585 = smul.addr %s584, 8
      %s586 = smul.addr %s585, 8
      %s587 = scalar_lea.vmem %s18, %s586
      %s588 = smul.u32 2, %s29
      %p589 = scmp.lt.s32.totalorder %s588, 3
      %s590 = scalar_select %p589, %s588, 3
      %s591 = smul.addr %s590, 8
      %s592 = smul.addr %s591, 8
      %s593 = scalar_lea.vmem %s0, %s592
      %s594 = smul.u32 2, %s29
      %s595 = smul.u32 2, %s29
      %p596 = scmp.lt.s32.totalorder %s595, 3
      %s597 = scalar_select %p596, %s595, 3
      %s598 = smul.addr %s597, 8
      %s599 = smul.addr %s598, 8
      %s600 = scalar_lea.vmem %s1, %s599
      %s601 = smul.u32 2, %s29
      %s602 = smul.u32 2, %s29
      %p603 = scmp.lt.s32.totalorder %s602, 3
      %s604 = scalar_select %p603, %s602, 3
      %s605 = smul.addr %s604, 8
      %s606 = smul.addr %s605, 8
      %s607 = scalar_lea.vmem %s18, %s606
      %s608 = smul.u32 2, %s29
      %v610 = vld [vmem:[%s593] sm:$0xff]
      %v611 = vld [vmem:[%s593 + $0x8] sm:$0xff]
      %v612 = vld [vmem:[%s593 + $0x10] sm:$0xff]
      %v613 = vld [vmem:[%s593 + $0x18] sm:$0xff]
      %v614 = vld [vmem:[%s593 + $0x20] sm:$0xff]
      %v615 = vld [vmem:[%s593 + $0x28] sm:$0xff]
      %v616 = vld [vmem:[%s593 + $0x30] sm:$0xff]
      %v617 = vld [vmem:[%s593 + $0x38] sm:$0xff]
      %v618 = vld [vmem:[%s593 + $0x40] sm:$0xff]
      %v619 = vld [vmem:[%s593 + $0x48] sm:$0xff]
      %v620 = vld [vmem:[%s593 + $0x50] sm:$0xff]
      %v621 = vld [vmem:[%s593 + $0x58] sm:$0xff]
      %v622 = vld [vmem:[%s593 + $0x60] sm:$0xff]
      %v623 = vld [vmem:[%s593 + $0x68] sm:$0xff]
      %v624 = vld [vmem:[%s593 + $0x70] sm:$0xff]
      %v625 = vld [vmem:[%s593 + $0x78] sm:$0xff]
      %v626 = vld [vmem:[%s600] sm:$0xff]
      %v627 = vld [vmem:[%s600 + $0x8] sm:$0xff]
      %v628 = vld [vmem:[%s600 + $0x10] sm:$0xff]
      %v629 = vld [vmem:[%s600 + $0x18] sm:$0xff]
      %v630 = vld [vmem:[%s600 + $0x20] sm:$0xff]
      %v631 = vld [vmem:[%s600 + $0x28] sm:$0xff]
      %v632 = vld [vmem:[%s600 + $0x30] sm:$0xff]
      %v633 = vld [vmem:[%s600 + $0x38] sm:$0xff]
      %v634 = vld [vmem:[%s600 + $0x40] sm:$0xff]
      %v635 = vld [vmem:[%s600 + $0x48] sm:$0xff]
      %v636 = vld [vmem:[%s600 + $0x50] sm:$0xff]
      %v637 = vld [vmem:[%s600 + $0x58] sm:$0xff]
      %v638 = vld [vmem:[%s600 + $0x60] sm:$0xff]
      %v639 = vld [vmem:[%s600 + $0x68] sm:$0xff]
      %v640 = vld [vmem:[%s600 + $0x70] sm:$0xff]
      %v641 = vld [vmem:[%s600 + $0x78] sm:$0xff]
      %v642 = vld [vmem:[%s2] sm:$0x1]
      %v643 = vld [vmem:[%s3] sm:$0x1]
      %vm644 = vcmask 261120
      %v645 = vsel %vm644, %v610, 0.0
      %646 = vadd.xlane.f32.xlu0 %v645
      %v647 = vpop.xlane.xlu0 %646
      %v648 = vsel %vm644, %v611, 0.0
      %649 = vadd.xlane.f32.xlu0 %v648
      %v650 = vpop.xlane.xlu0 %649
      %v651 = vsel %vm644, %v612, 0.0
      %652 = vadd.xlane.f32.xlu0 %v651
      %v653 = vpop.xlane.xlu0 %652
      %v654 = vsel %vm644, %v613, 0.0
      %655 = vadd.xlane.f32.xlu0 %v654
      %v656 = vpop.xlane.xlu0 %655
      %v657 = vsel %vm644, %v614, 0.0
      %658 = vadd.xlane.f32.xlu0 %v657
      %v659 = vpop.xlane.xlu0 %658
      %v660 = vsel %vm644, %v615, 0.0
      %661 = vadd.xlane.f32.xlu0 %v660
      %v662 = vpop.xlane.xlu0 %661
      %v663 = vsel %vm644, %v616, 0.0
      %664 = vadd.xlane.f32.xlu0 %v663
      %v665 = vpop.xlane.xlu0 %664
      %v666 = vsel %vm644, %v617, 0.0
      %667 = vadd.xlane.f32.xlu0 %v666
      %v668 = vpop.xlane.xlu0 %667
      %v669 = vsel %vm644, %v618, 0.0
      %670 = vadd.xlane.f32.xlu0 %v669
      %v671 = vpop.xlane.xlu0 %670
      %v672 = vsel %vm644, %v619, 0.0
      %673 = vadd.xlane.f32.xlu0 %v672
      %v674 = vpop.xlane.xlu0 %673
      %v675 = vsel %vm644, %v620, 0.0
      %676 = vadd.xlane.f32.xlu0 %v675
      %v677 = vpop.xlane.xlu0 %676
      %v678 = vsel %vm644, %v621, 0.0
      %679 = vadd.xlane.f32.xlu0 %v678
      %v680 = vpop.xlane.xlu0 %679
      %v681 = vsel %vm644, %v622, 0.0
      %682 = vadd.xlane.f32.xlu0 %v681
      %v683 = vpop.xlane.xlu0 %682
      %v684 = vsel %vm644, %v623, 0.0
      %685 = vadd.xlane.f32.xlu0 %v684
      %v686 = vpop.xlane.xlu0 %685
      %v687 = vsel %vm644, %v624, 0.0
      %688 = vadd.xlane.f32.xlu0 %v687
      %v689 = vpop.xlane.xlu0 %688
      %v690 = vsel %vm644, %v625, 0.0
      %691 = vadd.xlane.f32.xlu0 %v690
      %v692 = vpop.xlane.xlu0 %691
      %v693 = vrcp.pop 32.0
      %v694 = vmul.f32 %v647, %v693
      %v695 = vmul.f32 %v650, %v693
      %v696 = vmul.f32 %v653, %v693
      %v697 = vmul.f32 %v656, %v693
      %v698 = vmul.f32 %v659, %v693
      %v699 = vmul.f32 %v662, %v693
      %v700 = vmul.f32 %v665, %v693
      %v701 = vmul.f32 %v668, %v693
      %v702 = vmul.f32 %v671, %v693
      %v703 = vmul.f32 %v674, %v693
      %v704 = vmul.f32 %v677, %v693
      %v705 = vmul.f32 %v680, %v693
      %v706 = vmul.f32 %v683, %v693
      %v707 = vmul.f32 %v686, %v693
      %v708 = vmul.f32 %v689, %v693
      %v709 = vmul.f32 %v692, %v693
      %v710 = vsub.f32 %v610, %v694
      %v711 = vsub.f32 %v611, %v695
      %v712 = vsub.f32 %v612, %v696
      %v713 = vsub.f32 %v613, %v697
      %v714 = vsub.f32 %v614, %v698
      %v715 = vsub.f32 %v615, %v699
      %v716 = vsub.f32 %v616, %v700
      %v717 = vsub.f32 %v617, %v701
      %v718 = vsub.f32 %v618, %v702
      %v719 = vsub.f32 %v619, %v703
      %v720 = vsub.f32 %v620, %v704
      %v721 = vsub.f32 %v621, %v705
      %v722 = vsub.f32 %v622, %v706
      %v723 = vsub.f32 %v623, %v707
      %v724 = vsub.f32 %v624, %v708
      %v725 = vsub.f32 %v625, %v709
      %v726 = vmul.f32 %v710, %v710
      %v727 = vmul.f32 %v711, %v711
      %v728 = vmul.f32 %v712, %v712
      %v729 = vmul.f32 %v713, %v713
      %v730 = vmul.f32 %v714, %v714
      %v731 = vmul.f32 %v715, %v715
      %v732 = vmul.f32 %v716, %v716
      %v733 = vmul.f32 %v717, %v717
      %v734 = vmul.f32 %v718, %v718
      %v735 = vmul.f32 %v719, %v719
      %v736 = vmul.f32 %v720, %v720
      %v737 = vmul.f32 %v721, %v721
      %v738 = vmul.f32 %v722, %v722
      %v739 = vmul.f32 %v723, %v723
      %v740 = vmul.f32 %v724, %v724
      %v741 = vmul.f32 %v725, %v725
      %v742 = vsel %vm644, %v726, 0.0
      %743 = vadd.xlane.f32.xlu0 %v742
      %v744 = vpop.xlane.xlu0 %743
      %v745 = vsel %vm644, %v727, 0.0
      %746 = vadd.xlane.f32.xlu0 %v745
      %v747 = vpop.xlane.xlu0 %746
      %v748 = vsel %vm644, %v728, 0.0
      %749 = vadd.xlane.f32.xlu0 %v748
      %v750 = vpop.xlane.xlu0 %749
      %v751 = vsel %vm644, %v729, 0.0
      %752 = vadd.xlane.f32.xlu0 %v751
      %v753 = vpop.xlane.xlu0 %752
      %v754 = vsel %vm644, %v730, 0.0
      %755 = vadd.xlane.f32.xlu0 %v754
      %v756 = vpop.xlane.xlu0 %755
      %v757 = vsel %vm644, %v731, 0.0
      %758 = vadd.xlane.f32.xlu0 %v757
      %v759 = vpop.xlane.xlu0 %758
      %v760 = vsel %vm644, %v732, 0.0
      %761 = vadd.xlane.f32.xlu0 %v760
      %v762 = vpop.xlane.xlu0 %761
      %v763 = vsel %vm644, %v733, 0.0
      %764 = vadd.xlane.f32.xlu0 %v763
      %v765 = vpop.xlane.xlu0 %764
      %v766 = vsel %vm644, %v734, 0.0
      %767 = vadd.xlane.f32.xlu0 %v766
      %v768 = vpop.xlane.xlu0 %767
      %v769 = vsel %vm644, %v735, 0.0
      %770 = vadd.xlane.f32.xlu0 %v769
      %v771 = vpop.xlane.xlu0 %770
      %v772 = vsel %vm644, %v736, 0.0
      %773 = vadd.xlane.f32.xlu0 %v772
      %v774 = vpop.xlane.xlu0 %773
      %v775 = vsel %vm644, %v737, 0.0
      %776 = vadd.xlane.f32.xlu0 %v775
      %v777 = vpop.xlane.xlu0 %776
      %v778 = vsel %vm644, %v738, 0.0
      %779 = vadd.xlane.f32.xlu0 %v778
      %v780 = vpop.xlane.xlu0 %779
      %v781 = vsel %vm644, %v739, 0.0
      %782 = vadd.xlane.f32.xlu0 %v781
      %v783 = vpop.xlane.xlu0 %782
      %v784 = vsel %vm644, %v740, 0.0
      %785 = vadd.xlane.f32.xlu0 %v784
      %v786 = vpop.xlane.xlu0 %785
      %v787 = vsel %vm644, %v741, 0.0
      %788 = vadd.xlane.f32.xlu0 %v787
      %v789 = vpop.xlane.xlu0 %788
      %v790 = vmul.f32 %v744, %v693
      %v791 = vmul.f32 %v747, %v693
      %v792 = vmul.f32 %v750, %v693
      %v793 = vmul.f32 %v753, %v693
      %v794 = vmul.f32 %v756, %v693
      %v795 = vmul.f32 %v759, %v693
      %v796 = vmul.f32 %v762, %v693
      %v797 = vmul.f32 %v765, %v693
      %v798 = vmul.f32 %v768, %v693
      %v799 = vmul.f32 %v771, %v693
      %v800 = vmul.f32 %v774, %v693
      %v801 = vmul.f32 %v777, %v693
      %v802 = vmul.f32 %v780, %v693
      %v803 = vmul.f32 %v783, %v693
      %v804 = vmul.f32 %v786, %v693
      %v805 = vmul.f32 %v789, %v693
      %v806 = vadd.f32 %v790, 1e-05
      %v807 = vadd.f32 %v791, 1e-05
      %v808 = vadd.f32 %v792, 1e-05
      %v809 = vadd.f32 %v793, 1e-05
      %v810 = vadd.f32 %v794, 1e-05
      %v811 = vadd.f32 %v795, 1e-05
      %v812 = vadd.f32 %v796, 1e-05
      %v813 = vadd.f32 %v797, 1e-05
      %v814 = vadd.f32 %v798, 1e-05
      %v815 = vadd.f32 %v799, 1e-05
      %v816 = vadd.f32 %v800, 1e-05
      %v817 = vadd.f32 %v801, 1e-05
      %v818 = vadd.f32 %v802, 1e-05
      %v819 = vadd.f32 %v803, 1e-05
      %v820 = vadd.f32 %v804, 1e-05
      %v821 = vadd.f32 %v805, 1e-05
      %v822 = vrsqrt.pop %v806
      %v823 = vrsqrt.pop %v807
      %v824 = vrsqrt.pop %v808
      %v825 = vrsqrt.pop %v809
      %v826 = vrsqrt.pop %v810
      %v827 = vrsqrt.pop %v811
      %v828 = vrsqrt.pop %v812
      %v829 = vrsqrt.pop %v813
      %v830 = vrsqrt.pop %v814
      %v831 = vrsqrt.pop %v815
      %v832 = vrsqrt.pop %v816
      %v833 = vrsqrt.pop %v817
      %v834 = vrsqrt.pop %v818
      %v835 = vrsqrt.pop %v819
      %v836 = vrsqrt.pop %v820
      %v837 = vrsqrt.pop %v821
      %v838 = vmul.f32 %v710, %v822
      %v839 = vmul.f32 %v711, %v823
      %v840 = vmul.f32 %v712, %v824
      %v841 = vmul.f32 %v713, %v825
      %v842 = vmul.f32 %v714, %v826
      %v843 = vmul.f32 %v715, %v827
      %v844 = vmul.f32 %v716, %v828
      %v845 = vmul.f32 %v717, %v829
      %v846 = vmul.f32 %v718, %v830
      %v847 = vmul.f32 %v719, %v831
      %v848 = vmul.f32 %v720, %v832
      %v849 = vmul.f32 %v721, %v833
      %v850 = vmul.f32 %v722, %v834
      %v851 = vmul.f32 %v723, %v835
      %v852 = vmul.f32 %v724, %v836
      %v853 = vmul.f32 %v725, %v837
      %v855 = vlaneseq
      %v856 = vshrl.u32 %v855, 7
      %v857 = vsub.s32 0, %v856
      %v858 = vrot.slane %v642, %v857
      %v860 = vmul.f32 %v838, %v858
      %v861 = vmul.f32 %v839, %v858
      %v862 = vmul.f32 %v840, %v858
      %v863 = vmul.f32 %v841, %v858
      %v864 = vmul.f32 %v842, %v858
      %v865 = vmul.f32 %v843, %v858
      %v866 = vmul.f32 %v844, %v858
      %v867 = vmul.f32 %v845, %v858
      %v868 = vmul.f32 %v846, %v858
      %v869 = vmul.f32 %v847, %v858
      %v870 = vmul.f32 %v848, %v858
      %v871 = vmul.f32 %v849, %v858
      %v872 = vmul.f32 %v850, %v858
      %v873 = vmul.f32 %v851, %v858
      %v874 = vmul.f32 %v852, %v858
      %v875 = vmul.f32 %v853, %v858
      %v877 = vlaneseq
      %v878 = vshrl.u32 %v877, 7
      %v879 = vsub.s32 0, %v878
      %v880 = vrot.slane %v643, %v879
      %v882 = vadd.f32 %v860, %v880
      %v883 = vadd.f32 %v861, %v880
      %v884 = vadd.f32 %v862, %v880
      %v885 = vadd.f32 %v863, %v880
      %v886 = vadd.f32 %v864, %v880
      %v887 = vadd.f32 %v865, %v880
      %v888 = vadd.f32 %v866, %v880
      %v889 = vadd.f32 %v867, %v880
      %v890 = vadd.f32 %v868, %v880
      %v891 = vadd.f32 %v869, %v880
      %v892 = vadd.f32 %v870, %v880
      %v893 = vadd.f32 %v871, %v880
      %v894 = vadd.f32 %v872, %v880
      %v895 = vadd.f32 %v873, %v880
      %v896 = vadd.f32 %v874, %v880
      %v897 = vadd.f32 %v875, %v880
      %v898 = vsel %vm644, %v626, 0.0
      %899 = vadd.xlane.f32.xlu0 %v898
      %v900 = vpop.xlane.xlu0 %899
      %v901 = vsel %vm644, %v627, 0.0
      %902 = vadd.xlane.f32.xlu0 %v901
      %v903 = vpop.xlane.xlu0 %902
      %v904 = vsel %vm644, %v628, 0.0
      %905 = vadd.xlane.f32.xlu0 %v904
      %v906 = vpop.xlane.xlu0 %905
      %v907 = vsel %vm644, %v629, 0.0
      %908 = vadd.xlane.f32.xlu0 %v907
      %v909 = vpop.xlane.xlu0 %908
      %v910 = vsel %vm644, %v630, 0.0
      %911 = vadd.xlane.f32.xlu0 %v910
      %v912 = vpop.xlane.xlu0 %911
      %v913 = vsel %vm644, %v631, 0.0
      %914 = vadd.xlane.f32.xlu0 %v913
      %v915 = vpop.xlane.xlu0 %914
      %v916 = vsel %vm644, %v632, 0.0
      %917 = vadd.xlane.f32.xlu0 %v916
      %v918 = vpop.xlane.xlu0 %917
      %v919 = vsel %vm644, %v633, 0.0
      %920 = vadd.xlane.f32.xlu0 %v919
      %v921 = vpop.xlane.xlu0 %920
      %v922 = vsel %vm644, %v634, 0.0
      %923 = vadd.xlane.f32.xlu0 %v922
      %v924 = vpop.xlane.xlu0 %923
      %v925 = vsel %vm644, %v635, 0.0
      %926 = vadd.xlane.f32.xlu0 %v925
      %v927 = vpop.xlane.xlu0 %926
      %v928 = vsel %vm644, %v636, 0.0
      %929 = vadd.xlane.f32.xlu0 %v928
      %v930 = vpop.xlane.xlu0 %929
      %v931 = vsel %vm644, %v637, 0.0
      %932 = vadd.xlane.f32.xlu0 %v931
      %v933 = vpop.xlane.xlu0 %932
      %v934 = vsel %vm644, %v638, 0.0
      %935 = vadd.xlane.f32.xlu0 %v934
      %v936 = vpop.xlane.xlu0 %935
      %v937 = vsel %vm644, %v639, 0.0
      %938 = vadd.xlane.f32.xlu0 %v937
      %v939 = vpop.xlane.xlu0 %938
      %v940 = vsel %vm644, %v640, 0.0
      %941 = vadd.xlane.f32.xlu0 %v940
      %v942 = vpop.xlane.xlu0 %941
      %v943 = vsel %vm644, %v641, 0.0
      %944 = vadd.xlane.f32.xlu0 %v943
      %v945 = vpop.xlane.xlu0 %944
      %v946 = vmul.f32 %v900, %v693
      %v947 = vmul.f32 %v903, %v693
      %v948 = vmul.f32 %v906, %v693
      %v949 = vmul.f32 %v909, %v693
      %v950 = vmul.f32 %v912, %v693
      %v951 = vmul.f32 %v915, %v693
      %v952 = vmul.f32 %v918, %v693
      %v953 = vmul.f32 %v921, %v693
      %v954 = vmul.f32 %v924, %v693
      %v955 = vmul.f32 %v927, %v693
      %v956 = vmul.f32 %v930, %v693
      %v957 = vmul.f32 %v933, %v693
      %v958 = vmul.f32 %v936, %v693
      %v959 = vmul.f32 %v939, %v693
      %v960 = vmul.f32 %v942, %v693
      %v961 = vmul.f32 %v945, %v693
      %v962 = vsub.f32 %v626, %v946
      %v963 = vsub.f32 %v627, %v947
      %v964 = vsub.f32 %v628, %v948
      %v965 = vsub.f32 %v629, %v949
      %v966 = vsub.f32 %v630, %v950
      %v967 = vsub.f32 %v631, %v951
      %v968 = vsub.f32 %v632, %v952
      %v969 = vsub.f32 %v633, %v953
      %v970 = vsub.f32 %v634, %v954
      %v971 = vsub.f32 %v635, %v955
      %v972 = vsub.f32 %v636, %v956
      %v973 = vsub.f32 %v637, %v957
      %v974 = vsub.f32 %v638, %v958
      %v975 = vsub.f32 %v639, %v959
      %v976 = vsub.f32 %v640, %v960
      %v977 = vsub.f32 %v641, %v961
      %v978 = vmul.f32 %v962, %v962
      %v979 = vmul.f32 %v963, %v963
      %v980 = vmul.f32 %v964, %v964
      %v981 = vmul.f32 %v965, %v965
      %v982 = vmul.f32 %v966, %v966
      %v983 = vmul.f32 %v967, %v967
      %v984 = vmul.f32 %v968, %v968
      %v985 = vmul.f32 %v969, %v969
      %v986 = vmul.f32 %v970, %v970
      %v987 = vmul.f32 %v971, %v971
      %v988 = vmul.f32 %v972, %v972
      %v989 = vmul.f32 %v973, %v973
      %v990 = vmul.f32 %v974, %v974
      %v991 = vmul.f32 %v975, %v975
      %v992 = vmul.f32 %v976, %v976
      %v993 = vmul.f32 %v977, %v977
      %v994 = vsel %vm644, %v978, 0.0
      %995 = vadd.xlane.f32.xlu0 %v994
      %v996 = vpop.xlane.xlu0 %995
      %v997 = vsel %vm644, %v979, 0.0
      %998 = vadd.xlane.f32.xlu0 %v997
      %v999 = vpop.xlane.xlu0 %998
      %v1000 = vsel %vm644, %v980, 0.0
      %1001 = vadd.xlane.f32.xlu0 %v1000
      %v1002 = vpop.xlane.xlu0 %1001
      %v1003 = vsel %vm644, %v981, 0.0
      %1004 = vadd.xlane.f32.xlu0 %v1003
      %v1005 = vpop.xlane.xlu0 %1004
      %v1006 = vsel %vm644, %v982, 0.0
      %1007 = vadd.xlane.f32.xlu0 %v1006
      %v1008 = vpop.xlane.xlu0 %1007
      %v1009 = vsel %vm644, %v983, 0.0
      %1010 = vadd.xlane.f32.xlu0 %v1009
      %v1011 = vpop.xlane.xlu0 %1010
      %v1012 = vsel %vm644, %v984, 0.0
      %1013 = vadd.xlane.f32.xlu0 %v1012
      %v1014 = vpop.xlane.xlu0 %1013
      %v1015 = vsel %vm644, %v985, 0.0
      %1016 = vadd.xlane.f32.xlu0 %v1015
      %v1017 = vpop.xlane.xlu0 %1016
      %v1018 = vsel %vm644, %v986, 0.0
      %1019 = vadd.xlane.f32.xlu0 %v1018
      %v1020 = vpop.xlane.xlu0 %1019
      %v1021 = vsel %vm644, %v987, 0.0
      %1022 = vadd.xlane.f32.xlu0 %v1021
      %v1023 = vpop.xlane.xlu0 %1022
      %v1024 = vsel %vm644, %v988, 0.0
      %1025 = vadd.xlane.f32.xlu0 %v1024
      %v1026 = vpop.xlane.xlu0 %1025
      %v1027 = vsel %vm644, %v989, 0.0
      %1028 = vadd.xlane.f32.xlu0 %v1027
      %v1029 = vpop.xlane.xlu0 %1028
      %v1030 = vsel %vm644, %v990, 0.0
      %1031 = vadd.xlane.f32.xlu0 %v1030
      %v1032 = vpop.xlane.xlu0 %1031
      %v1033 = vsel %vm644, %v991, 0.0
      %1034 = vadd.xlane.f32.xlu0 %v1033
      %v1035 = vpop.xlane.xlu0 %1034
      %v1036 = vsel %vm644, %v992, 0.0
      %1037 = vadd.xlane.f32.xlu0 %v1036
      %v1038 = vpop.xlane.xlu0 %1037
      %v1039 = vsel %vm644, %v993, 0.0
      %1040 = vadd.xlane.f32.xlu0 %v1039
      %v1041 = vpop.xlane.xlu0 %1040
      %v1042 = vmul.f32 %v996, %v693
      %v1043 = vmul.f32 %v999, %v693
      %v1044 = vmul.f32 %v1002, %v693
      %v1045 = vmul.f32 %v1005, %v693
      %v1046 = vmul.f32 %v1008, %v693
      %v1047 = vmul.f32 %v1011, %v693
      %v1048 = vmul.f32 %v1014, %v693
      %v1049 = vmul.f32 %v1017, %v693
      %v1050 = vmul.f32 %v1020, %v693
      %v1051 = vmul.f32 %v1023, %v693
      %v1052 = vmul.f32 %v1026, %v693
      %v1053 = vmul.f32 %v1029, %v693
      %v1054 = vmul.f32 %v1032, %v693
      %v1055 = vmul.f32 %v1035, %v693
      %v1056 = vmul.f32 %v1038, %v693
      %v1057 = vmul.f32 %v1041, %v693
      %v1058 = vadd.f32 %v1042, 1e-05
      %v1059 = vadd.f32 %v1043, 1e-05
      %v1060 = vadd.f32 %v1044, 1e-05
      %v1061 = vadd.f32 %v1045, 1e-05
      %v1062 = vadd.f32 %v1046, 1e-05
      %v1063 = vadd.f32 %v1047, 1e-05
      %v1064 = vadd.f32 %v1048, 1e-05
      %v1065 = vadd.f32 %v1049, 1e-05
      %v1066 = vadd.f32 %v1050, 1e-05
      %v1067 = vadd.f32 %v1051, 1e-05
      %v1068 = vadd.f32 %v1052, 1e-05
      %v1069 = vadd.f32 %v1053, 1e-05
      %v1070 = vadd.f32 %v1054, 1e-05
      %v1071 = vadd.f32 %v1055, 1e-05
      %v1072 = vadd.f32 %v1056, 1e-05
      %v1073 = vadd.f32 %v1057, 1e-05
      %v1074 = vrsqrt.pop %v1058
      %v1075 = vrsqrt.pop %v1059
      %v1076 = vrsqrt.pop %v1060
      %v1077 = vrsqrt.pop %v1061
      %v1078 = vrsqrt.pop %v1062
      %v1079 = vrsqrt.pop %v1063
      %v1080 = vrsqrt.pop %v1064
      %v1081 = vrsqrt.pop %v1065
      %v1082 = vrsqrt.pop %v1066
      %v1083 = vrsqrt.pop %v1067
      %v1084 = vrsqrt.pop %v1068
      %v1085 = vrsqrt.pop %v1069
      %v1086 = vrsqrt.pop %v1070
      %v1087 = vrsqrt.pop %v1071
      %v1088 = vrsqrt.pop %v1072
      %v1089 = vrsqrt.pop %v1073
      %v1090 = vmul.f32 %v962, %v1074
      %v1091 = vmul.f32 %v963, %v1075
      %v1092 = vmul.f32 %v964, %v1076
      %v1093 = vmul.f32 %v965, %v1077
      %v1094 = vmul.f32 %v966, %v1078
      %v1095 = vmul.f32 %v967, %v1079
      %v1096 = vmul.f32 %v968, %v1080
      %v1097 = vmul.f32 %v969, %v1081
      %v1098 = vmul.f32 %v970, %v1082
      %v1099 = vmul.f32 %v971, %v1083
      %v1100 = vmul.f32 %v972, %v1084
      %v1101 = vmul.f32 %v973, %v1085
      %v1102 = vmul.f32 %v974, %v1086
      %v1103 = vmul.f32 %v975, %v1087
      %v1104 = vmul.f32 %v976, %v1088
      %v1105 = vmul.f32 %v977, %v1089
      %v1106 = vmul.f32 %v1090, %v858
      %v1107 = vmul.f32 %v1091, %v858
      %v1108 = vmul.f32 %v1092, %v858
      %v1109 = vmul.f32 %v1093, %v858
      %v1110 = vmul.f32 %v1094, %v858
      %v1111 = vmul.f32 %v1095, %v858
      %v1112 = vmul.f32 %v1096, %v858
      %v1113 = vmul.f32 %v1097, %v858
      %v1114 = vmul.f32 %v1098, %v858
      %v1115 = vmul.f32 %v1099, %v858
      %v1116 = vmul.f32 %v1100, %v858
      %v1117 = vmul.f32 %v1101, %v858
      %v1118 = vmul.f32 %v1102, %v858
      %v1119 = vmul.f32 %v1103, %v858
      %v1120 = vmul.f32 %v1104, %v858
      %v1121 = vmul.f32 %v1105, %v858
      %v1122 = vadd.f32 %v1106, %v880
      %v1123 = vadd.f32 %v1107, %v880
      %v1124 = vadd.f32 %v1108, %v880
      %v1125 = vadd.f32 %v1109, %v880
      %v1126 = vadd.f32 %v1110, %v880
      %v1127 = vadd.f32 %v1111, %v880
      %v1128 = vadd.f32 %v1112, %v880
      %v1129 = vadd.f32 %v1113, %v880
      %v1130 = vadd.f32 %v1114, %v880
      %v1131 = vadd.f32 %v1115, %v880
      %v1132 = vadd.f32 %v1116, %v880
      %v1133 = vadd.f32 %v1117, %v880
      %v1134 = vadd.f32 %v1118, %v880
      %v1135 = vadd.f32 %v1119, %v880
      %v1136 = vadd.f32 %v1120, %v880
      %v1137 = vadd.f32 %v1121, %v880
      %v1138 = vpack.c.bf16 %v883, %v882
      %v1139 = vpack.c.bf16 %v885, %v884
      %v1140 = vpack.c.bf16 %v887, %v886
      %v1141 = vpack.c.bf16 %v889, %v888
      %v1142 = vpack.c.bf16 %v891, %v890
      %v1143 = vpack.c.bf16 %v893, %v892
      %v1144 = vpack.c.bf16 %v895, %v894
      %v1145 = vpack.c.bf16 %v897, %v896
      %v1146 = vld [vmem:[%s4] sm:$0xf]
      %v1147 = vld [vmem:[%s4 + $0x4] sm:$0xf]
      %v1148 = vld [vmem:[%s4 + $0x8] sm:$0xf]
      %v1149 = vld [vmem:[%s4 + $0xc] sm:$0xf]
      %v1150 = vld [vmem:[%s5] sm:$0x1]
      %v1152 = vlaneseq
      %v1153 = vshrl.u32 %v1152, 7
      %v1154 = vsub.s32 0, %v1153
      %v1155 = vrot.slane %v1150, %v1154
      %v1161 = vunpack.c.l.b16 %v1146
      %v1162 = vunpack.c.l.b16 %v1147
      %v1163 = vunpack.c.l.b16 %v1148
      %v1164 = vunpack.c.l.b16 %v1149
      %v1165 = vpack.c.b16 %v1162, %v1161
      %v1166 = vpack.c.b16 %v1164, %v1163
      %v1170 = vsel %vm644, %v1138, 0
      %v1173 = vsel %vm644, %v1139, 0
      %v1176 = vsel %vm644, %v1140, 0
      %v1179 = vsel %vm644, %v1141, 0
      %v1182 = vsel %vm644, %v1142, 0
      %v1185 = vsel %vm644, %v1143, 0
      %v1188 = vsel %vm644, %v1144, 0
      %v1191 = vsel %vm644, %v1145, 0
      %1193 = vmatprep.subr.bf16.mxu0 0
      %1194 = vmatpush1.bf16.msra.mxu0 0
      %1195 = vmatprep.subr.bf16.mxu0 0
      %1196 = vmatpush1.bf16.msra.mxu0 0
      %1197 = vmatprep.subr.bf16.mxu0 0
      %1198 = vmatpush1.bf16.msra.mxu0 0
      %1199 = vmatprep.subr.bf16.mxu0 0
      %1200 = vmatpush1.bf16.msra.mxu0 0
      %1201 = vmatprep.subr.bf16.mxu0 0
      %1202 = vmatpush1.bf16.msra.mxu0 0
      %1203 = vmatprep.subr.bf16.mxu0 0
      %1204 = vmatpush1.bf16.msra.mxu0 0
      %1205 = vmatprep.subr.bf16.mxu0 0
      %1206 = vmatpush1.bf16.msra.mxu0 %v1166
      %1207 = vmatprep.subr.bf16.mxu0 0
      %1208 = vmatpush1.bf16.msra.mxu0 %v1165
      %1209 = vmatprep.subr.bf16.mxu0 0
      %1210 = vmatpush2.bf16.msra.mxu0 0
      %1211 = vmatprep.subr.bf16.mxu0 0
      %1212 = vmatpush2.bf16.msra.mxu0 0
      %1213 = vmatprep.subr.bf16.mxu0 0
      %1214 = vmatpush2.bf16.msra.mxu0 0
      %1215 = vmatprep.subr.bf16.mxu0 0
      %1216 = vmatpush2.bf16.msra.mxu0 0
      %1217 = vmatprep.subr.bf16.mxu0 0
      %1218 = vmatpush2.bf16.msra.mxu0 0
      %1219 = vmatprep.subr.bf16.mxu0 0
      %1220 = vmatpush2.bf16.msra.mxu0 0
      %1221 = vmatprep.subr.bf16.mxu0 0
      %1222 = vmatpush2.bf16.msra.mxu0 0
      %1223 = vmatprep.subr.bf16.mxu0 0
      %1224 = vmatpush2.bf16.msra.mxu0 0
      %1225 = vmatprep.mubr.bf16.mxu0 0
      %1226 = vmatmul.mubr.bf16.gmra.mxu0 %v1170
      %v1227 = vpop.f32.mrf.mxu0
      %v1228 = vadd.f32 %v1155, %v1227
      %v1229 = vpop.f32.mrf.mxu0
      %v1230 = vpop.f32.mrf.mxu0
      %v1231 = vadd.f32 %v1155, %v1230
      %v1232 = vpop.f32.mrf.mxu0
      %1233 = vmatprep.mubr.bf16.mxu0 0
      %1234 = vmatmul.mubr.bf16.gmra.mxu0 %v1173
      %v1235 = vpop.f32.mrf.mxu0
      %v1236 = vadd.f32 %v1155, %v1235
      %v1237 = vpop.f32.mrf.mxu0
      %v1238 = vpop.f32.mrf.mxu0
      %v1239 = vadd.f32 %v1155, %v1238
      %v1240 = vpop.f32.mrf.mxu0
      %1241 = vmatprep.mubr.bf16.mxu0 0
      %1242 = vmatmul.mubr.bf16.gmra.mxu0 %v1176
      %v1243 = vpop.f32.mrf.mxu0
      %v1244 = vadd.f32 %v1155, %v1243
      %v1245 = vpop.f32.mrf.mxu0
      %v1246 = vpop.f32.mrf.mxu0
      %v1247 = vadd.f32 %v1155, %v1246
      %v1248 = vpop.f32.mrf.mxu0
      %1249 = vmatprep.mubr.bf16.mxu0 0
      %1250 = vmatmul.mubr.bf16.gmra.mxu0 %v1179
      %v1251 = vpop.f32.mrf.mxu0
      %v1252 = vadd.f32 %v1155, %v1251
      %v1253 = vpop.f32.mrf.mxu0
      %v1254 = vpop.f32.mrf.mxu0
      %v1255 = vadd.f32 %v1155, %v1254
      %v1256 = vpop.f32.mrf.mxu0
      %1257 = vmatprep.mubr.bf16.mxu0 0
      %1258 = vmatmul.mubr.bf16.gmra.mxu0 %v1182
      %v1259 = vpop.f32.mrf.mxu0
      %v1260 = vadd.f32 %v1155, %v1259
      %v1261 = vpop.f32.mrf.mxu0
      %v1262 = vpop.f32.mrf.mxu0
      %v1263 = vadd.f32 %v1155, %v1262
      %v1264 = vpop.f32.mrf.mxu0
      %1265 = vmatprep.mubr.bf16.mxu0 0
      %1266 = vmatmul.mubr.bf16.gmra.mxu0 %v1185
      %v1267 = vpop.f32.mrf.mxu0
      %v1268 = vadd.f32 %v1155, %v1267
      %v1269 = vpop.f32.mrf.mxu0
      %v1270 = vpop.f32.mrf.mxu0
      %v1271 = vadd.f32 %v1155, %v1270
      %v1272 = vpop.f32.mrf.mxu0
      %1273 = vmatprep.mubr.bf16.mxu0 0
      %1274 = vmatmul.mubr.bf16.gmra.mxu0 %v1188
      %v1275 = vpop.f32.mrf.mxu0
      %v1276 = vadd.f32 %v1155, %v1275
      %v1277 = vpop.f32.mrf.mxu0
      %v1278 = vpop.f32.mrf.mxu0
      %v1279 = vadd.f32 %v1155, %v1278
      %v1280 = vpop.f32.mrf.mxu0
      %1281 = vmatprep.mubr.bf16.mxu0 0
      %1282 = vmatmul.mubr.bf16.gmra.mxu0 %v1191
      %v1283 = vpop.f32.mrf.mxu0
      %v1284 = vadd.f32 %v1155, %v1283
      %v1285 = vpop.f32.mrf.mxu0
      %v1286 = vpop.f32.mrf.mxu0
      %v1287 = vadd.f32 %v1155, %v1286
      %v1288 = vpop.f32.mrf.mxu0
      %1289 = vdwg.mxu0
      %v1290 = vpack.c.bf16 %v1123, %v1122
      %v1291 = vpack.c.bf16 %v1125, %v1124
      %v1292 = vpack.c.bf16 %v1127, %v1126
      %v1293 = vpack.c.bf16 %v1129, %v1128
      %v1294 = vpack.c.bf16 %v1131, %v1130
      %v1295 = vpack.c.bf16 %v1133, %v1132
      %v1296 = vpack.c.bf16 %v1135, %v1134
      %v1297 = vpack.c.bf16 %v1137, %v1136
      %v1298 = vld [vmem:[%s6] sm:$0xf]
      %v1299 = vld [vmem:[%s6 + $0x4] sm:$0xf]
      %v1300 = vld [vmem:[%s6 + $0x8] sm:$0xf]
      %v1301 = vld [vmem:[%s6 + $0xc] sm:$0xf]
      %v1302 = vld [vmem:[%s7] sm:$0x1]
      %v1304 = vlaneseq
      %v1305 = vshrl.u32 %v1304, 7
      %v1306 = vsub.s32 0, %v1305
      %v1307 = vrot.slane %v1302, %v1306
      %v1313 = vunpack.c.l.b16 %v1298
      %v1314 = vunpack.c.l.b16 %v1299
      %v1315 = vunpack.c.l.b16 %v1300
      %v1316 = vunpack.c.l.b16 %v1301
      %v1317 = vpack.c.b16 %v1314, %v1313
      %v1318 = vpack.c.b16 %v1316, %v1315
      %v1322 = vsel %vm644, %v1290, 0
      %v1325 = vsel %vm644, %v1291, 0
      %v1328 = vsel %vm644, %v1292, 0
      %v1331 = vsel %vm644, %v1293, 0
      %v1334 = vsel %vm644, %v1294, 0
      %v1337 = vsel %vm644, %v1295, 0
      %v1340 = vsel %vm644, %v1296, 0
      %v1343 = vsel %vm644, %v1297, 0
      %1345 = vmatprep.subr.bf16.mxu0 0
      %1346 = vmatpush1.bf16.msra.mxu0 0
      %1347 = vmatprep.subr.bf16.mxu0 0
      %1348 = vmatpush1.bf16.msra.mxu0 0
      %1349 = vmatprep.subr.bf16.mxu0 0
      %1350 = vmatpush1.bf16.msra.mxu0 0
      %1351 = vmatprep.subr.bf16.mxu0 0
      %1352 = vmatpush1.bf16.msra.mxu0 0
      %1353 = vmatprep.subr.bf16.mxu0 0
      %1354 = vmatpush1.bf16.msra.mxu0 0
      %1355 = vmatprep.subr.bf16.mxu0 0
      %1356 = vmatpush1.bf16.msra.mxu0 0
      %1357 = vmatprep.subr.bf16.mxu0 0
      %1358 = vmatpush1.bf16.msra.mxu0 %v1318
      %1359 = vmatprep.subr.bf16.mxu0 0
      %1360 = vmatpush1.bf16.msra.mxu0 %v1317
      %1361 = vmatprep.subr.bf16.mxu0 0
      %1362 = vmatpush2.bf16.msra.mxu0 0
      %1363 = vmatprep.subr.bf16.mxu0 0
      %1364 = vmatpush2.bf16.msra.mxu0 0
      %1365 = vmatprep.subr.bf16.mxu0 0
      %1366 = vmatpush2.bf16.msra.mxu0 0
      %1367 = vmatprep.subr.bf16.mxu0 0
      %1368 = vmatpush2.bf16.msra.mxu0 0
      %1369 = vmatprep.subr.bf16.mxu0 0
      %1370 = vmatpush2.bf16.msra.mxu0 0
      %1371 = vmatprep.subr.bf16.mxu0 0
      %1372 = vmatpush2.bf16.msra.mxu0 0
      %1373 = vmatprep.subr.bf16.mxu0 0
      %1374 = vmatpush2.bf16.msra.mxu0 0
      %1375 = vmatprep.subr.bf16.mxu0 0
      %1376 = vmatpush2.bf16.msra.mxu0 0
      %1377 = vmatprep.mubr.bf16.mxu0 0
      %1378 = vmatmul.mubr.bf16.gmra.mxu0 %v1322
      %v1379 = vpop.f32.mrf.mxu0
      %v1380 = vadd.f32 %v1307, %v1379
      %v1381 = vpop.f32.mrf.mxu0
      %v1382 = vpop.f32.mrf.mxu0
      %v1383 = vadd.f32 %v1307, %v1382
      %v1384 = vpop.f32.mrf.mxu0
      %1385 = vmatprep.mubr.bf16.mxu0 0
      %1386 = vmatmul.mubr.bf16.gmra.mxu0 %v1325
      %v1387 = vpop.f32.mrf.mxu0
      %v1388 = vadd.f32 %v1307, %v1387
      %v1389 = vpop.f32.mrf.mxu0
      %v1390 = vpop.f32.mrf.mxu0
      %v1391 = vadd.f32 %v1307, %v1390
      %v1392 = vpop.f32.mrf.mxu0
      %1393 = vmatprep.mubr.bf16.mxu0 0
      %1394 = vmatmul.mubr.bf16.gmra.mxu0 %v1328
      %v1395 = vpop.f32.mrf.mxu0
      %v1396 = vadd.f32 %v1307, %v1395
      %v1397 = vpop.f32.mrf.mxu0
      %v1398 = vpop.f32.mrf.mxu0
      %v1399 = vadd.f32 %v1307, %v1398
      %v1400 = vpop.f32.mrf.mxu0
      %1401 = vmatprep.mubr.bf16.mxu0 0
      %1402 = vmatmul.mubr.bf16.gmra.mxu0 %v1331
      %v1403 = vpop.f32.mrf.mxu0
      %v1404 = vadd.f32 %v1307, %v1403
      %v1405 = vpop.f32.mrf.mxu0
      %v1406 = vpop.f32.mrf.mxu0
      %v1407 = vadd.f32 %v1307, %v1406
      %v1408 = vpop.f32.mrf.mxu0
      %1409 = vmatprep.mubr.bf16.mxu0 0
      %1410 = vmatmul.mubr.bf16.gmra.mxu0 %v1334
      %v1411 = vpop.f32.mrf.mxu0
      %v1412 = vadd.f32 %v1307, %v1411
      %v1413 = vpop.f32.mrf.mxu0
      %v1414 = vpop.f32.mrf.mxu0
      %v1415 = vadd.f32 %v1307, %v1414
      %v1416 = vpop.f32.mrf.mxu0
      %1417 = vmatprep.mubr.bf16.mxu0 0
      %1418 = vmatmul.mubr.bf16.gmra.mxu0 %v1337
      %v1419 = vpop.f32.mrf.mxu0
      %v1420 = vadd.f32 %v1307, %v1419
      %v1421 = vpop.f32.mrf.mxu0
      %v1422 = vpop.f32.mrf.mxu0
      %v1423 = vadd.f32 %v1307, %v1422
      %v1424 = vpop.f32.mrf.mxu0
      %1425 = vmatprep.mubr.bf16.mxu0 0
      %1426 = vmatmul.mubr.bf16.gmra.mxu0 %v1340
      %v1427 = vpop.f32.mrf.mxu0
      %v1428 = vadd.f32 %v1307, %v1427
      %v1429 = vpop.f32.mrf.mxu0
      %v1430 = vpop.f32.mrf.mxu0
      %v1431 = vadd.f32 %v1307, %v1430
      %v1432 = vpop.f32.mrf.mxu0
      %1433 = vmatprep.mubr.bf16.mxu0 0
      %1434 = vmatmul.mubr.bf16.gmra.mxu0 %v1343
      %v1435 = vpop.f32.mrf.mxu0
      %v1436 = vadd.f32 %v1307, %v1435
      %v1437 = vpop.f32.mrf.mxu0
      %v1438 = vpop.f32.mrf.mxu0
      %v1439 = vadd.f32 %v1307, %v1438
      %v1440 = vpop.f32.mrf.mxu0
      %1441 = vdwg.mxu0
      %v1442 = vpack.c.bf16 %v1383, %v1380
      %v1443 = vpack.c.bf16 %v1391, %v1388
      %v1444 = vpack.c.bf16 %v1399, %v1396
      %v1445 = vpack.c.bf16 %v1407, %v1404
      %v1446 = vpack.c.bf16 %v1415, %v1412
      %v1447 = vpack.c.bf16 %v1423, %v1420
      %v1448 = vpack.c.bf16 %v1431, %v1428
      %v1449 = vpack.c.bf16 %v1439, %v1436
      %v1450 = vld [vmem:[%s8] sm:$0xf]
      %v1451 = vld [vmem:[%s8 + $0x4] sm:$0xf]
      %v1452 = vld [vmem:[%s8 + $0x8] sm:$0xf]
      %v1453 = vld [vmem:[%s8 + $0xc] sm:$0xf]
      %1462 = vrot.lane.b32.xlu0 %v1442, 96
      %v1463 = vpop.permute.xlu0 %1462
      %1464 = vrot.lane.b32.xlu0 %v1443, 96
      %v1465 = vpop.permute.xlu0 %1464
      %1466 = vrot.lane.b32.xlu0 %v1444, 96
      %v1467 = vpop.permute.xlu0 %1466
      %1468 = vrot.lane.b32.xlu0 %v1445, 96
      %v1469 = vpop.permute.xlu0 %1468
      %1470 = vrot.lane.b32.xlu0 %v1446, 96
      %v1471 = vpop.permute.xlu0 %1470
      %1472 = vrot.lane.b32.xlu0 %v1447, 96
      %v1473 = vpop.permute.xlu0 %1472
      %1474 = vrot.lane.b32.xlu0 %v1448, 96
      %v1475 = vpop.permute.xlu0 %1474
      %1476 = vrot.lane.b32.xlu0 %v1449, 96
      %v1477 = vpop.permute.xlu0 %1476
      %v1482 = vunpack.c.l.b16 %v1450
      %v1483 = vunpack.c.l.b16 %v1451
      %v1484 = vunpack.c.l.b16 %v1452
      %v1485 = vunpack.c.l.b16 %v1453
      %v1486 = vpack.c.b16 %v1483, %v1482
      %v1487 = vpack.c.b16 %v1485, %v1484
      %v1491 = vsel %vm644, %v1463, 0
      %v1494 = vsel %vm644, %v1465, 0
      %v1497 = vsel %vm644, %v1467, 0
      %v1500 = vsel %vm644, %v1469, 0
      %v1503 = vsel %vm644, %v1471, 0
      %v1506 = vsel %vm644, %v1473, 0
      %v1509 = vsel %vm644, %v1475, 0
      %v1512 = vsel %vm644, %v1477, 0
      %1514 = vmatprep.subr.bf16.mxu0 0
      %1515 = vmatpush1.bf16.msra.mxu0 0
      %1516 = vmatprep.subr.bf16.mxu0 0
      %1517 = vmatpush1.bf16.msra.mxu0 0
      %1518 = vmatprep.subr.bf16.mxu0 0
      %1519 = vmatpush1.bf16.msra.mxu0 0
      %1520 = vmatprep.subr.bf16.mxu0 0
      %1521 = vmatpush1.bf16.msra.mxu0 0
      %1522 = vmatprep.subr.bf16.mxu0 0
      %1523 = vmatpush1.bf16.msra.mxu0 0
      %1524 = vmatprep.subr.bf16.mxu0 0
      %1525 = vmatpush1.bf16.msra.mxu0 0
      %1526 = vmatprep.subr.bf16.mxu0 0
      %1527 = vmatpush1.bf16.msra.mxu0 %v1487
      %1528 = vmatprep.subr.bf16.mxu0 0
      %1529 = vmatpush1.bf16.msra.mxu0 %v1486
      %1530 = vmatprep.subr.bf16.mxu0 0
      %1531 = vmatpush2.bf16.msra.mxu0 0
      %1532 = vmatprep.subr.bf16.mxu0 0
      %1533 = vmatpush2.bf16.msra.mxu0 0
      %1534 = vmatprep.subr.bf16.mxu0 0
      %1535 = vmatpush2.bf16.msra.mxu0 0
      %1536 = vmatprep.subr.bf16.mxu0 0
      %1537 = vmatpush2.bf16.msra.mxu0 0
      %1538 = vmatprep.subr.bf16.mxu0 0
      %1539 = vmatpush2.bf16.msra.mxu0 0
      %1540 = vmatprep.subr.bf16.mxu0 0
      %1541 = vmatpush2.bf16.msra.mxu0 0
      %1542 = vmatprep.subr.bf16.mxu0 0
      %1543 = vmatpush2.bf16.msra.mxu0 0
      %1544 = vmatprep.subr.bf16.mxu0 0
      %1545 = vmatpush2.bf16.msra.mxu0 0
      %1546 = vmatprep.mubr.bf16.mxu0 0
      %1547 = vmatmul.mubr.bf16.gmra.mxu0 %v1491
      %v1548 = vpop.f32.mrf.mxu0
      %v1549 = vadd.f32 0.0, %v1548
      %v1550 = vpop.f32.mrf.mxu0
      %v1551 = vpop.f32.mrf.mxu0
      %v1552 = vadd.f32 0.0, %v1551
      %v1553 = vpop.f32.mrf.mxu0
      %1554 = vmatprep.mubr.bf16.mxu0 0
      %1555 = vmatmul.mubr.bf16.gmra.mxu0 %v1494
      %v1556 = vpop.f32.mrf.mxu0
      %v1557 = vadd.f32 0.0, %v1556
      %v1558 = vpop.f32.mrf.mxu0
      %v1559 = vpop.f32.mrf.mxu0
      %v1560 = vadd.f32 0.0, %v1559
      %v1561 = vpop.f32.mrf.mxu0
      %1562 = vmatprep.mubr.bf16.mxu0 0
      %1563 = vmatmul.mubr.bf16.gmra.mxu0 %v1497
      %v1564 = vpop.f32.mrf.mxu0
      %v1565 = vadd.f32 0.0, %v1564
      %v1566 = vpop.f32.mrf.mxu0
      %v1567 = vpop.f32.mrf.mxu0
      %v1568 = vadd.f32 0.0, %v1567
      %v1569 = vpop.f32.mrf.mxu0
      %1570 = vmatprep.mubr.bf16.mxu0 0
      %1571 = vmatmul.mubr.bf16.gmra.mxu0 %v1500
      %v1572 = vpop.f32.mrf.mxu0
      %v1573 = vadd.f32 0.0, %v1572
      %v1574 = vpop.f32.mrf.mxu0
      %v1575 = vpop.f32.mrf.mxu0
      %v1576 = vadd.f32 0.0, %v1575
      %v1577 = vpop.f32.mrf.mxu0
      %1578 = vmatprep.mubr.bf16.mxu0 0
      %1579 = vmatmul.mubr.bf16.gmra.mxu0 %v1503
      %v1580 = vpop.f32.mrf.mxu0
      %v1581 = vadd.f32 0.0, %v1580
      %v1582 = vpop.f32.mrf.mxu0
      %v1583 = vpop.f32.mrf.mxu0
      %v1584 = vadd.f32 0.0, %v1583
      %v1585 = vpop.f32.mrf.mxu0
      %1586 = vmatprep.mubr.bf16.mxu0 0
      %1587 = vmatmul.mubr.bf16.gmra.mxu0 %v1506
      %v1588 = vpop.f32.mrf.mxu0
      %v1589 = vadd.f32 0.0, %v1588
      %v1590 = vpop.f32.mrf.mxu0
      %v1591 = vpop.f32.mrf.mxu0
      %v1592 = vadd.f32 0.0, %v1591
      %v1593 = vpop.f32.mrf.mxu0
      %1594 = vmatprep.mubr.bf16.mxu0 0
      %1595 = vmatmul.mubr.bf16.gmra.mxu0 %v1509
      %v1596 = vpop.f32.mrf.mxu0
      %v1597 = vadd.f32 0.0, %v1596
      %v1598 = vpop.f32.mrf.mxu0
      %v1599 = vpop.f32.mrf.mxu0
      %v1600 = vadd.f32 0.0, %v1599
      %v1601 = vpop.f32.mrf.mxu0
      %1602 = vmatprep.mubr.bf16.mxu0 0
      %1603 = vmatmul.mubr.bf16.gmra.mxu0 %v1512
      %v1604 = vpop.f32.mrf.mxu0
      %v1605 = vadd.f32 0.0, %v1604
      %v1606 = vpop.f32.mrf.mxu0
      %v1607 = vpop.f32.mrf.mxu0
      %v1608 = vadd.f32 0.0, %v1607
      %v1609 = vpop.f32.mrf.mxu0
      %1610 = vdwg.mxu0
      %v1611 = vpack.c.bf16 %v1552, %v1549
      %v1612 = vpack.c.bf16 %v1560, %v1557
      %v1613 = vpack.c.bf16 %v1568, %v1565
      %v1614 = vpack.c.bf16 %v1576, %v1573
      %v1615 = vpack.c.bf16 %v1584, %v1581
      %v1616 = vpack.c.bf16 %v1592, %v1589
      %v1617 = vpack.c.bf16 %v1600, %v1597
      %v1618 = vpack.c.bf16 %v1608, %v1605
      %v1619 = vld [vmem:[%s11] sm:$0x1]
      %v1620 = vlaneseq
      %v1621 = vshrl.u32 %v1620, 7
      %v1622 = vsub.s32 0, %v1621
      %v1623 = vrot.slane %v1619, %v1622
      %v1624 = vmul.f32 %v1228, %v1623
      %v1625 = vmul.f32 %v1231, %v1623
      %v1626 = vmul.f32 %v1236, %v1623
      %v1627 = vmul.f32 %v1239, %v1623
      %v1628 = vmul.f32 %v1244, %v1623
      %v1629 = vmul.f32 %v1247, %v1623
      %v1630 = vmul.f32 %v1252, %v1623
      %v1631 = vmul.f32 %v1255, %v1623
      %v1632 = vmul.f32 %v1260, %v1623
      %v1633 = vmul.f32 %v1263, %v1623
      %v1634 = vmul.f32 %v1268, %v1623
      %v1635 = vmul.f32 %v1271, %v1623
      %v1636 = vmul.f32 %v1276, %v1623
      %v1637 = vmul.f32 %v1279, %v1623
      %v1638 = vmul.f32 %v1284, %v1623
      %v1639 = vmul.f32 %v1287, %v1623
      %v1640 = vpack.c.bf16 %v1625, %v1624
      %v1641 = vpack.c.bf16 %v1627, %v1626
      %v1642 = vpack.c.bf16 %v1629, %v1628
      %v1643 = vpack.c.bf16 %v1631, %v1630
      %v1644 = vpack.c.bf16 %v1633, %v1632
      %v1645 = vpack.c.bf16 %v1635, %v1634
      %v1646 = vpack.c.bf16 %v1637, %v1636
      %v1647 = vpack.c.bf16 %v1639, %v1638
      %v1648 = vld [vmem:[%s10] sm:$0xff]
      %v1649 = vld [vmem:[%s10 + $0x8] sm:$0xff]
      %v1650 = vld [vmem:[%s10 + $0x10] sm:$0xff]
      %v1651 = vld [vmem:[%s10 + $0x18] sm:$0xff]
      %v1652 = vld [vmem:[%s10 + $0x20] sm:$0xff]
      %v1653 = vld [vmem:[%s10 + $0x28] sm:$0xff]
      %v1654 = vld [vmem:[%s10 + $0x30] sm:$0xff]
      %v1655 = vld [vmem:[%s10 + $0x38] sm:$0xff]
      %v1657 = vsel %vm644, %v1640, 0
      %v1660 = vsel %vm644, %v1641, 0
      %v1663 = vsel %vm644, %v1642, 0
      %v1666 = vsel %vm644, %v1643, 0
      %v1669 = vsel %vm644, %v1442, 0
      %v1672 = vsel %vm644, %v1443, 0
      %v1675 = vsel %vm644, %v1444, 0
      %v1678 = vsel %vm644, %v1445, 0
      %1680 = vmatprep.subr.bf16.mxu0 0
      %1681 = vmatpush1.bf16.xpose.msra.mxu0 0
      %1682 = vmatprep.subr.bf16.mxu0 0
      %1683 = vmatpush1.bf16.xpose.msra.mxu0 0
      %1684 = vmatprep.subr.bf16.mxu0 0
      %1685 = vmatpush1.bf16.xpose.msra.mxu0 0
      %1686 = vmatprep.subr.bf16.mxu0 0
      %1687 = vmatpush1.bf16.xpose.msra.mxu0 0
      %1688 = vmatprep.subr.bf16.mxu0 0
      %1689 = vmatpush1.bf16.xpose.msra.mxu0 %v1678
      %1690 = vmatprep.subr.bf16.mxu0 0
      %1691 = vmatpush1.bf16.xpose.msra.mxu0 %v1675
      %1692 = vmatprep.subr.bf16.mxu0 0
      %1693 = vmatpush1.bf16.xpose.msra.mxu0 %v1672
      %1694 = vmatprep.subr.bf16.mxu0 0
      %1695 = vmatpush1.bf16.xpose.msra.mxu0 %v1669
      %1696 = vmatprep.subr.bf16.mxu0 0
      %1697 = vmatpush2.bf16.xpose.msra.mxu0 0
      %1698 = vmatprep.subr.bf16.mxu0 0
      %1699 = vmatpush2.bf16.xpose.msra.mxu0 0
      %1700 = vmatprep.subr.bf16.mxu0 0
      %1701 = vmatpush2.bf16.xpose.msra.mxu0 0
      %1702 = vmatprep.subr.bf16.mxu0 0
      %1703 = vmatpush2.bf16.xpose.msra.mxu0 0
      %1704 = vmatprep.subr.bf16.mxu0 0
      %1705 = vmatpush2.bf16.xpose.msra.mxu0 0
      %1706 = vmatprep.subr.bf16.mxu0 0
      %1707 = vmatpush2.bf16.xpose.msra.mxu0 0
      %1708 = vmatprep.subr.bf16.mxu0 0
      %1709 = vmatpush2.bf16.xpose.msra.mxu0 0
      %1710 = vmatprep.subr.bf16.mxu0 0
      %1711 = vmatpush2.bf16.xpose.msra.mxu0 0
      %1712 = vmatprep.mubr.bf16.mxu0 0
      %1713 = vmatmul.mubr.bf16.gmra.mxu0 %v1657
      %v1714 = vpop.f32.mrf.mxu0
      %v1715 = vadd.f32 %v1648, %v1714
      %v1716 = vpop.f32.mrf.mxu0
      %v1717 = vpop.f32.mrf.mxu0
      %v1718 = vadd.f32 %v1649, %v1717
      %v1719 = vpop.f32.mrf.mxu0
      %1720 = vmatprep.mubr.bf16.mxu0 0
      %1721 = vmatmul.mubr.bf16.gmra.mxu0 %v1660
      %v1722 = vpop.f32.mrf.mxu0
      %v1723 = vadd.f32 %v1650, %v1722
      %v1724 = vpop.f32.mrf.mxu0
      %v1725 = vpop.f32.mrf.mxu0
      %v1726 = vadd.f32 %v1651, %v1725
      %v1727 = vpop.f32.mrf.mxu0
      %1728 = vmatprep.mubr.bf16.mxu0 0
      %1729 = vmatmul.mubr.bf16.gmra.mxu0 %v1663
      %v1730 = vpop.f32.mrf.mxu0
      %v1731 = vadd.f32 %v1652, %v1730
      %v1732 = vpop.f32.mrf.mxu0
      %v1733 = vpop.f32.mrf.mxu0
      %v1734 = vadd.f32 %v1653, %v1733
      %v1735 = vpop.f32.mrf.mxu0
      %1736 = vmatprep.mubr.bf16.mxu0 0
      %1737 = vmatmul.mubr.bf16.gmra.mxu0 %v1666
      %v1738 = vpop.f32.mrf.mxu0
      %v1739 = vadd.f32 %v1654, %v1738
      %v1740 = vpop.f32.mrf.mxu0
      %v1741 = vpop.f32.mrf.mxu0
      %v1742 = vadd.f32 %v1655, %v1741
      %v1743 = vpop.f32.mrf.mxu0
      %1744 = vdwg.mxu0
      %v1746 = vsel %vm644, %v1644, 0
      %v1749 = vsel %vm644, %v1645, 0
      %v1752 = vsel %vm644, %v1646, 0
      %v1755 = vsel %vm644, %v1647, 0
      %v1758 = vsel %vm644, %v1446, 0
      %v1761 = vsel %vm644, %v1447, 0
      %v1764 = vsel %vm644, %v1448, 0
      %v1767 = vsel %vm644, %v1449, 0
      %1769 = vmatprep.subr.bf16.mxu0 0
      %1770 = vmatpush1.bf16.xpose.msra.mxu0 0
      %1771 = vmatprep.subr.bf16.mxu0 0
      %1772 = vmatpush1.bf16.xpose.msra.mxu0 0
      %1773 = vmatprep.subr.bf16.mxu0 0
      %1774 = vmatpush1.bf16.xpose.msra.mxu0 0
      %1775 = vmatprep.subr.bf16.mxu0 0
      %1776 = vmatpush1.bf16.xpose.msra.mxu0 0
      %1777 = vmatprep.subr.bf16.mxu0 0
      %1778 = vmatpush1.bf16.xpose.msra.mxu0 %v1767
      %1779 = vmatprep.subr.bf16.mxu0 0
      %1780 = vmatpush1.bf16.xpose.msra.mxu0 %v1764
      %1781 = vmatprep.subr.bf16.mxu0 0
      %1782 = vmatpush1.bf16.xpose.msra.mxu0 %v1761
      %1783 = vmatprep.subr.bf16.mxu0 0
      %1784 = vmatpush1.bf16.xpose.msra.mxu0 %v1758
      %1785 = vmatprep.subr.bf16.mxu0 0
      %1786 = vmatpush2.bf16.xpose.msra.mxu0 0
      %1787 = vmatprep.subr.bf16.mxu0 0
      %1788 = vmatpush2.bf16.xpose.msra.mxu0 0
      %1789 = vmatprep.subr.bf16.mxu0 0
      %1790 = vmatpush2.bf16.xpose.msra.mxu0 0
      %1791 = vmatprep.subr.bf16.mxu0 0
      %1792 = vmatpush2.bf16.xpose.msra.mxu0 0
      %1793 = vmatprep.subr.bf16.mxu0 0
      %1794 = vmatpush2.bf16.xpose.msra.mxu0 0
      %1795 = vmatprep.subr.bf16.mxu0 0
      %1796 = vmatpush2.bf16.xpose.msra.mxu0 0
      %1797 = vmatprep.subr.bf16.mxu0 0
      %1798 = vmatpush2.bf16.xpose.msra.mxu0 0
      %1799 = vmatprep.subr.bf16.mxu0 0
      %1800 = vmatpush2.bf16.xpose.msra.mxu0 0
      %1801 = vmatprep.mubr.bf16.mxu0 0
      %1802 = vmatmul.mubr.bf16.gmra.mxu0 %v1746
      %v1803 = vpop.f32.mrf.mxu0
      %v1804 = vadd.f32 %v1648, %v1803
      %v1805 = vpop.f32.mrf.mxu0
      %v1806 = vpop.f32.mrf.mxu0
      %v1807 = vadd.f32 %v1649, %v1806
      %v1808 = vpop.f32.mrf.mxu0
      %1809 = vmatprep.mubr.bf16.mxu0 0
      %1810 = vmatmul.mubr.bf16.gmra.mxu0 %v1749
      %v1811 = vpop.f32.mrf.mxu0
      %v1812 = vadd.f32 %v1650, %v1811
      %v1813 = vpop.f32.mrf.mxu0
      %v1814 = vpop.f32.mrf.mxu0
      %v1815 = vadd.f32 %v1651, %v1814
      %v1816 = vpop.f32.mrf.mxu0
      %1817 = vmatprep.mubr.bf16.mxu0 0
      %1818 = vmatmul.mubr.bf16.gmra.mxu0 %v1752
      %v1819 = vpop.f32.mrf.mxu0
      %v1820 = vadd.f32 %v1652, %v1819
      %v1821 = vpop.f32.mrf.mxu0
      %v1822 = vpop.f32.mrf.mxu0
      %v1823 = vadd.f32 %v1653, %v1822
      %v1824 = vpop.f32.mrf.mxu0
      %1825 = vmatprep.mubr.bf16.mxu0 0
      %1826 = vmatmul.mubr.bf16.gmra.mxu0 %v1755
      %v1827 = vpop.f32.mrf.mxu0
      %v1828 = vadd.f32 %v1654, %v1827
      %v1829 = vpop.f32.mrf.mxu0
      %v1830 = vpop.f32.mrf.mxu0
      %v1831 = vadd.f32 %v1655, %v1830
      %v1832 = vpop.f32.mrf.mxu0
      %1833 = vdwg.mxu0
      %vm1834 = vcmask 523264
      %v1835 = vsel %vm1834, %v1715, -inf
      %1836 = vmax.xlane.f32.xlu0 %v1835
      %v1837 = vpop.xlane.xlu0 %1836
      %v1838 = vsel %vm1834, %v1718, -inf
      %1839 = vmax.xlane.f32.xlu0 %v1838
      %v1840 = vpop.xlane.xlu0 %1839
      %v1841 = vsel %vm1834, %v1723, -inf
      %1842 = vmax.xlane.f32.xlu0 %v1841
      %v1843 = vpop.xlane.xlu0 %1842
      %v1844 = vsel %vm1834, %v1726, -inf
      %1845 = vmax.xlane.f32.xlu0 %v1844
      %v1846 = vpop.xlane.xlu0 %1845
      %v1847 = vsel %vm1834, %v1731, -inf
      %1848 = vmax.xlane.f32.xlu0 %v1847
      %v1849 = vpop.xlane.xlu0 %1848
      %v1850 = vsel %vm1834, %v1734, -inf
      %1851 = vmax.xlane.f32.xlu0 %v1850
      %v1852 = vpop.xlane.xlu0 %1851
      %v1853 = vsel %vm1834, %v1739, -inf
      %1854 = vmax.xlane.f32.xlu0 %v1853
      %v1855 = vpop.xlane.xlu0 %1854
      %v1856 = vsel %vm1834, %v1742, -inf
      %1857 = vmax.xlane.f32.xlu0 %v1856
      %v1858 = vpop.xlane.xlu0 %1857
      %v1859 = vsel %vm1834, %v1804, -inf
      %1860 = vmax.xlane.f32.xlu0 %v1859
      %v1861 = vpop.xlane.xlu0 %1860
      %v1862 = vsel %vm1834, %v1807, -inf
      %1863 = vmax.xlane.f32.xlu0 %v1862
      %v1864 = vpop.xlane.xlu0 %1863
      %v1865 = vsel %vm1834, %v1812, -inf
      %1866 = vmax.xlane.f32.xlu0 %v1865
      %v1867 = vpop.xlane.xlu0 %1866
      %v1868 = vsel %vm1834, %v1815, -inf
      %1869 = vmax.xlane.f32.xlu0 %v1868
      %v1870 = vpop.xlane.xlu0 %1869
      %v1871 = vsel %vm1834, %v1820, -inf
      %1872 = vmax.xlane.f32.xlu0 %v1871
      %v1873 = vpop.xlane.xlu0 %1872
      %v1874 = vsel %vm1834, %v1823, -inf
      %1875 = vmax.xlane.f32.xlu0 %v1874
      %v1876 = vpop.xlane.xlu0 %1875
      %v1877 = vsel %vm1834, %v1828, -inf
      %1878 = vmax.xlane.f32.xlu0 %v1877
      %v1879 = vpop.xlane.xlu0 %1878
      %v1880 = vsel %vm1834, %v1831, -inf
      %1881 = vmax.xlane.f32.xlu0 %v1880
      %v1882 = vpop.xlane.xlu0 %1881
      %v1883 = vsub.f32 %v1715, %v1837
      %v1884 = vsub.f32 %v1718, %v1840
      %v1885 = vsub.f32 %v1723, %v1843
      %v1886 = vsub.f32 %v1726, %v1846
      %v1887 = vsub.f32 %v1731, %v1849
      %v1888 = vsub.f32 %v1734, %v1852
      %v1889 = vsub.f32 %v1739, %v1855
      %v1890 = vsub.f32 %v1742, %v1858
      %v1891 = vsub.f32 %v1804, %v1861
      %v1892 = vsub.f32 %v1807, %v1864
      %v1893 = vsub.f32 %v1812, %v1867
      %v1894 = vsub.f32 %v1815, %v1870
      %v1895 = vsub.f32 %v1820, %v1873
      %v1896 = vsub.f32 %v1823, %v1876
      %v1897 = vsub.f32 %v1828, %v1879
      %v1898 = vsub.f32 %v1831, %v1882
      %v1899 = vmul.f32 %v1883, 1.442695
      %v1900 = vpow.pop %v1899
      %v1901 = vmul.f32 %v1884, 1.442695
      %v1902 = vpow.pop %v1901
      %v1903 = vmul.f32 %v1885, 1.442695
      %v1904 = vpow.pop %v1903
      %v1905 = vmul.f32 %v1886, 1.442695
      %v1906 = vpow.pop %v1905
      %v1907 = vmul.f32 %v1887, 1.442695
      %v1908 = vpow.pop %v1907
      %v1909 = vmul.f32 %v1888, 1.442695
      %v1910 = vpow.pop %v1909
      %v1911 = vmul.f32 %v1889, 1.442695
      %v1912 = vpow.pop %v1911
      %v1913 = vmul.f32 %v1890, 1.442695
      %v1914 = vpow.pop %v1913
      %v1915 = vmul.f32 %v1891, 1.442695
      %v1916 = vpow.pop %v1915
      %v1917 = vmul.f32 %v1892, 1.442695
      %v1918 = vpow.pop %v1917
      %v1919 = vmul.f32 %v1893, 1.442695
      %v1920 = vpow.pop %v1919
      %v1921 = vmul.f32 %v1894, 1.442695
      %v1922 = vpow.pop %v1921
      %v1923 = vmul.f32 %v1895, 1.442695
      %v1924 = vpow.pop %v1923
      %v1925 = vmul.f32 %v1896, 1.442695
      %v1926 = vpow.pop %v1925
      %v1927 = vmul.f32 %v1897, 1.442695
      %v1928 = vpow.pop %v1927
      %v1929 = vmul.f32 %v1898, 1.442695
      %v1930 = vpow.pop %v1929
      %v1931 = vsel %vm1834, %v1900, 0.0
      %1932 = vadd.xlane.f32.xlu0 %v1931
      %v1933 = vpop.xlane.xlu0 %1932
      %v1934 = vsel %vm1834, %v1902, 0.0
      %1935 = vadd.xlane.f32.xlu0 %v1934
      %v1936 = vpop.xlane.xlu0 %1935
      %v1937 = vsel %vm1834, %v1904, 0.0
      %1938 = vadd.xlane.f32.xlu0 %v1937
      %v1939 = vpop.xlane.xlu0 %1938
      %v1940 = vsel %vm1834, %v1906, 0.0
      %1941 = vadd.xlane.f32.xlu0 %v1940
      %v1942 = vpop.xlane.xlu0 %1941
      %v1943 = vsel %vm1834, %v1908, 0.0
      %1944 = vadd.xlane.f32.xlu0 %v1943
      %v1945 = vpop.xlane.xlu0 %1944
      %v1946 = vsel %vm1834, %v1910, 0.0
      %1947 = vadd.xlane.f32.xlu0 %v1946
      %v1948 = vpop.xlane.xlu0 %1947
      %v1949 = vsel %vm1834, %v1912, 0.0
      %1950 = vadd.xlane.f32.xlu0 %v1949
      %v1951 = vpop.xlane.xlu0 %1950
      %v1952 = vsel %vm1834, %v1914, 0.0
      %1953 = vadd.xlane.f32.xlu0 %v1952
      %v1954 = vpop.xlane.xlu0 %1953
      %v1955 = vsel %vm1834, %v1916, 0.0
      %1956 = vadd.xlane.f32.xlu0 %v1955
      %v1957 = vpop.xlane.xlu0 %1956
      %v1958 = vsel %vm1834, %v1918, 0.0
      %1959 = vadd.xlane.f32.xlu0 %v1958
      %v1960 = vpop.xlane.xlu0 %1959
      %v1961 = vsel %vm1834, %v1920, 0.0
      %1962 = vadd.xlane.f32.xlu0 %v1961
      %v1963 = vpop.xlane.xlu0 %1962
      %v1964 = vsel %vm1834, %v1922, 0.0
      %1965 = vadd.xlane.f32.xlu0 %v1964
      %v1966 = vpop.xlane.xlu0 %1965
      %v1967 = vsel %vm1834, %v1924, 0.0
      %1968 = vadd.xlane.f32.xlu0 %v1967
      %v1969 = vpop.xlane.xlu0 %1968
      %v1970 = vsel %vm1834, %v1926, 0.0
      %1971 = vadd.xlane.f32.xlu0 %v1970
      %v1972 = vpop.xlane.xlu0 %1971
      %v1973 = vsel %vm1834, %v1928, 0.0
      %1974 = vadd.xlane.f32.xlu0 %v1973
      %v1975 = vpop.xlane.xlu0 %1974
      %v1976 = vsel %vm1834, %v1930, 0.0
      %1977 = vadd.xlane.f32.xlu0 %v1976
      %v1978 = vpop.xlane.xlu0 %1977
      %v1979 = vrcp.pop %v1933
      %v1980 = vrcp.pop %v1936
      %v1981 = vrcp.pop %v1939
      %v1982 = vrcp.pop %v1942
      %v1983 = vrcp.pop %v1945
      %v1984 = vrcp.pop %v1948
      %v1985 = vrcp.pop %v1951
      %v1986 = vrcp.pop %v1954
      %v1987 = vrcp.pop %v1957
      %v1988 = vrcp.pop %v1960
      %v1989 = vrcp.pop %v1963
      %v1990 = vrcp.pop %v1966
      %v1991 = vrcp.pop %v1969
      %v1992 = vrcp.pop %v1972
      %v1993 = vrcp.pop %v1975
      %v1994 = vrcp.pop %v1978
      %v1995 = vmul.f32 %v1900, %v1979
      %v1996 = vmul.f32 %v1902, %v1980
      %v1997 = vmul.f32 %v1904, %v1981
      %v1998 = vmul.f32 %v1906, %v1982
      %v1999 = vmul.f32 %v1908, %v1983
      %v2000 = vmul.f32 %v1910, %v1984
      %v2001 = vmul.f32 %v1912, %v1985
      %v2002 = vmul.f32 %v1914, %v1986
      %v2003 = vmul.f32 %v1916, %v1987
      %v2004 = vmul.f32 %v1918, %v1988
      %v2005 = vmul.f32 %v1920, %v1989
      %v2006 = vmul.f32 %v1922, %v1990
      %v2007 = vmul.f32 %v1924, %v1991
      %v2008 = vmul.f32 %v1926, %v1992
      %v2009 = vmul.f32 %v1928, %v1993
      %v2010 = vmul.f32 %v1930, %v1994
      %v2011 = vpack.c.bf16 %v1996, %v1995
      %v2012 = vpack.c.bf16 %v1998, %v1997
      %v2013 = vpack.c.bf16 %v2000, %v1999
      %v2014 = vpack.c.bf16 %v2002, %v2001
      %v2015 = vpack.c.bf16 %v2004, %v2003
      %v2016 = vpack.c.bf16 %v2006, %v2005
      %v2017 = vpack.c.bf16 %v2008, %v2007
      %v2018 = vpack.c.bf16 %v2010, %v2009
      %v2019 = vld [vmem:[%s11 + $0x1] sm:$0x1]
      %v2020 = vlaneseq
      %v2021 = vshrl.u32 %v2020, 7
      %v2022 = vsub.s32 0, %v2021
      %v2023 = vrot.slane %v2019, %v2022
      %v2024 = vmul.f32 %v1228, %v2023
      %v2025 = vmul.f32 %v1231, %v2023
      %v2026 = vmul.f32 %v1236, %v2023
      %v2027 = vmul.f32 %v1239, %v2023
      %v2028 = vmul.f32 %v1244, %v2023
      %v2029 = vmul.f32 %v1247, %v2023
      %v2030 = vmul.f32 %v1252, %v2023
      %v2031 = vmul.f32 %v1255, %v2023
      %v2032 = vmul.f32 %v1260, %v2023
      %v2033 = vmul.f32 %v1263, %v2023
      %v2034 = vmul.f32 %v1268, %v2023
      %v2035 = vmul.f32 %v1271, %v2023
      %v2036 = vmul.f32 %v1276, %v2023
      %v2037 = vmul.f32 %v1279, %v2023
      %v2038 = vmul.f32 %v1284, %v2023
      %v2039 = vmul.f32 %v1287, %v2023
      %v2040 = vpack.c.bf16 %v2025, %v2024
      %v2041 = vpack.c.bf16 %v2027, %v2026
      %v2042 = vpack.c.bf16 %v2029, %v2028
      %v2043 = vpack.c.bf16 %v2031, %v2030
      %v2044 = vpack.c.bf16 %v2033, %v2032
      %v2045 = vpack.c.bf16 %v2035, %v2034
      %v2046 = vpack.c.bf16 %v2037, %v2036
      %v2047 = vpack.c.bf16 %v2039, %v2038
      %s2048 = scalar_lea.vmem %s10, 64
      %v2049 = vld [vmem:[%s2048] sm:$0xff]
      %v2050 = vld [vmem:[%s2048 + $0x8] sm:$0xff]
      %v2051 = vld [vmem:[%s2048 + $0x10] sm:$0xff]
      %v2052 = vld [vmem:[%s2048 + $0x18] sm:$0xff]
      %v2053 = vld [vmem:[%s2048 + $0x20] sm:$0xff]
      %v2054 = vld [vmem:[%s2048 + $0x28] sm:$0xff]
      %v2055 = vld [vmem:[%s2048 + $0x30] sm:$0xff]
      %v2056 = vld [vmem:[%s2048 + $0x38] sm:$0xff]
      %v2058 = vsel %vm644, %v2040, 0
      %v2061 = vsel %vm644, %v2041, 0
      %v2064 = vsel %vm644, %v2042, 0
      %v2067 = vsel %vm644, %v2043, 0
      %2069 = vmatprep.subr.bf16.mxu0 0
      %2070 = vmatpush1.bf16.xpose.msra.mxu0 0
      %2071 = vmatprep.subr.bf16.mxu0 0
      %2072 = vmatpush1.bf16.xpose.msra.mxu0 0
      %2073 = vmatprep.subr.bf16.mxu0 0
      %2074 = vmatpush1.bf16.xpose.msra.mxu0 0
      %2075 = vmatprep.subr.bf16.mxu0 0
      %2076 = vmatpush1.bf16.xpose.msra.mxu0 0
      %2077 = vmatprep.subr.bf16.mxu0 0
      %2078 = vmatpush1.bf16.xpose.msra.mxu0 %v1678
      %2079 = vmatprep.subr.bf16.mxu0 0
      %2080 = vmatpush1.bf16.xpose.msra.mxu0 %v1675
      %2081 = vmatprep.subr.bf16.mxu0 0
      %2082 = vmatpush1.bf16.xpose.msra.mxu0 %v1672
      %2083 = vmatprep.subr.bf16.mxu0 0
      %2084 = vmatpush1.bf16.xpose.msra.mxu0 %v1669
      %2085 = vmatprep.subr.bf16.mxu0 0
      %2086 = vmatpush2.bf16.xpose.msra.mxu0 0
      %2087 = vmatprep.subr.bf16.mxu0 0
      %2088 = vmatpush2.bf16.xpose.msra.mxu0 0
      %2089 = vmatprep.subr.bf16.mxu0 0
      %2090 = vmatpush2.bf16.xpose.msra.mxu0 0
      %2091 = vmatprep.subr.bf16.mxu0 0
      %2092 = vmatpush2.bf16.xpose.msra.mxu0 0
      %2093 = vmatprep.subr.bf16.mxu0 0
      %2094 = vmatpush2.bf16.xpose.msra.mxu0 0
      %2095 = vmatprep.subr.bf16.mxu0 0
      %2096 = vmatpush2.bf16.xpose.msra.mxu0 0
      %2097 = vmatprep.subr.bf16.mxu0 0
      %2098 = vmatpush2.bf16.xpose.msra.mxu0 0
      %2099 = vmatprep.subr.bf16.mxu0 0
      %2100 = vmatpush2.bf16.xpose.msra.mxu0 0
      %2101 = vmatprep.mubr.bf16.mxu0 0
      %2102 = vmatmul.mubr.bf16.gmra.mxu0 %v2058
      %v2103 = vpop.f32.mrf.mxu0
      %v2104 = vadd.f32 %v2049, %v2103
      %v2105 = vpop.f32.mrf.mxu0
      %v2106 = vpop.f32.mrf.mxu0
      %v2107 = vadd.f32 %v2050, %v2106
      %v2108 = vpop.f32.mrf.mxu0
      %2109 = vmatprep.mubr.bf16.mxu0 0
      %2110 = vmatmul.mubr.bf16.gmra.mxu0 %v2061
      %v2111 = vpop.f32.mrf.mxu0
      %v2112 = vadd.f32 %v2051, %v2111
      %v2113 = vpop.f32.mrf.mxu0
      %v2114 = vpop.f32.mrf.mxu0
      %v2115 = vadd.f32 %v2052, %v2114
      %v2116 = vpop.f32.mrf.mxu0
      %2117 = vmatprep.mubr.bf16.mxu0 0
      %2118 = vmatmul.mubr.bf16.gmra.mxu0 %v2064
      %v2119 = vpop.f32.mrf.mxu0
      %v2120 = vadd.f32 %v2053, %v2119
      %v2121 = vpop.f32.mrf.mxu0
      %v2122 = vpop.f32.mrf.mxu0
      %v2123 = vadd.f32 %v2054, %v2122
      %v2124 = vpop.f32.mrf.mxu0
      %2125 = vmatprep.mubr.bf16.mxu0 0
      %2126 = vmatmul.mubr.bf16.gmra.mxu0 %v2067
      %v2127 = vpop.f32.mrf.mxu0
      %v2128 = vadd.f32 %v2055, %v2127
      %v2129 = vpop.f32.mrf.mxu0
      %v2130 = vpop.f32.mrf.mxu0
      %v2131 = vadd.f32 %v2056, %v2130
      %v2132 = vpop.f32.mrf.mxu0
      %2133 = vdwg.mxu0
      %v2135 = vsel %vm644, %v2044, 0
      %v2138 = vsel %vm644, %v2045, 0
      %v2141 = vsel %vm644, %v2046, 0
      %v2144 = vsel %vm644, %v2047, 0
      %2146 = vmatprep.subr.bf16.mxu0 0
      %2147 = vmatpush1.bf16.xpose.msra.mxu0 0
      %2148 = vmatprep.subr.bf16.mxu0 0
      %2149 = vmatpush1.bf16.xpose.msra.mxu0 0
      %2150 = vmatprep.subr.bf16.mxu0 0
      %2151 = vmatpush1.bf16.xpose.msra.mxu0 0
      %2152 = vmatprep.subr.bf16.mxu0 0
      %2153 = vmatpush1.bf16.xpose.msra.mxu0 0
      %2154 = vmatprep.subr.bf16.mxu0 0
      %2155 = vmatpush1.bf16.xpose.msra.mxu0 %v1767
      %2156 = vmatprep.subr.bf16.mxu0 0
      %2157 = vmatpush1.bf16.xpose.msra.mxu0 %v1764
      %2158 = vmatprep.subr.bf16.mxu0 0
      %2159 = vmatpush1.bf16.xpose.msra.mxu0 %v1761
      %2160 = vmatprep.subr.bf16.mxu0 0
      %2161 = vmatpush1.bf16.xpose.msra.mxu0 %v1758
      %2162 = vmatprep.subr.bf16.mxu0 0
      %2163 = vmatpush2.bf16.xpose.msra.mxu0 0
      %2164 = vmatprep.subr.bf16.mxu0 0
      %2165 = vmatpush2.bf16.xpose.msra.mxu0 0
      %2166 = vmatprep.subr.bf16.mxu0 0
      %2167 = vmatpush2.bf16.xpose.msra.mxu0 0
      %2168 = vmatprep.subr.bf16.mxu0 0
      %2169 = vmatpush2.bf16.xpose.msra.mxu0 0
      %2170 = vmatprep.subr.bf16.mxu0 0
      %2171 = vmatpush2.bf16.xpose.msra.mxu0 0
      %2172 = vmatprep.subr.bf16.mxu0 0
      %2173 = vmatpush2.bf16.xpose.msra.mxu0 0
      %2174 = vmatprep.subr.bf16.mxu0 0
      %2175 = vmatpush2.bf16.xpose.msra.mxu0 0
      %2176 = vmatprep.subr.bf16.mxu0 0
      %2177 = vmatpush2.bf16.xpose.msra.mxu0 0
      %2178 = vmatprep.mubr.bf16.mxu0 0
      %2179 = vmatmul.mubr.bf16.gmra.mxu0 %v2135
      %v2180 = vpop.f32.mrf.mxu0
      %v2181 = vadd.f32 %v2049, %v2180
      %v2182 = vpop.f32.mrf.mxu0
      %v2183 = vpop.f32.mrf.mxu0
      %v2184 = vadd.f32 %v2050, %v2183
      %v2185 = vpop.f32.mrf.mxu0
      %2186 = vmatprep.mubr.bf16.mxu0 0
      %2187 = vmatmul.mubr.bf16.gmra.mxu0 %v2138
      %v2188 = vpop.f32.mrf.mxu0
      %v2189 = vadd.f32 %v2051, %v2188
      %v2190 = vpop.f32.mrf.mxu0
      %v2191 = vpop.f32.mrf.mxu0
      %v2192 = vadd.f32 %v2052, %v2191
      %v2193 = vpop.f32.mrf.mxu0
      %2194 = vmatprep.mubr.bf16.mxu0 0
      %2195 = vmatmul.mubr.bf16.gmra.mxu0 %v2141
      %v2196 = vpop.f32.mrf.mxu0
      %v2197 = vadd.f32 %v2053, %v2196
      %v2198 = vpop.f32.mrf.mxu0
      %v2199 = vpop.f32.mrf.mxu0
      %v2200 = vadd.f32 %v2054, %v2199
      %v2201 = vpop.f32.mrf.mxu0
      %2202 = vmatprep.mubr.bf16.mxu0 0
      %2203 = vmatmul.mubr.bf16.gmra.mxu0 %v2144
      %v2204 = vpop.f32.mrf.mxu0
      %v2205 = vadd.f32 %v2055, %v2204
      %v2206 = vpop.f32.mrf.mxu0
      %v2207 = vpop.f32.mrf.mxu0
      %v2208 = vadd.f32 %v2056, %v2207
      %v2209 = vpop.f32.mrf.mxu0
      %2210 = vdwg.mxu0
      %v2211 = vsel %vm1834, %v2104, -inf
      %2212 = vmax.xlane.f32.xlu0 %v2211
      %v2213 = vpop.xlane.xlu0 %2212
      %v2214 = vsel %vm1834, %v2107, -inf
      %2215 = vmax.xlane.f32.xlu0 %v2214
      %v2216 = vpop.xlane.xlu0 %2215
      %v2217 = vsel %vm1834, %v2112, -inf
      %2218 = vmax.xlane.f32.xlu0 %v2217
      %v2219 = vpop.xlane.xlu0 %2218
      %v2220 = vsel %vm1834, %v2115, -inf
      %2221 = vmax.xlane.f32.xlu0 %v2220
      %v2222 = vpop.xlane.xlu0 %2221
      %v2223 = vsel %vm1834, %v2120, -inf
      %2224 = vmax.xlane.f32.xlu0 %v2223
      %v2225 = vpop.xlane.xlu0 %2224
      %v2226 = vsel %vm1834, %v2123, -inf
      %2227 = vmax.xlane.f32.xlu0 %v2226
      %v2228 = vpop.xlane.xlu0 %2227
      %v2229 = vsel %vm1834, %v2128, -inf
      %2230 = vmax.xlane.f32.xlu0 %v2229
      %v2231 = vpop.xlane.xlu0 %2230
      %v2232 = vsel %vm1834, %v2131, -inf
      %2233 = vmax.xlane.f32.xlu0 %v2232
      %v2234 = vpop.xlane.xlu0 %2233
      %v2235 = vsel %vm1834, %v2181, -inf
      %2236 = vmax.xlane.f32.xlu0 %v2235
      %v2237 = vpop.xlane.xlu0 %2236
      %v2238 = vsel %vm1834, %v2184, -inf
      %2239 = vmax.xlane.f32.xlu0 %v2238
      %v2240 = vpop.xlane.xlu0 %2239
      %v2241 = vsel %vm1834, %v2189, -inf
      %2242 = vmax.xlane.f32.xlu0 %v2241
      %v2243 = vpop.xlane.xlu0 %2242
      %v2244 = vsel %vm1834, %v2192, -inf
      %2245 = vmax.xlane.f32.xlu0 %v2244
      %v2246 = vpop.xlane.xlu0 %2245
      %v2247 = vsel %vm1834, %v2197, -inf
      %2248 = vmax.xlane.f32.xlu0 %v2247
      %v2249 = vpop.xlane.xlu0 %2248
      %v2250 = vsel %vm1834, %v2200, -inf
      %2251 = vmax.xlane.f32.xlu0 %v2250
      %v2252 = vpop.xlane.xlu0 %2251
      %v2253 = vsel %vm1834, %v2205, -inf
      %2254 = vmax.xlane.f32.xlu0 %v2253
      %v2255 = vpop.xlane.xlu0 %2254
      %v2256 = vsel %vm1834, %v2208, -inf
      %2257 = vmax.xlane.f32.xlu0 %v2256
      %v2258 = vpop.xlane.xlu0 %2257
      %v2259 = vsub.f32 %v2104, %v2213
      %v2260 = vsub.f32 %v2107, %v2216
      %v2261 = vsub.f32 %v2112, %v2219
      %v2262 = vsub.f32 %v2115, %v2222
      %v2263 = vsub.f32 %v2120, %v2225
      %v2264 = vsub.f32 %v2123, %v2228
      %v2265 = vsub.f32 %v2128, %v2231
      %v2266 = vsub.f32 %v2131, %v2234
      %v2267 = vsub.f32 %v2181, %v2237
      %v2268 = vsub.f32 %v2184, %v2240
      %v2269 = vsub.f32 %v2189, %v2243
      %v2270 = vsub.f32 %v2192, %v2246
      %v2271 = vsub.f32 %v2197, %v2249
      %v2272 = vsub.f32 %v2200, %v2252
      %v2273 = vsub.f32 %v2205, %v2255
      %v2274 = vsub.f32 %v2208, %v2258
      %v2275 = vmul.f32 %v2259, 1.442695
      %v2276 = vpow.pop %v2275
      %v2277 = vmul.f32 %v2260, 1.442695
      %v2278 = vpow.pop %v2277
      %v2279 = vmul.f32 %v2261, 1.442695
      %v2280 = vpow.pop %v2279
      %v2281 = vmul.f32 %v2262, 1.442695
      %v2282 = vpow.pop %v2281
      %v2283 = vmul.f32 %v2263, 1.442695
      %v2284 = vpow.pop %v2283
      %v2285 = vmul.f32 %v2264, 1.442695
      %v2286 = vpow.pop %v2285
      %v2287 = vmul.f32 %v2265, 1.442695
      %v2288 = vpow.pop %v2287
      %v2289 = vmul.f32 %v2266, 1.442695
      %v2290 = vpow.pop %v2289
      %v2291 = vmul.f32 %v2267, 1.442695
      %v2292 = vpow.pop %v2291
      %v2293 = vmul.f32 %v2268, 1.442695
      %v2294 = vpow.pop %v2293
      %v2295 = vmul.f32 %v2269, 1.442695
      %v2296 = vpow.pop %v2295
      %v2297 = vmul.f32 %v2270, 1.442695
      %v2298 = vpow.pop %v2297
      %v2299 = vmul.f32 %v2271, 1.442695
      %v2300 = vpow.pop %v2299
      %v2301 = vmul.f32 %v2272, 1.442695
      %v2302 = vpow.pop %v2301
      %v2303 = vmul.f32 %v2273, 1.442695
      %v2304 = vpow.pop %v2303
      %v2305 = vmul.f32 %v2274, 1.442695
      %v2306 = vpow.pop %v2305
      %v2307 = vsel %vm1834, %v2276, 0.0
      %2308 = vadd.xlane.f32.xlu0 %v2307
      %v2309 = vpop.xlane.xlu0 %2308
      %v2310 = vsel %vm1834, %v2278, 0.0
      %2311 = vadd.xlane.f32.xlu0 %v2310
      %v2312 = vpop.xlane.xlu0 %2311
      %v2313 = vsel %vm1834, %v2280, 0.0
      %2314 = vadd.xlane.f32.xlu0 %v2313
      %v2315 = vpop.xlane.xlu0 %2314
      %v2316 = vsel %vm1834, %v2282, 0.0
      %2317 = vadd.xlane.f32.xlu0 %v2316
      %v2318 = vpop.xlane.xlu0 %2317
      %v2319 = vsel %vm1834, %v2284, 0.0
      %2320 = vadd.xlane.f32.xlu0 %v2319
      %v2321 = vpop.xlane.xlu0 %2320
      %v2322 = vsel %vm1834, %v2286, 0.0
      %2323 = vadd.xlane.f32.xlu0 %v2322
      %v2324 = vpop.xlane.xlu0 %2323
      %v2325 = vsel %vm1834, %v2288, 0.0
      %2326 = vadd.xlane.f32.xlu0 %v2325
      %v2327 = vpop.xlane.xlu0 %2326
      %v2328 = vsel %vm1834, %v2290, 0.0
      %2329 = vadd.xlane.f32.xlu0 %v2328
      %v2330 = vpop.xlane.xlu0 %2329
      %v2331 = vsel %vm1834, %v2292, 0.0
      %2332 = vadd.xlane.f32.xlu0 %v2331
      %v2333 = vpop.xlane.xlu0 %2332
      %v2334 = vsel %vm1834, %v2294, 0.0
      %2335 = vadd.xlane.f32.xlu0 %v2334
      %v2336 = vpop.xlane.xlu0 %2335
      %v2337 = vsel %vm1834, %v2296, 0.0
      %2338 = vadd.xlane.f32.xlu0 %v2337
      %v2339 = vpop.xlane.xlu0 %2338
      %v2340 = vsel %vm1834, %v2298, 0.0
      %2341 = vadd.xlane.f32.xlu0 %v2340
      %v2342 = vpop.xlane.xlu0 %2341
      %v2343 = vsel %vm1834, %v2300, 0.0
      %2344 = vadd.xlane.f32.xlu0 %v2343
      %v2345 = vpop.xlane.xlu0 %2344
      %v2346 = vsel %vm1834, %v2302, 0.0
      %2347 = vadd.xlane.f32.xlu0 %v2346
      %v2348 = vpop.xlane.xlu0 %2347
      %v2349 = vsel %vm1834, %v2304, 0.0
      %2350 = vadd.xlane.f32.xlu0 %v2349
      %v2351 = vpop.xlane.xlu0 %2350
      %v2352 = vsel %vm1834, %v2306, 0.0
      %2353 = vadd.xlane.f32.xlu0 %v2352
      %v2354 = vpop.xlane.xlu0 %2353
      %v2355 = vrcp.pop %v2309
      %v2356 = vrcp.pop %v2312
      %v2357 = vrcp.pop %v2315
      %v2358 = vrcp.pop %v2318
      %v2359 = vrcp.pop %v2321
      %v2360 = vrcp.pop %v2324
      %v2361 = vrcp.pop %v2327
      %v2362 = vrcp.pop %v2330
      %v2363 = vrcp.pop %v2333
      %v2364 = vrcp.pop %v2336
      %v2365 = vrcp.pop %v2339
      %v2366 = vrcp.pop %v2342
      %v2367 = vrcp.pop %v2345
      %v2368 = vrcp.pop %v2348
      %v2369 = vrcp.pop %v2351
      %v2370 = vrcp.pop %v2354
      %v2371 = vmul.f32 %v2276, %v2355
      %v2372 = vmul.f32 %v2278, %v2356
      %v2373 = vmul.f32 %v2280, %v2357
      %v2374 = vmul.f32 %v2282, %v2358
      %v2375 = vmul.f32 %v2284, %v2359
      %v2376 = vmul.f32 %v2286, %v2360
      %v2377 = vmul.f32 %v2288, %v2361
      %v2378 = vmul.f32 %v2290, %v2362
      %v2379 = vmul.f32 %v2292, %v2363
      %v2380 = vmul.f32 %v2294, %v2364
      %v2381 = vmul.f32 %v2296, %v2365
      %v2382 = vmul.f32 %v2298, %v2366
      %v2383 = vmul.f32 %v2300, %v2367
      %v2384 = vmul.f32 %v2302, %v2368
      %v2385 = vmul.f32 %v2304, %v2369
      %v2386 = vmul.f32 %v2306, %v2370
      %v2387 = vpack.c.bf16 %v2372, %v2371
      %v2388 = vpack.c.bf16 %v2374, %v2373
      %v2389 = vpack.c.bf16 %v2376, %v2375
      %v2390 = vpack.c.bf16 %v2378, %v2377
      %v2391 = vpack.c.bf16 %v2380, %v2379
      %v2392 = vpack.c.bf16 %v2382, %v2381
      %v2393 = vpack.c.bf16 %v2384, %v2383
      %v2394 = vpack.c.bf16 %v2386, %v2385
      %2399 = vrot.lane.b32.xlu0 %v1611, 96
      %v2400 = vpop.permute.xlu0 %2399
      %2401 = vrot.lane.b32.xlu0 %v1612, 96
      %v2402 = vpop.permute.xlu0 %2401
      %2403 = vrot.lane.b32.xlu0 %v1613, 96
      %v2404 = vpop.permute.xlu0 %2403
      %2405 = vrot.lane.b32.xlu0 %v1614, 96
      %v2406 = vpop.permute.xlu0 %2405
      %v2412 = vsel %vm1834, %v2387, 0
      %v2415 = vsel %vm1834, %v2388, 0
      %v2418 = vsel %vm1834, %v2389, 0
      %v2421 = vsel %vm1834, %v2390, 0
      %2423 = vmatprep.subr.bf16.mxu0 0
      %2424 = vmatpush1.bf16.msra.mxu0 0
      %2425 = vmatprep.subr.bf16.mxu0 0
      %2426 = vmatpush1.bf16.msra.mxu0 0
      %2427 = vmatprep.subr.bf16.mxu0 0
      %2428 = vmatpush1.bf16.msra.mxu0 0
      %2429 = vmatprep.subr.bf16.mxu0 0
      %2430 = vmatpush1.bf16.msra.mxu0 0
      %2431 = vmatprep.subr.bf16.mxu0 0
      %2432 = vmatpush1.bf16.msra.mxu0 %v2406
      %2433 = vmatprep.subr.bf16.mxu0 0
      %2434 = vmatpush1.bf16.msra.mxu0 %v2404
      %2435 = vmatprep.subr.bf16.mxu0 0
      %2436 = vmatpush1.bf16.msra.mxu0 %v2402
      %2437 = vmatprep.subr.bf16.mxu0 0
      %2438 = vmatpush1.bf16.msra.mxu0 %v2400
      %2439 = vmatprep.subr.bf16.mxu0 0
      %2440 = vmatpush2.bf16.msra.mxu0 0
      %2441 = vmatprep.subr.bf16.mxu0 0
      %2442 = vmatpush2.bf16.msra.mxu0 0
      %2443 = vmatprep.subr.bf16.mxu0 0
      %2444 = vmatpush2.bf16.msra.mxu0 0
      %2445 = vmatprep.subr.bf16.mxu0 0
      %2446 = vmatpush2.bf16.msra.mxu0 0
      %2447 = vmatprep.subr.bf16.mxu0 0
      %2448 = vmatpush2.bf16.msra.mxu0 0
      %2449 = vmatprep.subr.bf16.mxu0 0
      %2450 = vmatpush2.bf16.msra.mxu0 0
      %2451 = vmatprep.subr.bf16.mxu0 0
      %2452 = vmatpush2.bf16.msra.mxu0 0
      %2453 = vmatprep.subr.bf16.mxu0 0
      %2454 = vmatpush2.bf16.msra.mxu0 0
      %2455 = vmatprep.mubr.bf16.mxu0 0
      %2456 = vmatmul.mubr.bf16.gmra.mxu0 %v2412
      %v2457 = vpop.f32.mrf.mxu0
      %v2458 = vadd.f32 0.0, %v2457
      %v2459 = vpop.f32.mrf.mxu0
      %v2460 = vpop.f32.mrf.mxu0
      %v2461 = vadd.f32 0.0, %v2460
      %v2462 = vpop.f32.mrf.mxu0
      %2463 = vmatprep.mubr.bf16.mxu0 0
      %2464 = vmatmul.mubr.bf16.gmra.mxu0 %v2415
      %v2465 = vpop.f32.mrf.mxu0
      %v2466 = vadd.f32 0.0, %v2465
      %v2467 = vpop.f32.mrf.mxu0
      %v2468 = vpop.f32.mrf.mxu0
      %v2469 = vadd.f32 0.0, %v2468
      %v2470 = vpop.f32.mrf.mxu0
      %2471 = vmatprep.mubr.bf16.mxu0 0
      %2472 = vmatmul.mubr.bf16.gmra.mxu0 %v2418
      %v2473 = vpop.f32.mrf.mxu0
      %v2474 = vadd.f32 0.0, %v2473
      %v2475 = vpop.f32.mrf.mxu0
      %v2476 = vpop.f32.mrf.mxu0
      %v2477 = vadd.f32 0.0, %v2476
      %v2478 = vpop.f32.mrf.mxu0
      %2479 = vmatprep.mubr.bf16.mxu0 0
      %2480 = vmatmul.mubr.bf16.gmra.mxu0 %v2421
      %v2481 = vpop.f32.mrf.mxu0
      %v2482 = vadd.f32 0.0, %v2481
      %v2483 = vpop.f32.mrf.mxu0
      %v2484 = vpop.f32.mrf.mxu0
      %v2485 = vadd.f32 0.0, %v2484
      %v2486 = vpop.f32.mrf.mxu0
      %2487 = vdwg.mxu0
      %2492 = vrot.lane.b32.xlu0 %v1615, 96
      %v2493 = vpop.permute.xlu0 %2492
      %2494 = vrot.lane.b32.xlu0 %v1616, 96
      %v2495 = vpop.permute.xlu0 %2494
      %2496 = vrot.lane.b32.xlu0 %v1617, 96
      %v2497 = vpop.permute.xlu0 %2496
      %2498 = vrot.lane.b32.xlu0 %v1618, 96
      %v2499 = vpop.permute.xlu0 %2498
      %v2505 = vsel %vm1834, %v2391, 0
      %v2508 = vsel %vm1834, %v2392, 0
      %v2511 = vsel %vm1834, %v2393, 0
      %v2514 = vsel %vm1834, %v2394, 0
      %2516 = vmatprep.subr.bf16.mxu0 0
      %2517 = vmatpush1.bf16.msra.mxu0 0
      %2518 = vmatprep.subr.bf16.mxu0 0
      %2519 = vmatpush1.bf16.msra.mxu0 0
      %2520 = vmatprep.subr.bf16.mxu0 0
      %2521 = vmatpush1.bf16.msra.mxu0 0
      %2522 = vmatprep.subr.bf16.mxu0 0
      %2523 = vmatpush1.bf16.msra.mxu0 0
      %2524 = vmatprep.subr.bf16.mxu0 0
      %2525 = vmatpush1.bf16.msra.mxu0 %v2499
      %2526 = vmatprep.subr.bf16.mxu0 0
      %2527 = vmatpush1.bf16.msra.mxu0 %v2497
      %2528 = vmatprep.subr.bf16.mxu0 0
      %2529 = vmatpush1.bf16.msra.mxu0 %v2495
      %2530 = vmatprep.subr.bf16.mxu0 0
      %2531 = vmatpush1.bf16.msra.mxu0 %v2493
      %2532 = vmatprep.subr.bf16.mxu0 0
      %2533 = vmatpush2.bf16.msra.mxu0 0
      %2534 = vmatprep.subr.bf16.mxu0 0
      %2535 = vmatpush2.bf16.msra.mxu0 0
      %2536 = vmatprep.subr.bf16.mxu0 0
      %2537 = vmatpush2.bf16.msra.mxu0 0
      %2538 = vmatprep.subr.bf16.mxu0 0
      %2539 = vmatpush2.bf16.msra.mxu0 0
      %2540 = vmatprep.subr.bf16.mxu0 0
      %2541 = vmatpush2.bf16.msra.mxu0 0
      %2542 = vmatprep.subr.bf16.mxu0 0
      %2543 = vmatpush2.bf16.msra.mxu0 0
      %2544 = vmatprep.subr.bf16.mxu0 0
      %2545 = vmatpush2.bf16.msra.mxu0 0
      %2546 = vmatprep.subr.bf16.mxu0 0
      %2547 = vmatpush2.bf16.msra.mxu0 0
      %2548 = vmatprep.mubr.bf16.mxu0 0
      %2549 = vmatmul.mubr.bf16.gmra.mxu0 %v2505
      %v2550 = vpop.f32.mrf.mxu0
      %v2551 = vadd.f32 0.0, %v2550
      %v2552 = vpop.f32.mrf.mxu0
      %v2553 = vpop.f32.mrf.mxu0
      %v2554 = vadd.f32 0.0, %v2553
      %v2555 = vpop.f32.mrf.mxu0
      %2556 = vmatprep.mubr.bf16.mxu0 0
      %2557 = vmatmul.mubr.bf16.gmra.mxu0 %v2508
      %v2558 = vpop.f32.mrf.mxu0
      %v2559 = vadd.f32 0.0, %v2558
      %v2560 = vpop.f32.mrf.mxu0
      %v2561 = vpop.f32.mrf.mxu0
      %v2562 = vadd.f32 0.0, %v2561
      %v2563 = vpop.f32.mrf.mxu0
      %2564 = vmatprep.mubr.bf16.mxu0 0
      %2565 = vmatmul.mubr.bf16.gmra.mxu0 %v2511
      %v2566 = vpop.f32.mrf.mxu0
      %v2567 = vadd.f32 0.0, %v2566
      %v2568 = vpop.f32.mrf.mxu0
      %v2569 = vpop.f32.mrf.mxu0
      %v2570 = vadd.f32 0.0, %v2569
      %v2571 = vpop.f32.mrf.mxu0
      %2572 = vmatprep.mubr.bf16.mxu0 0
      %2573 = vmatmul.mubr.bf16.gmra.mxu0 %v2514
      %v2574 = vpop.f32.mrf.mxu0
      %v2575 = vadd.f32 0.0, %v2574
      %v2576 = vpop.f32.mrf.mxu0
      %v2577 = vpop.f32.mrf.mxu0
      %v2578 = vadd.f32 0.0, %v2577
      %v2579 = vpop.f32.mrf.mxu0
      %2580 = vdwg.mxu0
      %v2582 = vsel %vm1834, %v2011, 0
      %v2585 = vsel %vm1834, %v2012, 0
      %v2588 = vsel %vm1834, %v2013, 0
      %v2591 = vsel %vm1834, %v2014, 0
      %2593 = vmatprep.subr.bf16.mxu0 0
      %2594 = vmatpush1.bf16.msra.mxu0 0
      %2595 = vmatprep.subr.bf16.mxu0 0
      %2596 = vmatpush1.bf16.msra.mxu0 0
      %2597 = vmatprep.subr.bf16.mxu0 0
      %2598 = vmatpush1.bf16.msra.mxu0 0
      %2599 = vmatprep.subr.bf16.mxu0 0
      %2600 = vmatpush1.bf16.msra.mxu0 0
      %2601 = vmatprep.subr.bf16.mxu0 0
      %2602 = vmatpush1.bf16.msra.mxu0 %v1614
      %2603 = vmatprep.subr.bf16.mxu0 0
      %2604 = vmatpush1.bf16.msra.mxu0 %v1613
      %2605 = vmatprep.subr.bf16.mxu0 0
      %2606 = vmatpush1.bf16.msra.mxu0 %v1612
      %2607 = vmatprep.subr.bf16.mxu0 0
      %2608 = vmatpush1.bf16.msra.mxu0 %v1611
      %2609 = vmatprep.subr.bf16.mxu0 0
      %2610 = vmatpush2.bf16.msra.mxu0 0
      %2611 = vmatprep.subr.bf16.mxu0 0
      %2612 = vmatpush2.bf16.msra.mxu0 0
      %2613 = vmatprep.subr.bf16.mxu0 0
      %2614 = vmatpush2.bf16.msra.mxu0 0
      %2615 = vmatprep.subr.bf16.mxu0 0
      %2616 = vmatpush2.bf16.msra.mxu0 0
      %2617 = vmatprep.subr.bf16.mxu0 0
      %2618 = vmatpush2.bf16.msra.mxu0 0
      %2619 = vmatprep.subr.bf16.mxu0 0
      %2620 = vmatpush2.bf16.msra.mxu0 0
      %2621 = vmatprep.subr.bf16.mxu0 0
      %2622 = vmatpush2.bf16.msra.mxu0 0
      %2623 = vmatprep.subr.bf16.mxu0 0
      %2624 = vmatpush2.bf16.msra.mxu0 0
      %2625 = vmatprep.mubr.bf16.mxu0 0
      %2626 = vmatmul.mubr.bf16.gmra.mxu0 %v2582
      %v2627 = vpop.f32.mrf.mxu0
      %v2628 = vadd.f32 %v2458, %v2627
      %v2629 = vpop.f32.mrf.mxu0
      %v2630 = vpop.f32.mrf.mxu0
      %v2631 = vadd.f32 %v2461, %v2630
      %v2632 = vpop.f32.mrf.mxu0
      %2633 = vmatprep.mubr.bf16.mxu0 0
      %2634 = vmatmul.mubr.bf16.gmra.mxu0 %v2585
      %v2635 = vpop.f32.mrf.mxu0
      %v2636 = vadd.f32 %v2466, %v2635
      %v2637 = vpop.f32.mrf.mxu0
      %v2638 = vpop.f32.mrf.mxu0
      %v2639 = vadd.f32 %v2469, %v2638
      %v2640 = vpop.f32.mrf.mxu0
      %2641 = vmatprep.mubr.bf16.mxu0 0
      %2642 = vmatmul.mubr.bf16.gmra.mxu0 %v2588
      %v2643 = vpop.f32.mrf.mxu0
      %v2644 = vadd.f32 %v2474, %v2643
      %v2645 = vpop.f32.mrf.mxu0
      %v2646 = vpop.f32.mrf.mxu0
      %v2647 = vadd.f32 %v2477, %v2646
      %v2648 = vpop.f32.mrf.mxu0
      %2649 = vmatprep.mubr.bf16.mxu0 0
      %2650 = vmatmul.mubr.bf16.gmra.mxu0 %v2591
      %v2651 = vpop.f32.mrf.mxu0
      %v2652 = vadd.f32 %v2482, %v2651
      %v2653 = vpop.f32.mrf.mxu0
      %v2654 = vpop.f32.mrf.mxu0
      %v2655 = vadd.f32 %v2485, %v2654
      %v2656 = vpop.f32.mrf.mxu0
      %2657 = vdwg.mxu0
      %v2659 = vsel %vm1834, %v2015, 0
      %v2662 = vsel %vm1834, %v2016, 0
      %v2665 = vsel %vm1834, %v2017, 0
      %v2668 = vsel %vm1834, %v2018, 0
      %2670 = vmatprep.subr.bf16.mxu0 0
      %2671 = vmatpush1.bf16.msra.mxu0 0
      %2672 = vmatprep.subr.bf16.mxu0 0
      %2673 = vmatpush1.bf16.msra.mxu0 0
      %2674 = vmatprep.subr.bf16.mxu0 0
      %2675 = vmatpush1.bf16.msra.mxu0 0
      %2676 = vmatprep.subr.bf16.mxu0 0
      %2677 = vmatpush1.bf16.msra.mxu0 0
      %2678 = vmatprep.subr.bf16.mxu0 0
      %2679 = vmatpush1.bf16.msra.mxu0 %v1618
      %2680 = vmatprep.subr.bf16.mxu0 0
      %2681 = vmatpush1.bf16.msra.mxu0 %v1617
      %2682 = vmatprep.subr.bf16.mxu0 0
      %2683 = vmatpush1.bf16.msra.mxu0 %v1616
      %2684 = vmatprep.subr.bf16.mxu0 0
      %2685 = vmatpush1.bf16.msra.mxu0 %v1615
      %2686 = vmatprep.subr.bf16.mxu0 0
      %2687 = vmatpush2.bf16.msra.mxu0 0
      %2688 = vmatprep.subr.bf16.mxu0 0
      %2689 = vmatpush2.bf16.msra.mxu0 0
      %2690 = vmatprep.subr.bf16.mxu0 0
      %2691 = vmatpush2.bf16.msra.mxu0 0
      %2692 = vmatprep.subr.bf16.mxu0 0
      %2693 = vmatpush2.bf16.msra.mxu0 0
      %2694 = vmatprep.subr.bf16.mxu0 0
      %2695 = vmatpush2.bf16.msra.mxu0 0
      %2696 = vmatprep.subr.bf16.mxu0 0
      %2697 = vmatpush2.bf16.msra.mxu0 0
      %2698 = vmatprep.subr.bf16.mxu0 0
      %2699 = vmatpush2.bf16.msra.mxu0 0
      %2700 = vmatprep.subr.bf16.mxu0 0
      %2701 = vmatpush2.bf16.msra.mxu0 0
      %2702 = vmatprep.mubr.bf16.mxu0 0
      %2703 = vmatmul.mubr.bf16.gmra.mxu0 %v2659
      %v2704 = vpop.f32.mrf.mxu0
      %v2705 = vadd.f32 %v2551, %v2704
      %v2706 = vpop.f32.mrf.mxu0
      %v2707 = vpop.f32.mrf.mxu0
      %v2708 = vadd.f32 %v2554, %v2707
      %v2709 = vpop.f32.mrf.mxu0
      %2710 = vmatprep.mubr.bf16.mxu0 0
      %2711 = vmatmul.mubr.bf16.gmra.mxu0 %v2662
      %v2712 = vpop.f32.mrf.mxu0
      %v2713 = vadd.f32 %v2559, %v2712
      %v2714 = vpop.f32.mrf.mxu0
      %v2715 = vpop.f32.mrf.mxu0
      %v2716 = vadd.f32 %v2562, %v2715
      %v2717 = vpop.f32.mrf.mxu0
      %2718 = vmatprep.mubr.bf16.mxu0 0
      %2719 = vmatmul.mubr.bf16.gmra.mxu0 %v2665
      %v2720 = vpop.f32.mrf.mxu0
      %v2721 = vadd.f32 %v2567, %v2720
      %v2722 = vpop.f32.mrf.mxu0
      %v2723 = vpop.f32.mrf.mxu0
      %v2724 = vadd.f32 %v2570, %v2723
      %v2725 = vpop.f32.mrf.mxu0
      %2726 = vmatprep.mubr.bf16.mxu0 0
      %2727 = vmatmul.mubr.bf16.gmra.mxu0 %v2668
      %v2728 = vpop.f32.mrf.mxu0
      %v2729 = vadd.f32 %v2575, %v2728
      %v2730 = vpop.f32.mrf.mxu0
      %v2731 = vpop.f32.mrf.mxu0
      %v2732 = vadd.f32 %v2578, %v2731
      %v2733 = vpop.f32.mrf.mxu0
      %2734 = vdwg.mxu0
      %v2735 = vld [vmem:[%s11 + $0x2] sm:$0x1]
      %v2736 = vlaneseq
      %v2737 = vshrl.u32 %v2736, 7
      %v2738 = vsub.s32 0, %v2737
      %v2739 = vrot.slane %v2735, %v2738
      %v2740 = vmul.f32 %v1228, %v2739
      %v2741 = vmul.f32 %v1231, %v2739
      %v2742 = vmul.f32 %v1236, %v2739
      %v2743 = vmul.f32 %v1239, %v2739
      %v2744 = vmul.f32 %v1244, %v2739
      %v2745 = vmul.f32 %v1247, %v2739
      %v2746 = vmul.f32 %v1252, %v2739
      %v2747 = vmul.f32 %v1255, %v2739
      %v2748 = vmul.f32 %v1260, %v2739
      %v2749 = vmul.f32 %v1263, %v2739
      %v2750 = vmul.f32 %v1268, %v2739
      %v2751 = vmul.f32 %v1271, %v2739
      %v2752 = vmul.f32 %v1276, %v2739
      %v2753 = vmul.f32 %v1279, %v2739
      %v2754 = vmul.f32 %v1284, %v2739
      %v2755 = vmul.f32 %v1287, %v2739
      %v2756 = vpack.c.bf16 %v2741, %v2740
      %v2757 = vpack.c.bf16 %v2743, %v2742
      %v2758 = vpack.c.bf16 %v2745, %v2744
      %v2759 = vpack.c.bf16 %v2747, %v2746
      %v2760 = vpack.c.bf16 %v2749, %v2748
      %v2761 = vpack.c.bf16 %v2751, %v2750
      %v2762 = vpack.c.bf16 %v2753, %v2752
      %v2763 = vpack.c.bf16 %v2755, %v2754
      %s2764 = scalar_lea.vmem %s10, 128
      %v2765 = vld [vmem:[%s2764] sm:$0xff]
      %v2766 = vld [vmem:[%s2764 + $0x8] sm:$0xff]
      %v2767 = vld [vmem:[%s2764 + $0x10] sm:$0xff]
      %v2768 = vld [vmem:[%s2764 + $0x18] sm:$0xff]
      %v2769 = vld [vmem:[%s2764 + $0x20] sm:$0xff]
      %v2770 = vld [vmem:[%s2764 + $0x28] sm:$0xff]
      %v2771 = vld [vmem:[%s2764 + $0x30] sm:$0xff]
      %v2772 = vld [vmem:[%s2764 + $0x38] sm:$0xff]
      %v2774 = vsel %vm644, %v2756, 0
      %v2777 = vsel %vm644, %v2757, 0
      %v2780 = vsel %vm644, %v2758, 0
      %v2783 = vsel %vm644, %v2759, 0
      %2785 = vmatprep.subr.bf16.mxu0 0
      %2786 = vmatpush1.bf16.xpose.msra.mxu0 0
      %2787 = vmatprep.subr.bf16.mxu0 0
      %2788 = vmatpush1.bf16.xpose.msra.mxu0 0
      %2789 = vmatprep.subr.bf16.mxu0 0
      %2790 = vmatpush1.bf16.xpose.msra.mxu0 0
      %2791 = vmatprep.subr.bf16.mxu0 0
      %2792 = vmatpush1.bf16.xpose.msra.mxu0 0
      %2793 = vmatprep.subr.bf16.mxu0 0
      %2794 = vmatpush1.bf16.xpose.msra.mxu0 %v1678
      %2795 = vmatprep.subr.bf16.mxu0 0
      %2796 = vmatpush1.bf16.xpose.msra.mxu0 %v1675
      %2797 = vmatprep.subr.bf16.mxu0 0
      %2798 = vmatpush1.bf16.xpose.msra.mxu0 %v1672
      %2799 = vmatprep.subr.bf16.mxu0 0
      %2800 = vmatpush1.bf16.xpose.msra.mxu0 %v1669
      %2801 = vmatprep.subr.bf16.mxu0 0
      %2802 = vmatpush2.bf16.xpose.msra.mxu0 0
      %2803 = vmatprep.subr.bf16.mxu0 0
      %2804 = vmatpush2.bf16.xpose.msra.mxu0 0
      %2805 = vmatprep.subr.bf16.mxu0 0
      %2806 = vmatpush2.bf16.xpose.msra.mxu0 0
      %2807 = vmatprep.subr.bf16.mxu0 0
      %2808 = vmatpush2.bf16.xpose.msra.mxu0 0
      %2809 = vmatprep.subr.bf16.mxu0 0
      %2810 = vmatpush2.bf16.xpose.msra.mxu0 0
      %2811 = vmatprep.subr.bf16.mxu0 0
      %2812 = vmatpush2.bf16.xpose.msra.mxu0 0
      %2813 = vmatprep.subr.bf16.mxu0 0
      %2814 = vmatpush2.bf16.xpose.msra.mxu0 0
      %2815 = vmatprep.subr.bf16.mxu0 0
      %2816 = vmatpush2.bf16.xpose.msra.mxu0 0
      %2817 = vmatprep.mubr.bf16.mxu0 0
      %2818 = vmatmul.mubr.bf16.gmra.mxu0 %v2774
      %v2819 = vpop.f32.mrf.mxu0
      %v2820 = vadd.f32 %v2765, %v2819
      %v2821 = vpop.f32.mrf.mxu0
      %v2822 = vpop.f32.mrf.mxu0
      %v2823 = vadd.f32 %v2766, %v2822
      %v2824 = vpop.f32.mrf.mxu0
      %2825 = vmatprep.mubr.bf16.mxu0 0
      %2826 = vmatmul.mubr.bf16.gmra.mxu0 %v2777
      %v2827 = vpop.f32.mrf.mxu0
      %v2828 = vadd.f32 %v2767, %v2827
      %v2829 = vpop.f32.mrf.mxu0
      %v2830 = vpop.f32.mrf.mxu0
      %v2831 = vadd.f32 %v2768, %v2830
      %v2832 = vpop.f32.mrf.mxu0
      %2833 = vmatprep.mubr.bf16.mxu0 0
      %2834 = vmatmul.mubr.bf16.gmra.mxu0 %v2780
      %v2835 = vpop.f32.mrf.mxu0
      %v2836 = vadd.f32 %v2769, %v2835
      %v2837 = vpop.f32.mrf.mxu0
      %v2838 = vpop.f32.mrf.mxu0
      %v2839 = vadd.f32 %v2770, %v2838
      %v2840 = vpop.f32.mrf.mxu0
      %2841 = vmatprep.mubr.bf16.mxu0 0
      %2842 = vmatmul.mubr.bf16.gmra.mxu0 %v2783
      %v2843 = vpop.f32.mrf.mxu0
      %v2844 = vadd.f32 %v2771, %v2843
      %v2845 = vpop.f32.mrf.mxu0
      %v2846 = vpop.f32.mrf.mxu0
      %v2847 = vadd.f32 %v2772, %v2846
      %v2848 = vpop.f32.mrf.mxu0
      %2849 = vdwg.mxu0
      %v2851 = vsel %vm644, %v2760, 0
      %v2854 = vsel %vm644, %v2761, 0
      %v2857 = vsel %vm644, %v2762, 0
      %v2860 = vsel %vm644, %v2763, 0
      %2862 = vmatprep.subr.bf16.mxu0 0
      %2863 = vmatpush1.bf16.xpose.msra.mxu0 0
      %2864 = vmatprep.subr.bf16.mxu0 0
      %2865 = vmatpush1.bf16.xpose.msra.mxu0 0
      %2866 = vmatprep.subr.bf16.mxu0 0
      %2867 = vmatpush1.bf16.xpose.msra.mxu0 0
      %2868 = vmatprep.subr.bf16.mxu0 0
      %2869 = vmatpush1.bf16.xpose.msra.mxu0 0
      %2870 = vmatprep.subr.bf16.mxu0 0
      %2871 = vmatpush1.bf16.xpose.msra.mxu0 %v1767
      %2872 = vmatprep.subr.bf16.mxu0 0
      %2873 = vmatpush1.bf16.xpose.msra.mxu0 %v1764
      %2874 = vmatprep.subr.bf16.mxu0 0
      %2875 = vmatpush1.bf16.xpose.msra.mxu0 %v1761
      %2876 = vmatprep.subr.bf16.mxu0 0
      %2877 = vmatpush1.bf16.xpose.msra.mxu0 %v1758
      %2878 = vmatprep.subr.bf16.mxu0 0
      %2879 = vmatpush2.bf16.xpose.msra.mxu0 0
      %2880 = vmatprep.subr.bf16.mxu0 0
      %2881 = vmatpush2.bf16.xpose.msra.mxu0 0
      %2882 = vmatprep.subr.bf16.mxu0 0
      %2883 = vmatpush2.bf16.xpose.msra.mxu0 0
      %2884 = vmatprep.subr.bf16.mxu0 0
      %2885 = vmatpush2.bf16.xpose.msra.mxu0 0
      %2886 = vmatprep.subr.bf16.mxu0 0
      %2887 = vmatpush2.bf16.xpose.msra.mxu0 0
      %2888 = vmatprep.subr.bf16.mxu0 0
      %2889 = vmatpush2.bf16.xpose.msra.mxu0 0
      %2890 = vmatprep.subr.bf16.mxu0 0
      %2891 = vmatpush2.bf16.xpose.msra.mxu0 0
      %2892 = vmatprep.subr.bf16.mxu0 0
      %2893 = vmatpush2.bf16.xpose.msra.mxu0 0
      %2894 = vmatprep.mubr.bf16.mxu0 0
      %2895 = vmatmul.mubr.bf16.gmra.mxu0 %v2851
      %v2896 = vpop.f32.mrf.mxu0
      %v2897 = vadd.f32 %v2765, %v2896
      %v2898 = vpop.f32.mrf.mxu0
      %v2899 = vpop.f32.mrf.mxu0
      %v2900 = vadd.f32 %v2766, %v2899
      %v2901 = vpop.f32.mrf.mxu0
      %2902 = vmatprep.mubr.bf16.mxu0 0
      %2903 = vmatmul.mubr.bf16.gmra.mxu0 %v2854
      %v2904 = vpop.f32.mrf.mxu0
      %v2905 = vadd.f32 %v2767, %v2904
      %v2906 = vpop.f32.mrf.mxu0
      %v2907 = vpop.f32.mrf.mxu0
      %v2908 = vadd.f32 %v2768, %v2907
      %v2909 = vpop.f32.mrf.mxu0
      %2910 = vmatprep.mubr.bf16.mxu0 0
      %2911 = vmatmul.mubr.bf16.gmra.mxu0 %v2857
      %v2912 = vpop.f32.mrf.mxu0
      %v2913 = vadd.f32 %v2769, %v2912
      %v2914 = vpop.f32.mrf.mxu0
      %v2915 = vpop.f32.mrf.mxu0
      %v2916 = vadd.f32 %v2770, %v2915
      %v2917 = vpop.f32.mrf.mxu0
      %2918 = vmatprep.mubr.bf16.mxu0 0
      %2919 = vmatmul.mubr.bf16.gmra.mxu0 %v2860
      %v2920 = vpop.f32.mrf.mxu0
      %v2921 = vadd.f32 %v2771, %v2920
      %v2922 = vpop.f32.mrf.mxu0
      %v2923 = vpop.f32.mrf.mxu0
      %v2924 = vadd.f32 %v2772, %v2923
      %v2925 = vpop.f32.mrf.mxu0
      %2926 = vdwg.mxu0
      %v2927 = vsel %vm1834, %v2820, -inf
      %2928 = vmax.xlane.f32.xlu0 %v2927
      %v2929 = vpop.xlane.xlu0 %2928
      %v2930 = vsel %vm1834, %v2823, -inf
      %2931 = vmax.xlane.f32.xlu0 %v2930
      %v2932 = vpop.xlane.xlu0 %2931
      %v2933 = vsel %vm1834, %v2828, -inf
      %2934 = vmax.xlane.f32.xlu0 %v2933
      %v2935 = vpop.xlane.xlu0 %2934
      %v2936 = vsel %vm1834, %v2831, -inf
      %2937 = vmax.xlane.f32.xlu0 %v2936
      %v2938 = vpop.xlane.xlu0 %2937
      %v2939 = vsel %vm1834, %v2836, -inf
      %2940 = vmax.xlane.f32.xlu0 %v2939
      %v2941 = vpop.xlane.xlu0 %2940
      %v2942 = vsel %vm1834, %v2839, -inf
      %2943 = vmax.xlane.f32.xlu0 %v2942
      %v2944 = vpop.xlane.xlu0 %2943
      %v2945 = vsel %vm1834, %v2844, -inf
      %2946 = vmax.xlane.f32.xlu0 %v2945
      %v2947 = vpop.xlane.xlu0 %2946
      %v2948 = vsel %vm1834, %v2847, -inf
      %2949 = vmax.xlane.f32.xlu0 %v2948
      %v2950 = vpop.xlane.xlu0 %2949
      %v2951 = vsel %vm1834, %v2897, -inf
      %2952 = vmax.xlane.f32.xlu0 %v2951
      %v2953 = vpop.xlane.xlu0 %2952
      %v2954 = vsel %vm1834, %v2900, -inf
      %2955 = vmax.xlane.f32.xlu0 %v2954
      %v2956 = vpop.xlane.xlu0 %2955
      %v2957 = vsel %vm1834, %v2905, -inf
      %2958 = vmax.xlane.f32.xlu0 %v2957
      %v2959 = vpop.xlane.xlu0 %2958
      %v2960 = vsel %vm1834, %v2908, -inf
      %2961 = vmax.xlane.f32.xlu0 %v2960
      %v2962 = vpop.xlane.xlu0 %2961
      %v2963 = vsel %vm1834, %v2913, -inf
      %2964 = vmax.xlane.f32.xlu0 %v2963
      %v2965 = vpop.xlane.xlu0 %2964
      %v2966 = vsel %vm1834, %v2916, -inf
      %2967 = vmax.xlane.f32.xlu0 %v2966
      %v2968 = vpop.xlane.xlu0 %2967
      %v2969 = vsel %vm1834, %v2921, -inf
      %2970 = vmax.xlane.f32.xlu0 %v2969
      %v2971 = vpop.xlane.xlu0 %2970
      %v2972 = vsel %vm1834, %v2924, -inf
      %2973 = vmax.xlane.f32.xlu0 %v2972
      %v2974 = vpop.xlane.xlu0 %2973
      %v2975 = vsub.f32 %v2820, %v2929
      %v2976 = vsub.f32 %v2823, %v2932
      %v2977 = vsub.f32 %v2828, %v2935
      %v2978 = vsub.f32 %v2831, %v2938
      %v2979 = vsub.f32 %v2836, %v2941
      %v2980 = vsub.f32 %v2839, %v2944
      %v2981 = vsub.f32 %v2844, %v2947
      %v2982 = vsub.f32 %v2847, %v2950
      %v2983 = vsub.f32 %v2897, %v2953
      %v2984 = vsub.f32 %v2900, %v2956
      %v2985 = vsub.f32 %v2905, %v2959
      %v2986 = vsub.f32 %v2908, %v2962
      %v2987 = vsub.f32 %v2913, %v2965
      %v2988 = vsub.f32 %v2916, %v2968
      %v2989 = vsub.f32 %v2921, %v2971
      %v2990 = vsub.f32 %v2924, %v2974
      %v2991 = vmul.f32 %v2975, 1.442695
      %v2992 = vpow.pop %v2991
      %v2993 = vmul.f32 %v2976, 1.442695
      %v2994 = vpow.pop %v2993
      %v2995 = vmul.f32 %v2977, 1.442695
      %v2996 = vpow.pop %v2995
      %v2997 = vmul.f32 %v2978, 1.442695
      %v2998 = vpow.pop %v2997
      %v2999 = vmul.f32 %v2979, 1.442695
      %v3000 = vpow.pop %v2999
      %v3001 = vmul.f32 %v2980, 1.442695
      %v3002 = vpow.pop %v3001
      %v3003 = vmul.f32 %v2981, 1.442695
      %v3004 = vpow.pop %v3003
      %v3005 = vmul.f32 %v2982, 1.442695
      %v3006 = vpow.pop %v3005
      %v3007 = vmul.f32 %v2983, 1.442695
      %v3008 = vpow.pop %v3007
      %v3009 = vmul.f32 %v2984, 1.442695
      %v3010 = vpow.pop %v3009
      %v3011 = vmul.f32 %v2985, 1.442695
      %v3012 = vpow.pop %v3011
      %v3013 = vmul.f32 %v2986, 1.442695
      %v3014 = vpow.pop %v3013
      %v3015 = vmul.f32 %v2987, 1.442695
      %v3016 = vpow.pop %v3015
      %v3017 = vmul.f32 %v2988, 1.442695
      %v3018 = vpow.pop %v3017
      %v3019 = vmul.f32 %v2989, 1.442695
      %v3020 = vpow.pop %v3019
      %v3021 = vmul.f32 %v2990, 1.442695
      %v3022 = vpow.pop %v3021
      %v3023 = vsel %vm1834, %v2992, 0.0
      %3024 = vadd.xlane.f32.xlu0 %v3023
      %v3025 = vpop.xlane.xlu0 %3024
      %v3026 = vsel %vm1834, %v2994, 0.0
      %3027 = vadd.xlane.f32.xlu0 %v3026
      %v3028 = vpop.xlane.xlu0 %3027
      %v3029 = vsel %vm1834, %v2996, 0.0
      %3030 = vadd.xlane.f32.xlu0 %v3029
      %v3031 = vpop.xlane.xlu0 %3030
      %v3032 = vsel %vm1834, %v2998, 0.0
      %3033 = vadd.xlane.f32.xlu0 %v3032
      %v3034 = vpop.xlane.xlu0 %3033
      %v3035 = vsel %vm1834, %v3000, 0.0
      %3036 = vadd.xlane.f32.xlu0 %v3035
      %v3037 = vpop.xlane.xlu0 %3036
      %v3038 = vsel %vm1834, %v3002, 0.0
      %3039 = vadd.xlane.f32.xlu0 %v3038
      %v3040 = vpop.xlane.xlu0 %3039
      %v3041 = vsel %vm1834, %v3004, 0.0
      %3042 = vadd.xlane.f32.xlu0 %v3041
      %v3043 = vpop.xlane.xlu0 %3042
      %v3044 = vsel %vm1834, %v3006, 0.0
      %3045 = vadd.xlane.f32.xlu0 %v3044
      %v3046 = vpop.xlane.xlu0 %3045
      %v3047 = vsel %vm1834, %v3008, 0.0
      %3048 = vadd.xlane.f32.xlu0 %v3047
      %v3049 = vpop.xlane.xlu0 %3048
      %v3050 = vsel %vm1834, %v3010, 0.0
      %3051 = vadd.xlane.f32.xlu0 %v3050
      %v3052 = vpop.xlane.xlu0 %3051
      %v3053 = vsel %vm1834, %v3012, 0.0
      %3054 = vadd.xlane.f32.xlu0 %v3053
      %v3055 = vpop.xlane.xlu0 %3054
      %v3056 = vsel %vm1834, %v3014, 0.0
      %3057 = vadd.xlane.f32.xlu0 %v3056
      %v3058 = vpop.xlane.xlu0 %3057
      %v3059 = vsel %vm1834, %v3016, 0.0
      %3060 = vadd.xlane.f32.xlu0 %v3059
      %v3061 = vpop.xlane.xlu0 %3060
      %v3062 = vsel %vm1834, %v3018, 0.0
      %3063 = vadd.xlane.f32.xlu0 %v3062
      %v3064 = vpop.xlane.xlu0 %3063
      %v3065 = vsel %vm1834, %v3020, 0.0
      %3066 = vadd.xlane.f32.xlu0 %v3065
      %v3067 = vpop.xlane.xlu0 %3066
      %v3068 = vsel %vm1834, %v3022, 0.0
      %3069 = vadd.xlane.f32.xlu0 %v3068
      %v3070 = vpop.xlane.xlu0 %3069
      %v3071 = vrcp.pop %v3025
      %v3072 = vrcp.pop %v3028
      %v3073 = vrcp.pop %v3031
      %v3074 = vrcp.pop %v3034
      %v3075 = vrcp.pop %v3037
      %v3076 = vrcp.pop %v3040
      %v3077 = vrcp.pop %v3043
      %v3078 = vrcp.pop %v3046
      %v3079 = vrcp.pop %v3049
      %v3080 = vrcp.pop %v3052
      %v3081 = vrcp.pop %v3055
      %v3082 = vrcp.pop %v3058
      %v3083 = vrcp.pop %v3061
      %v3084 = vrcp.pop %v3064
      %v3085 = vrcp.pop %v3067
      %v3086 = vrcp.pop %v3070
      %v3087 = vmul.f32 %v2992, %v3071
      %v3088 = vmul.f32 %v2994, %v3072
      %v3089 = vmul.f32 %v2996, %v3073
      %v3090 = vmul.f32 %v2998, %v3074
      %v3091 = vmul.f32 %v3000, %v3075
      %v3092 = vmul.f32 %v3002, %v3076
      %v3093 = vmul.f32 %v3004, %v3077
      %v3094 = vmul.f32 %v3006, %v3078
      %v3095 = vmul.f32 %v3008, %v3079
      %v3096 = vmul.f32 %v3010, %v3080
      %v3097 = vmul.f32 %v3012, %v3081
      %v3098 = vmul.f32 %v3014, %v3082
      %v3099 = vmul.f32 %v3016, %v3083
      %v3100 = vmul.f32 %v3018, %v3084
      %v3101 = vmul.f32 %v3020, %v3085
      %v3102 = vmul.f32 %v3022, %v3086
      %v3103 = vpack.c.bf16 %v3088, %v3087
      %v3104 = vpack.c.bf16 %v3090, %v3089
      %v3105 = vpack.c.bf16 %v3092, %v3091
      %v3106 = vpack.c.bf16 %v3094, %v3093
      %v3107 = vpack.c.bf16 %v3096, %v3095
      %v3108 = vpack.c.bf16 %v3098, %v3097
      %v3109 = vpack.c.bf16 %v3100, %v3099
      %v3110 = vpack.c.bf16 %v3102, %v3101
      %3111 = vrot.lane.b32.xlu0 %v1611, 64
      %v3112 = vpop.permute.xlu0 %3111
      %3113 = vrot.lane.b32.xlu0 %v1612, 64
      %v3114 = vpop.permute.xlu0 %3113
      %3115 = vrot.lane.b32.xlu0 %v1613, 64
      %v3116 = vpop.permute.xlu0 %3115
      %3117 = vrot.lane.b32.xlu0 %v1614, 64
      %v3118 = vpop.permute.xlu0 %3117
      %v3124 = vsel %vm1834, %v3103, 0
      %v3127 = vsel %vm1834, %v3104, 0
      %v3130 = vsel %vm1834, %v3105, 0
      %v3133 = vsel %vm1834, %v3106, 0
      %3135 = vmatprep.subr.bf16.mxu0 0
      %3136 = vmatpush1.bf16.msra.mxu0 0
      %3137 = vmatprep.subr.bf16.mxu0 0
      %3138 = vmatpush1.bf16.msra.mxu0 0
      %3139 = vmatprep.subr.bf16.mxu0 0
      %3140 = vmatpush1.bf16.msra.mxu0 0
      %3141 = vmatprep.subr.bf16.mxu0 0
      %3142 = vmatpush1.bf16.msra.mxu0 0
      %3143 = vmatprep.subr.bf16.mxu0 0
      %3144 = vmatpush1.bf16.msra.mxu0 %v3118
      %3145 = vmatprep.subr.bf16.mxu0 0
      %3146 = vmatpush1.bf16.msra.mxu0 %v3116
      %3147 = vmatprep.subr.bf16.mxu0 0
      %3148 = vmatpush1.bf16.msra.mxu0 %v3114
      %3149 = vmatprep.subr.bf16.mxu0 0
      %3150 = vmatpush1.bf16.msra.mxu0 %v3112
      %3151 = vmatprep.subr.bf16.mxu0 0
      %3152 = vmatpush2.bf16.msra.mxu0 0
      %3153 = vmatprep.subr.bf16.mxu0 0
      %3154 = vmatpush2.bf16.msra.mxu0 0
      %3155 = vmatprep.subr.bf16.mxu0 0
      %3156 = vmatpush2.bf16.msra.mxu0 0
      %3157 = vmatprep.subr.bf16.mxu0 0
      %3158 = vmatpush2.bf16.msra.mxu0 0
      %3159 = vmatprep.subr.bf16.mxu0 0
      %3160 = vmatpush2.bf16.msra.mxu0 0
      %3161 = vmatprep.subr.bf16.mxu0 0
      %3162 = vmatpush2.bf16.msra.mxu0 0
      %3163 = vmatprep.subr.bf16.mxu0 0
      %3164 = vmatpush2.bf16.msra.mxu0 0
      %3165 = vmatprep.subr.bf16.mxu0 0
      %3166 = vmatpush2.bf16.msra.mxu0 0
      %3167 = vmatprep.mubr.bf16.mxu0 0
      %3168 = vmatmul.mubr.bf16.gmra.mxu0 %v3124
      %v3169 = vpop.f32.mrf.mxu0
      %v3170 = vadd.f32 0.0, %v3169
      %v3171 = vpop.f32.mrf.mxu0
      %v3172 = vpop.f32.mrf.mxu0
      %v3173 = vadd.f32 0.0, %v3172
      %v3174 = vpop.f32.mrf.mxu0
      %3175 = vmatprep.mubr.bf16.mxu0 0
      %3176 = vmatmul.mubr.bf16.gmra.mxu0 %v3127
      %v3177 = vpop.f32.mrf.mxu0
      %v3178 = vadd.f32 0.0, %v3177
      %v3179 = vpop.f32.mrf.mxu0
      %v3180 = vpop.f32.mrf.mxu0
      %v3181 = vadd.f32 0.0, %v3180
      %v3182 = vpop.f32.mrf.mxu0
      %3183 = vmatprep.mubr.bf16.mxu0 0
      %3184 = vmatmul.mubr.bf16.gmra.mxu0 %v3130
      %v3185 = vpop.f32.mrf.mxu0
      %v3186 = vadd.f32 0.0, %v3185
      %v3187 = vpop.f32.mrf.mxu0
      %v3188 = vpop.f32.mrf.mxu0
      %v3189 = vadd.f32 0.0, %v3188
      %v3190 = vpop.f32.mrf.mxu0
      %3191 = vmatprep.mubr.bf16.mxu0 0
      %3192 = vmatmul.mubr.bf16.gmra.mxu0 %v3133
      %v3193 = vpop.f32.mrf.mxu0
      %v3194 = vadd.f32 0.0, %v3193
      %v3195 = vpop.f32.mrf.mxu0
      %v3196 = vpop.f32.mrf.mxu0
      %v3197 = vadd.f32 0.0, %v3196
      %v3198 = vpop.f32.mrf.mxu0
      %3199 = vdwg.mxu0
      %3200 = vrot.lane.b32.xlu0 %v1615, 64
      %v3201 = vpop.permute.xlu0 %3200
      %3202 = vrot.lane.b32.xlu0 %v1616, 64
      %v3203 = vpop.permute.xlu0 %3202
      %3204 = vrot.lane.b32.xlu0 %v1617, 64
      %v3205 = vpop.permute.xlu0 %3204
      %3206 = vrot.lane.b32.xlu0 %v1618, 64
      %v3207 = vpop.permute.xlu0 %3206
      %v3213 = vsel %vm1834, %v3107, 0
      %v3216 = vsel %vm1834, %v3108, 0
      %v3219 = vsel %vm1834, %v3109, 0
      %v3222 = vsel %vm1834, %v3110, 0
      %3224 = vmatprep.subr.bf16.mxu0 0
      %3225 = vmatpush1.bf16.msra.mxu0 0
      %3226 = vmatprep.subr.bf16.mxu0 0
      %3227 = vmatpush1.bf16.msra.mxu0 0
      %3228 = vmatprep.subr.bf16.mxu0 0
      %3229 = vmatpush1.bf16.msra.mxu0 0
      %3230 = vmatprep.subr.bf16.mxu0 0
      %3231 = vmatpush1.bf16.msra.mxu0 0
      %3232 = vmatprep.subr.bf16.mxu0 0
      %3233 = vmatpush1.bf16.msra.mxu0 %v3207
      %3234 = vmatprep.subr.bf16.mxu0 0
      %3235 = vmatpush1.bf16.msra.mxu0 %v3205
      %3236 = vmatprep.subr.bf16.mxu0 0
      %3237 = vmatpush1.bf16.msra.mxu0 %v3203
      %3238 = vmatprep.subr.bf16.mxu0 0
      %3239 = vmatpush1.bf16.msra.mxu0 %v3201
      %3240 = vmatprep.subr.bf16.mxu0 0
      %3241 = vmatpush2.bf16.msra.mxu0 0
      %3242 = vmatprep.subr.bf16.mxu0 0
      %3243 = vmatpush2.bf16.msra.mxu0 0
      %3244 = vmatprep.subr.bf16.mxu0 0
      %3245 = vmatpush2.bf16.msra.mxu0 0
      %3246 = vmatprep.subr.bf16.mxu0 0
      %3247 = vmatpush2.bf16.msra.mxu0 0
      %3248 = vmatprep.subr.bf16.mxu0 0
      %3249 = vmatpush2.bf16.msra.mxu0 0
      %3250 = vmatprep.subr.bf16.mxu0 0
      %3251 = vmatpush2.bf16.msra.mxu0 0
      %3252 = vmatprep.subr.bf16.mxu0 0
      %3253 = vmatpush2.bf16.msra.mxu0 0
      %3254 = vmatprep.subr.bf16.mxu0 0
      %3255 = vmatpush2.bf16.msra.mxu0 0
      %3256 = vmatprep.mubr.bf16.mxu0 0
      %3257 = vmatmul.mubr.bf16.gmra.mxu0 %v3213
      %v3258 = vpop.f32.mrf.mxu0
      %v3259 = vadd.f32 0.0, %v3258
      %v3260 = vpop.f32.mrf.mxu0
      %v3261 = vpop.f32.mrf.mxu0
      %v3262 = vadd.f32 0.0, %v3261
      %v3263 = vpop.f32.mrf.mxu0
      %3264 = vmatprep.mubr.bf16.mxu0 0
      %3265 = vmatmul.mubr.bf16.gmra.mxu0 %v3216
      %v3266 = vpop.f32.mrf.mxu0
      %v3267 = vadd.f32 0.0, %v3266
      %v3268 = vpop.f32.mrf.mxu0
      %v3269 = vpop.f32.mrf.mxu0
      %v3270 = vadd.f32 0.0, %v3269
      %v3271 = vpop.f32.mrf.mxu0
      %3272 = vmatprep.mubr.bf16.mxu0 0
      %3273 = vmatmul.mubr.bf16.gmra.mxu0 %v3219
      %v3274 = vpop.f32.mrf.mxu0
      %v3275 = vadd.f32 0.0, %v3274
      %v3276 = vpop.f32.mrf.mxu0
      %v3277 = vpop.f32.mrf.mxu0
      %v3278 = vadd.f32 0.0, %v3277
      %v3279 = vpop.f32.mrf.mxu0
      %3280 = vmatprep.mubr.bf16.mxu0 0
      %3281 = vmatmul.mubr.bf16.gmra.mxu0 %v3222
      %v3282 = vpop.f32.mrf.mxu0
      %v3283 = vadd.f32 0.0, %v3282
      %v3284 = vpop.f32.mrf.mxu0
      %v3285 = vpop.f32.mrf.mxu0
      %v3286 = vadd.f32 0.0, %v3285
      %v3287 = vpop.f32.mrf.mxu0
      %3288 = vdwg.mxu0
      %v3289 = vadd.f32 %v2628, %v3170
      %v3290 = vadd.f32 %v2631, %v3173
      %v3291 = vadd.f32 %v2636, %v3178
      %v3292 = vadd.f32 %v2639, %v3181
      %v3293 = vadd.f32 %v2644, %v3186
      %v3294 = vadd.f32 %v2647, %v3189
      %v3295 = vadd.f32 %v2652, %v3194
      %v3296 = vadd.f32 %v2655, %v3197
      %v3297 = vadd.f32 %v2705, %v3259
      %v3298 = vadd.f32 %v2708, %v3262
      %v3299 = vadd.f32 %v2713, %v3267
      %v3300 = vadd.f32 %v2716, %v3270
      %v3301 = vadd.f32 %v2721, %v3275
      %v3302 = vadd.f32 %v2724, %v3278
      %v3303 = vadd.f32 %v2729, %v3283
      %v3304 = vadd.f32 %v2732, %v3286
      %v3305 = vld [vmem:[%s11 + $0x3] sm:$0x1]
      %v3306 = vlaneseq
      %v3307 = vshrl.u32 %v3306, 7
      %v3308 = vsub.s32 0, %v3307
      %v3309 = vrot.slane %v3305, %v3308
      %v3310 = vmul.f32 %v1228, %v3309
      %v3311 = vmul.f32 %v1231, %v3309
      %v3312 = vmul.f32 %v1236, %v3309
      %v3313 = vmul.f32 %v1239, %v3309
      %v3314 = vmul.f32 %v1244, %v3309
      %v3315 = vmul.f32 %v1247, %v3309
      %v3316 = vmul.f32 %v1252, %v3309
      %v3317 = vmul.f32 %v1255, %v3309
      %v3318 = vmul.f32 %v1260, %v3309
      %v3319 = vmul.f32 %v1263, %v3309
      %v3320 = vmul.f32 %v1268, %v3309
      %v3321 = vmul.f32 %v1271, %v3309
      %v3322 = vmul.f32 %v1276, %v3309
      %v3323 = vmul.f32 %v1279, %v3309
      %v3324 = vmul.f32 %v1284, %v3309
      %v3325 = vmul.f32 %v1287, %v3309
      %v3326 = vpack.c.bf16 %v3311, %v3310
      %v3327 = vpack.c.bf16 %v3313, %v3312
      %v3328 = vpack.c.bf16 %v3315, %v3314
      %v3329 = vpack.c.bf16 %v3317, %v3316
      %v3330 = vpack.c.bf16 %v3319, %v3318
      %v3331 = vpack.c.bf16 %v3321, %v3320
      %v3332 = vpack.c.bf16 %v3323, %v3322
      %v3333 = vpack.c.bf16 %v3325, %v3324
      %s3334 = scalar_lea.vmem %s10, 192
      %v3335 = vld [vmem:[%s3334] sm:$0xff]
      %v3336 = vld [vmem:[%s3334 + $0x8] sm:$0xff]
      %v3337 = vld [vmem:[%s3334 + $0x10] sm:$0xff]
      %v3338 = vld [vmem:[%s3334 + $0x18] sm:$0xff]
      %v3339 = vld [vmem:[%s3334 + $0x20] sm:$0xff]
      %v3340 = vld [vmem:[%s3334 + $0x28] sm:$0xff]
      %v3341 = vld [vmem:[%s3334 + $0x30] sm:$0xff]
      %v3342 = vld [vmem:[%s3334 + $0x38] sm:$0xff]
      %v3344 = vsel %vm644, %v3326, 0
      %v3347 = vsel %vm644, %v3327, 0
      %v3350 = vsel %vm644, %v3328, 0
      %v3353 = vsel %vm644, %v3329, 0
      %3355 = vmatprep.subr.bf16.mxu0 0
      %3356 = vmatpush1.bf16.xpose.msra.mxu0 0
      %3357 = vmatprep.subr.bf16.mxu0 0
      %3358 = vmatpush1.bf16.xpose.msra.mxu0 0
      %3359 = vmatprep.subr.bf16.mxu0 0
      %3360 = vmatpush1.bf16.xpose.msra.mxu0 0
      %3361 = vmatprep.subr.bf16.mxu0 0
      %3362 = vmatpush1.bf16.xpose.msra.mxu0 0
      %3363 = vmatprep.subr.bf16.mxu0 0
      %3364 = vmatpush1.bf16.xpose.msra.mxu0 %v1678
      %3365 = vmatprep.subr.bf16.mxu0 0
      %3366 = vmatpush1.bf16.xpose.msra.mxu0 %v1675
      %3367 = vmatprep.subr.bf16.mxu0 0
      %3368 = vmatpush1.bf16.xpose.msra.mxu0 %v1672
      %3369 = vmatprep.subr.bf16.mxu0 0
      %3370 = vmatpush1.bf16.xpose.msra.mxu0 %v1669
      %3371 = vmatprep.subr.bf16.mxu0 0
      %3372 = vmatpush2.bf16.xpose.msra.mxu0 0
      %3373 = vmatprep.subr.bf16.mxu0 0
      %3374 = vmatpush2.bf16.xpose.msra.mxu0 0
      %3375 = vmatprep.subr.bf16.mxu0 0
      %3376 = vmatpush2.bf16.xpose.msra.mxu0 0
      %3377 = vmatprep.subr.bf16.mxu0 0
      %3378 = vmatpush2.bf16.xpose.msra.mxu0 0
      %3379 = vmatprep.subr.bf16.mxu0 0
      %3380 = vmatpush2.bf16.xpose.msra.mxu0 0
      %3381 = vmatprep.subr.bf16.mxu0 0
      %3382 = vmatpush2.bf16.xpose.msra.mxu0 0
      %3383 = vmatprep.subr.bf16.mxu0 0
      %3384 = vmatpush2.bf16.xpose.msra.mxu0 0
      %3385 = vmatprep.subr.bf16.mxu0 0
      %3386 = vmatpush2.bf16.xpose.msra.mxu0 0
      %3387 = vmatprep.mubr.bf16.mxu0 0
      %3388 = vmatmul.mubr.bf16.gmra.mxu0 %v3344
      %v3389 = vpop.f32.mrf.mxu0
      %v3390 = vadd.f32 %v3335, %v3389
      %v3391 = vpop.f32.mrf.mxu0
      %v3392 = vpop.f32.mrf.mxu0
      %v3393 = vadd.f32 %v3336, %v3392
      %v3394 = vpop.f32.mrf.mxu0
      %3395 = vmatprep.mubr.bf16.mxu0 0
      %3396 = vmatmul.mubr.bf16.gmra.mxu0 %v3347
      %v3397 = vpop.f32.mrf.mxu0
      %v3398 = vadd.f32 %v3337, %v3397
      %v3399 = vpop.f32.mrf.mxu0
      %v3400 = vpop.f32.mrf.mxu0
      %v3401 = vadd.f32 %v3338, %v3400
      %v3402 = vpop.f32.mrf.mxu0
      %3403 = vmatprep.mubr.bf16.mxu0 0
      %3404 = vmatmul.mubr.bf16.gmra.mxu0 %v3350
      %v3405 = vpop.f32.mrf.mxu0
      %v3406 = vadd.f32 %v3339, %v3405
      %v3407 = vpop.f32.mrf.mxu0
      %v3408 = vpop.f32.mrf.mxu0
      %v3409 = vadd.f32 %v3340, %v3408
      %v3410 = vpop.f32.mrf.mxu0
      %3411 = vmatprep.mubr.bf16.mxu0 0
      %3412 = vmatmul.mubr.bf16.gmra.mxu0 %v3353
      %v3413 = vpop.f32.mrf.mxu0
      %v3414 = vadd.f32 %v3341, %v3413
      %v3415 = vpop.f32.mrf.mxu0
      %v3416 = vpop.f32.mrf.mxu0
      %v3417 = vadd.f32 %v3342, %v3416
      %v3418 = vpop.f32.mrf.mxu0
      %3419 = vdwg.mxu0
      %v3421 = vsel %vm644, %v3330, 0
      %v3424 = vsel %vm644, %v3331, 0
      %v3427 = vsel %vm644, %v3332, 0
      %v3430 = vsel %vm644, %v3333, 0
      %3432 = vmatprep.subr.bf16.mxu0 0
      %3433 = vmatpush1.bf16.xpose.msra.mxu0 0
      %3434 = vmatprep.subr.bf16.mxu0 0
      %3435 = vmatpush1.bf16.xpose.msra.mxu0 0
      %3436 = vmatprep.subr.bf16.mxu0 0
      %3437 = vmatpush1.bf16.xpose.msra.mxu0 0
      %3438 = vmatprep.subr.bf16.mxu0 0
      %3439 = vmatpush1.bf16.xpose.msra.mxu0 0
      %3440 = vmatprep.subr.bf16.mxu0 0
      %3441 = vmatpush1.bf16.xpose.msra.mxu0 %v1767
      %3442 = vmatprep.subr.bf16.mxu0 0
      %3443 = vmatpush1.bf16.xpose.msra.mxu0 %v1764
      %3444 = vmatprep.subr.bf16.mxu0 0
      %3445 = vmatpush1.bf16.xpose.msra.mxu0 %v1761
      %3446 = vmatprep.subr.bf16.mxu0 0
      %3447 = vmatpush1.bf16.xpose.msra.mxu0 %v1758
      %3448 = vmatprep.subr.bf16.mxu0 0
      %3449 = vmatpush2.bf16.xpose.msra.mxu0 0
      %3450 = vmatprep.subr.bf16.mxu0 0
      %3451 = vmatpush2.bf16.xpose.msra.mxu0 0
      %3452 = vmatprep.subr.bf16.mxu0 0
      %3453 = vmatpush2.bf16.xpose.msra.mxu0 0
      %3454 = vmatprep.subr.bf16.mxu0 0
      %3455 = vmatpush2.bf16.xpose.msra.mxu0 0
      %3456 = vmatprep.subr.bf16.mxu0 0
      %3457 = vmatpush2.bf16.xpose.msra.mxu0 0
      %3458 = vmatprep.subr.bf16.mxu0 0
      %3459 = vmatpush2.bf16.xpose.msra.mxu0 0
      %3460 = vmatprep.subr.bf16.mxu0 0
      %3461 = vmatpush2.bf16.xpose.msra.mxu0 0
      %3462 = vmatprep.subr.bf16.mxu0 0
      %3463 = vmatpush2.bf16.xpose.msra.mxu0 0
      %3464 = vmatprep.mubr.bf16.mxu0 0
      %3465 = vmatmul.mubr.bf16.gmra.mxu0 %v3421
      %v3466 = vpop.f32.mrf.mxu0
      %v3467 = vadd.f32 %v3335, %v3466
      %v3468 = vpop.f32.mrf.mxu0
      %v3469 = vpop.f32.mrf.mxu0
      %v3470 = vadd.f32 %v3336, %v3469
      %v3471 = vpop.f32.mrf.mxu0
      %3472 = vmatprep.mubr.bf16.mxu0 0
      %3473 = vmatmul.mubr.bf16.gmra.mxu0 %v3424
      %v3474 = vpop.f32.mrf.mxu0
      %v3475 = vadd.f32 %v3337, %v3474
      %v3476 = vpop.f32.mrf.mxu0
      %v3477 = vpop.f32.mrf.mxu0
      %v3478 = vadd.f32 %v3338, %v3477
      %v3479 = vpop.f32.mrf.mxu0
      %3480 = vmatprep.mubr.bf16.mxu0 0
      %3481 = vmatmul.mubr.bf16.gmra.mxu0 %v3427
      %v3482 = vpop.f32.mrf.mxu0
      %v3483 = vadd.f32 %v3339, %v3482
      %v3484 = vpop.f32.mrf.mxu0
      %v3485 = vpop.f32.mrf.mxu0
      %v3486 = vadd.f32 %v3340, %v3485
      %v3487 = vpop.f32.mrf.mxu0
      %3488 = vmatprep.mubr.bf16.mxu0 0
      %3489 = vmatmul.mubr.bf16.gmra.mxu0 %v3430
      %v3490 = vpop.f32.mrf.mxu0
      %v3491 = vadd.f32 %v3341, %v3490
      %v3492 = vpop.f32.mrf.mxu0
      %v3493 = vpop.f32.mrf.mxu0
      %v3494 = vadd.f32 %v3342, %v3493
      %v3495 = vpop.f32.mrf.mxu0
      %3496 = vdwg.mxu0
      %v3497 = vsel %vm1834, %v3390, -inf
      %3498 = vmax.xlane.f32.xlu0 %v3497
      %v3499 = vpop.xlane.xlu0 %3498
      %v3500 = vsel %vm1834, %v3393, -inf
      %3501 = vmax.xlane.f32.xlu0 %v3500
      %v3502 = vpop.xlane.xlu0 %3501
      %v3503 = vsel %vm1834, %v3398, -inf
      %3504 = vmax.xlane.f32.xlu0 %v3503
      %v3505 = vpop.xlane.xlu0 %3504
      %v3506 = vsel %vm1834, %v3401, -inf
      %3507 = vmax.xlane.f32.xlu0 %v3506
      %v3508 = vpop.xlane.xlu0 %3507
      %v3509 = vsel %vm1834, %v3406, -inf
      %3510 = vmax.xlane.f32.xlu0 %v3509
      %v3511 = vpop.xlane.xlu0 %3510
      %v3512 = vsel %vm1834, %v3409, -inf
      %3513 = vmax.xlane.f32.xlu0 %v3512
      %v3514 = vpop.xlane.xlu0 %3513
      %v3515 = vsel %vm1834, %v3414, -inf
      %3516 = vmax.xlane.f32.xlu0 %v3515
      %v3517 = vpop.xlane.xlu0 %3516
      %v3518 = vsel %vm1834, %v3417, -inf
      %3519 = vmax.xlane.f32.xlu0 %v3518
      %v3520 = vpop.xlane.xlu0 %3519
      %v3521 = vsel %vm1834, %v3467, -inf
      %3522 = vmax.xlane.f32.xlu0 %v3521
      %v3523 = vpop.xlane.xlu0 %3522
      %v3524 = vsel %vm1834, %v3470, -inf
      %3525 = vmax.xlane.f32.xlu0 %v3524
      %v3526 = vpop.xlane.xlu0 %3525
      %v3527 = vsel %vm1834, %v3475, -inf
      %3528 = vmax.xlane.f32.xlu0 %v3527
      %v3529 = vpop.xlane.xlu0 %3528
      %v3530 = vsel %vm1834, %v3478, -inf
      %3531 = vmax.xlane.f32.xlu0 %v3530
      %v3532 = vpop.xlane.xlu0 %3531
      %v3533 = vsel %vm1834, %v3483, -inf
      %3534 = vmax.xlane.f32.xlu0 %v3533
      %v3535 = vpop.xlane.xlu0 %3534
      %v3536 = vsel %vm1834, %v3486, -inf
      %3537 = vmax.xlane.f32.xlu0 %v3536
      %v3538 = vpop.xlane.xlu0 %3537
      %v3539 = vsel %vm1834, %v3491, -inf
      %3540 = vmax.xlane.f32.xlu0 %v3539
      %v3541 = vpop.xlane.xlu0 %3540
      %v3542 = vsel %vm1834, %v3494, -inf
      %3543 = vmax.xlane.f32.xlu0 %v3542
      %v3544 = vpop.xlane.xlu0 %3543
      %v3545 = vsub.f32 %v3390, %v3499
      %v3546 = vsub.f32 %v3393, %v3502
      %v3547 = vsub.f32 %v3398, %v3505
      %v3548 = vsub.f32 %v3401, %v3508
      %v3549 = vsub.f32 %v3406, %v3511
      %v3550 = vsub.f32 %v3409, %v3514
      %v3551 = vsub.f32 %v3414, %v3517
      %v3552 = vsub.f32 %v3417, %v3520
      %v3553 = vsub.f32 %v3467, %v3523
      %v3554 = vsub.f32 %v3470, %v3526
      %v3555 = vsub.f32 %v3475, %v3529
      %v3556 = vsub.f32 %v3478, %v3532
      %v3557 = vsub.f32 %v3483, %v3535
      %v3558 = vsub.f32 %v3486, %v3538
      %v3559 = vsub.f32 %v3491, %v3541
      %v3560 = vsub.f32 %v3494, %v3544
      %v3561 = vmul.f32 %v3545, 1.442695
      %v3562 = vpow.pop %v3561
      %v3563 = vmul.f32 %v3546, 1.442695
      %v3564 = vpow.pop %v3563
      %v3565 = vmul.f32 %v3547, 1.442695
      %v3566 = vpow.pop %v3565
      %v3567 = vmul.f32 %v3548, 1.442695
      %v3568 = vpow.pop %v3567
      %v3569 = vmul.f32 %v3549, 1.442695
      %v3570 = vpow.pop %v3569
      %v3571 = vmul.f32 %v3550, 1.442695
      %v3572 = vpow.pop %v3571
      %v3573 = vmul.f32 %v3551, 1.442695
      %v3574 = vpow.pop %v3573
      %v3575 = vmul.f32 %v3552, 1.442695
      %v3576 = vpow.pop %v3575
      %v3577 = vmul.f32 %v3553, 1.442695
      %v3578 = vpow.pop %v3577
      %v3579 = vmul.f32 %v3554, 1.442695
      %v3580 = vpow.pop %v3579
      %v3581 = vmul.f32 %v3555, 1.442695
      %v3582 = vpow.pop %v3581
      %v3583 = vmul.f32 %v3556, 1.442695
      %v3584 = vpow.pop %v3583
      %v3585 = vmul.f32 %v3557, 1.442695
      %v3586 = vpow.pop %v3585
      %v3587 = vmul.f32 %v3558, 1.442695
      %v3588 = vpow.pop %v3587
      %v3589 = vmul.f32 %v3559, 1.442695
      %v3590 = vpow.pop %v3589
      %v3591 = vmul.f32 %v3560, 1.442695
      %v3592 = vpow.pop %v3591
      %v3593 = vsel %vm1834, %v3562, 0.0
      %3594 = vadd.xlane.f32.xlu0 %v3593
      %v3595 = vpop.xlane.xlu0 %3594
      %v3596 = vsel %vm1834, %v3564, 0.0
      %3597 = vadd.xlane.f32.xlu0 %v3596
      %v3598 = vpop.xlane.xlu0 %3597
      %v3599 = vsel %vm1834, %v3566, 0.0
      %3600 = vadd.xlane.f32.xlu0 %v3599
      %v3601 = vpop.xlane.xlu0 %3600
      %v3602 = vsel %vm1834, %v3568, 0.0
      %3603 = vadd.xlane.f32.xlu0 %v3602
      %v3604 = vpop.xlane.xlu0 %3603
      %v3605 = vsel %vm1834, %v3570, 0.0
      %3606 = vadd.xlane.f32.xlu0 %v3605
      %v3607 = vpop.xlane.xlu0 %3606
      %v3608 = vsel %vm1834, %v3572, 0.0
      %3609 = vadd.xlane.f32.xlu0 %v3608
      %v3610 = vpop.xlane.xlu0 %3609
      %v3611 = vsel %vm1834, %v3574, 0.0
      %3612 = vadd.xlane.f32.xlu0 %v3611
      %v3613 = vpop.xlane.xlu0 %3612
      %v3614 = vsel %vm1834, %v3576, 0.0
      %3615 = vadd.xlane.f32.xlu0 %v3614
      %v3616 = vpop.xlane.xlu0 %3615
      %v3617 = vsel %vm1834, %v3578, 0.0
      %3618 = vadd.xlane.f32.xlu0 %v3617
      %v3619 = vpop.xlane.xlu0 %3618
      %v3620 = vsel %vm1834, %v3580, 0.0
      %3621 = vadd.xlane.f32.xlu0 %v3620
      %v3622 = vpop.xlane.xlu0 %3621
      %v3623 = vsel %vm1834, %v3582, 0.0
      %3624 = vadd.xlane.f32.xlu0 %v3623
      %v3625 = vpop.xlane.xlu0 %3624
      %v3626 = vsel %vm1834, %v3584, 0.0
      %3627 = vadd.xlane.f32.xlu0 %v3626
      %v3628 = vpop.xlane.xlu0 %3627
      %v3629 = vsel %vm1834, %v3586, 0.0
      %3630 = vadd.xlane.f32.xlu0 %v3629
      %v3631 = vpop.xlane.xlu0 %3630
      %v3632 = vsel %vm1834, %v3588, 0.0
      %3633 = vadd.xlane.f32.xlu0 %v3632
      %v3634 = vpop.xlane.xlu0 %3633
      %v3635 = vsel %vm1834, %v3590, 0.0
      %3636 = vadd.xlane.f32.xlu0 %v3635
      %v3637 = vpop.xlane.xlu0 %3636
      %v3638 = vsel %vm1834, %v3592, 0.0
      %3639 = vadd.xlane.f32.xlu0 %v3638
      %v3640 = vpop.xlane.xlu0 %3639
      %v3641 = vrcp.pop %v3595
      %v3642 = vrcp.pop %v3598
      %v3643 = vrcp.pop %v3601
      %v3644 = vrcp.pop %v3604
      %v3645 = vrcp.pop %v3607
      %v3646 = vrcp.pop %v3610
      %v3647 = vrcp.pop %v3613
      %v3648 = vrcp.pop %v3616
      %v3649 = vrcp.pop %v3619
      %v3650 = vrcp.pop %v3622
      %v3651 = vrcp.pop %v3625
      %v3652 = vrcp.pop %v3628
      %v3653 = vrcp.pop %v3631
      %v3654 = vrcp.pop %v3634
      %v3655 = vrcp.pop %v3637
      %v3656 = vrcp.pop %v3640
      %v3657 = vmul.f32 %v3562, %v3641
      %v3658 = vmul.f32 %v3564, %v3642
      %v3659 = vmul.f32 %v3566, %v3643
      %v3660 = vmul.f32 %v3568, %v3644
      %v3661 = vmul.f32 %v3570, %v3645
      %v3662 = vmul.f32 %v3572, %v3646
      %v3663 = vmul.f32 %v3574, %v3647
      %v3664 = vmul.f32 %v3576, %v3648
      %v3665 = vmul.f32 %v3578, %v3649
      %v3666 = vmul.f32 %v3580, %v3650
      %v3667 = vmul.f32 %v3582, %v3651
      %v3668 = vmul.f32 %v3584, %v3652
      %v3669 = vmul.f32 %v3586, %v3653
      %v3670 = vmul.f32 %v3588, %v3654
      %v3671 = vmul.f32 %v3590, %v3655
      %v3672 = vmul.f32 %v3592, %v3656
      %v3673 = vpack.c.bf16 %v3658, %v3657
      %v3674 = vpack.c.bf16 %v3660, %v3659
      %v3675 = vpack.c.bf16 %v3662, %v3661
      %v3676 = vpack.c.bf16 %v3664, %v3663
      %v3677 = vpack.c.bf16 %v3666, %v3665
      %v3678 = vpack.c.bf16 %v3668, %v3667
      %v3679 = vpack.c.bf16 %v3670, %v3669
      %v3680 = vpack.c.bf16 %v3672, %v3671
      %3681 = vrot.lane.b32.xlu0 %v1611, 32
      %v3682 = vpop.permute.xlu0 %3681
      %3683 = vrot.lane.b32.xlu0 %v1612, 32
      %v3684 = vpop.permute.xlu0 %3683
      %3685 = vrot.lane.b32.xlu0 %v1613, 32
      %v3686 = vpop.permute.xlu0 %3685
      %3687 = vrot.lane.b32.xlu0 %v1614, 32
      %v3688 = vpop.permute.xlu0 %3687
      %v3694 = vsel %vm1834, %v3673, 0
      %v3697 = vsel %vm1834, %v3674, 0
      %v3700 = vsel %vm1834, %v3675, 0
      %v3703 = vsel %vm1834, %v3676, 0
      %3705 = vmatprep.subr.bf16.mxu0 0
      %3706 = vmatpush1.bf16.msra.mxu0 0
      %3707 = vmatprep.subr.bf16.mxu0 0
      %3708 = vmatpush1.bf16.msra.mxu0 0
      %3709 = vmatprep.subr.bf16.mxu0 0
      %3710 = vmatpush1.bf16.msra.mxu0 0
      %3711 = vmatprep.subr.bf16.mxu0 0
      %3712 = vmatpush1.bf16.msra.mxu0 0
      %3713 = vmatprep.subr.bf16.mxu0 0
      %3714 = vmatpush1.bf16.msra.mxu0 %v3688
      %3715 = vmatprep.subr.bf16.mxu0 0
      %3716 = vmatpush1.bf16.msra.mxu0 %v3686
      %3717 = vmatprep.subr.bf16.mxu0 0
      %3718 = vmatpush1.bf16.msra.mxu0 %v3684
      %3719 = vmatprep.subr.bf16.mxu0 0
      %3720 = vmatpush1.bf16.msra.mxu0 %v3682
      %3721 = vmatprep.subr.bf16.mxu0 0
      %3722 = vmatpush2.bf16.msra.mxu0 0
      %3723 = vmatprep.subr.bf16.mxu0 0
      %3724 = vmatpush2.bf16.msra.mxu0 0
      %3725 = vmatprep.subr.bf16.mxu0 0
      %3726 = vmatpush2.bf16.msra.mxu0 0
      %3727 = vmatprep.subr.bf16.mxu0 0
      %3728 = vmatpush2.bf16.msra.mxu0 0
      %3729 = vmatprep.subr.bf16.mxu0 0
      %3730 = vmatpush2.bf16.msra.mxu0 0
      %3731 = vmatprep.subr.bf16.mxu0 0
      %3732 = vmatpush2.bf16.msra.mxu0 0
      %3733 = vmatprep.subr.bf16.mxu0 0
      %3734 = vmatpush2.bf16.msra.mxu0 0
      %3735 = vmatprep.subr.bf16.mxu0 0
      %3736 = vmatpush2.bf16.msra.mxu0 0
      %3737 = vmatprep.mubr.bf16.mxu0 0
      %3738 = vmatmul.mubr.bf16.gmra.mxu0 %v3694
      %v3739 = vpop.f32.mrf.mxu0
      %v3740 = vadd.f32 0.0, %v3739
      %v3741 = vpop.f32.mrf.mxu0
      %v3742 = vpop.f32.mrf.mxu0
      %v3743 = vadd.f32 0.0, %v3742
      %v3744 = vpop.f32.mrf.mxu0
      %3745 = vmatprep.mubr.bf16.mxu0 0
      %3746 = vmatmul.mubr.bf16.gmra.mxu0 %v3697
      %v3747 = vpop.f32.mrf.mxu0
      %v3748 = vadd.f32 0.0, %v3747
      %v3749 = vpop.f32.mrf.mxu0
      %v3750 = vpop.f32.mrf.mxu0
      %v3751 = vadd.f32 0.0, %v3750
      %v3752 = vpop.f32.mrf.mxu0
      %3753 = vmatprep.mubr.bf16.mxu0 0
      %3754 = vmatmul.mubr.bf16.gmra.mxu0 %v3700
      %v3755 = vpop.f32.mrf.mxu0
      %v3756 = vadd.f32 0.0, %v3755
      %v3757 = vpop.f32.mrf.mxu0
      %v3758 = vpop.f32.mrf.mxu0
      %v3759 = vadd.f32 0.0, %v3758
      %v3760 = vpop.f32.mrf.mxu0
      %3761 = vmatprep.mubr.bf16.mxu0 0
      %3762 = vmatmul.mubr.bf16.gmra.mxu0 %v3703
      %v3763 = vpop.f32.mrf.mxu0
      %v3764 = vadd.f32 0.0, %v3763
      %v3765 = vpop.f32.mrf.mxu0
      %v3766 = vpop.f32.mrf.mxu0
      %v3767 = vadd.f32 0.0, %v3766
      %v3768 = vpop.f32.mrf.mxu0
      %3769 = vdwg.mxu0
      %3770 = vrot.lane.b32.xlu0 %v1615, 32
      %v3771 = vpop.permute.xlu0 %3770
      %3772 = vrot.lane.b32.xlu0 %v1616, 32
      %v3773 = vpop.permute.xlu0 %3772
      %3774 = vrot.lane.b32.xlu0 %v1617, 32
      %v3775 = vpop.permute.xlu0 %3774
      %3776 = vrot.lane.b32.xlu0 %v1618, 32
      %v3777 = vpop.permute.xlu0 %3776
      %v3783 = vsel %vm1834, %v3677, 0
      %v3786 = vsel %vm1834, %v3678, 0
      %v3789 = vsel %vm1834, %v3679, 0
      %v3792 = vsel %vm1834, %v3680, 0
      %3794 = vmatprep.subr.bf16.mxu0 0
      %3795 = vmatpush1.bf16.msra.mxu0 0
      %3796 = vmatprep.subr.bf16.mxu0 0
      %3797 = vmatpush1.bf16.msra.mxu0 0
      %3798 = vmatprep.subr.bf16.mxu0 0
      %3799 = vmatpush1.bf16.msra.mxu0 0
      %3800 = vmatprep.subr.bf16.mxu0 0
      %3801 = vmatpush1.bf16.msra.mxu0 0
      %3802 = vmatprep.subr.bf16.mxu0 0
      %3803 = vmatpush1.bf16.msra.mxu0 %v3777
      %3804 = vmatprep.subr.bf16.mxu0 0
      %3805 = vmatpush1.bf16.msra.mxu0 %v3775
      %3806 = vmatprep.subr.bf16.mxu0 0
      %3807 = vmatpush1.bf16.msra.mxu0 %v3773
      %3808 = vmatprep.subr.bf16.mxu0 0
      %3809 = vmatpush1.bf16.msra.mxu0 %v3771
      %3810 = vmatprep.subr.bf16.mxu0 0
      %3811 = vmatpush2.bf16.msra.mxu0 0
      %3812 = vmatprep.subr.bf16.mxu0 0
      %3813 = vmatpush2.bf16.msra.mxu0 0
      %3814 = vmatprep.subr.bf16.mxu0 0
      %3815 = vmatpush2.bf16.msra.mxu0 0
      %3816 = vmatprep.subr.bf16.mxu0 0
      %3817 = vmatpush2.bf16.msra.mxu0 0
      %3818 = vmatprep.subr.bf16.mxu0 0
      %3819 = vmatpush2.bf16.msra.mxu0 0
      %3820 = vmatprep.subr.bf16.mxu0 0
      %3821 = vmatpush2.bf16.msra.mxu0 0
      %3822 = vmatprep.subr.bf16.mxu0 0
      %3823 = vmatpush2.bf16.msra.mxu0 0
      %3824 = vmatprep.subr.bf16.mxu0 0
      %3825 = vmatpush2.bf16.msra.mxu0 0
      %3826 = vmatprep.mubr.bf16.mxu0 0
      %3827 = vmatmul.mubr.bf16.gmra.mxu0 %v3783
      %v3828 = vpop.f32.mrf.mxu0
      %v3829 = vadd.f32 0.0, %v3828
      %v3830 = vpop.f32.mrf.mxu0
      %v3831 = vpop.f32.mrf.mxu0
      %v3832 = vadd.f32 0.0, %v3831
      %v3833 = vpop.f32.mrf.mxu0
      %3834 = vmatprep.mubr.bf16.mxu0 0
      %3835 = vmatmul.mubr.bf16.gmra.mxu0 %v3786
      %v3836 = vpop.f32.mrf.mxu0
      %v3837 = vadd.f32 0.0, %v3836
      %v3838 = vpop.f32.mrf.mxu0
      %v3839 = vpop.f32.mrf.mxu0
      %v3840 = vadd.f32 0.0, %v3839
      %v3841 = vpop.f32.mrf.mxu0
      %3842 = vmatprep.mubr.bf16.mxu0 0
      %3843 = vmatmul.mubr.bf16.gmra.mxu0 %v3789
      %v3844 = vpop.f32.mrf.mxu0
      %v3845 = vadd.f32 0.0, %v3844
      %v3846 = vpop.f32.mrf.mxu0
      %v3847 = vpop.f32.mrf.mxu0
      %v3848 = vadd.f32 0.0, %v3847
      %v3849 = vpop.f32.mrf.mxu0
      %3850 = vmatprep.mubr.bf16.mxu0 0
      %3851 = vmatmul.mubr.bf16.gmra.mxu0 %v3792
      %v3852 = vpop.f32.mrf.mxu0
      %v3853 = vadd.f32 0.0, %v3852
      %v3854 = vpop.f32.mrf.mxu0
      %v3855 = vpop.f32.mrf.mxu0
      %v3856 = vadd.f32 0.0, %v3855
      %v3857 = vpop.f32.mrf.mxu0
      %3858 = vdwg.mxu0
      %v3859 = vadd.f32 %v3289, %v3740
      %v3860 = vadd.f32 %v3290, %v3743
      %v3861 = vadd.f32 %v3291, %v3748
      %v3862 = vadd.f32 %v3292, %v3751
      %v3863 = vadd.f32 %v3293, %v3756
      %v3864 = vadd.f32 %v3294, %v3759
      %v3865 = vadd.f32 %v3295, %v3764
      %v3866 = vadd.f32 %v3296, %v3767
      %v3867 = vadd.f32 %v3297, %v3829
      %v3868 = vadd.f32 %v3298, %v3832
      %v3869 = vadd.f32 %v3299, %v3837
      %v3870 = vadd.f32 %v3300, %v3840
      %v3871 = vadd.f32 %v3301, %v3845
      %v3872 = vadd.f32 %v3302, %v3848
      %v3873 = vadd.f32 %v3303, %v3853
      %v3874 = vadd.f32 %v3304, %v3856
      %v3875 = vld [vmem:[%s9] sm:$0x1]
      %v3877 = vlaneseq
      %v3878 = vshrl.u32 %v3877, 7
      %v3879 = vsub.s32 0, %v3878
      %v3880 = vrot.slane %v3875, %v3879
      %v3882 = vadd.f32 %v3859, %v3880
      %v3883 = vadd.f32 %v3860, %v3880
      %v3884 = vadd.f32 %v3861, %v3880
      %v3885 = vadd.f32 %v3862, %v3880
      %v3886 = vadd.f32 %v3863, %v3880
      %v3887 = vadd.f32 %v3864, %v3880
      %v3888 = vadd.f32 %v3865, %v3880
      %v3889 = vadd.f32 %v3866, %v3880
      %v3890 = vadd.f32 %v3867, %v3880
      %v3891 = vadd.f32 %v3868, %v3880
      %v3892 = vadd.f32 %v3869, %v3880
      %v3893 = vadd.f32 %v3870, %v3880
      %v3894 = vadd.f32 %v3871, %v3880
      %v3895 = vadd.f32 %v3872, %v3880
      %v3896 = vadd.f32 %v3873, %v3880
      %v3897 = vadd.f32 %v3874, %v3880
      %v3898 = vadd.f32 %v3882, %v882
      %v3899 = vadd.f32 %v3883, %v883
      %v3900 = vadd.f32 %v3884, %v884
      %v3901 = vadd.f32 %v3885, %v885
      %v3902 = vadd.f32 %v3886, %v886
      %v3903 = vadd.f32 %v3887, %v887
      %v3904 = vadd.f32 %v3888, %v888
      %v3905 = vadd.f32 %v3889, %v889
      %v3906 = vadd.f32 %v3890, %v890
      %v3907 = vadd.f32 %v3891, %v891
      %v3908 = vadd.f32 %v3892, %v892
      %v3909 = vadd.f32 %v3893, %v893
      %v3910 = vadd.f32 %v3894, %v894
      %v3911 = vadd.f32 %v3895, %v895
      %v3912 = vadd.f32 %v3896, %v896
      %v3913 = vadd.f32 %v3897, %v897
      %v3914 = vadd.f32 %v3898, %v610
      %v3915 = vadd.f32 %v3899, %v611
      %v3916 = vadd.f32 %v3900, %v612
      %v3917 = vadd.f32 %v3901, %v613
      %v3918 = vadd.f32 %v3902, %v614
      %v3919 = vadd.f32 %v3903, %v615
      %v3920 = vadd.f32 %v3904, %v616
      %v3921 = vadd.f32 %v3905, %v617
      %v3922 = vadd.f32 %v3906, %v618
      %v3923 = vadd.f32 %v3907, %v619
      %v3924 = vadd.f32 %v3908, %v620
      %v3925 = vadd.f32 %v3909, %v621
      %v3926 = vadd.f32 %v3910, %v622
      %v3927 = vadd.f32 %v3911, %v623
      %v3928 = vadd.f32 %v3912, %v624
      %v3929 = vadd.f32 %v3913, %v625
      %v3930 = vld [vmem:[%s12] sm:$0x1]
      %v3931 = vld [vmem:[%s13] sm:$0x1]
      %v3932 = vsel %vm644, %v3914, 0.0
      %3933 = vadd.xlane.f32.xlu0 %v3932
      %v3934 = vpop.xlane.xlu0 %3933
      %v3935 = vsel %vm644, %v3915, 0.0
      %3936 = vadd.xlane.f32.xlu0 %v3935
      %v3937 = vpop.xlane.xlu0 %3936
      %v3938 = vsel %vm644, %v3916, 0.0
      %3939 = vadd.xlane.f32.xlu0 %v3938
      %v3940 = vpop.xlane.xlu0 %3939
      %v3941 = vsel %vm644, %v3917, 0.0
      %3942 = vadd.xlane.f32.xlu0 %v3941
      %v3943 = vpop.xlane.xlu0 %3942
      %v3944 = vsel %vm644, %v3918, 0.0
      %3945 = vadd.xlane.f32.xlu0 %v3944
      %v3946 = vpop.xlane.xlu0 %3945
      %v3947 = vsel %vm644, %v3919, 0.0
      %3948 = vadd.xlane.f32.xlu0 %v3947
      %v3949 = vpop.xlane.xlu0 %3948
      %v3950 = vsel %vm644, %v3920, 0.0
      %3951 = vadd.xlane.f32.xlu0 %v3950
      %v3952 = vpop.xlane.xlu0 %3951
      %v3953 = vsel %vm644, %v3921, 0.0
      %3954 = vadd.xlane.f32.xlu0 %v3953
      %v3955 = vpop.xlane.xlu0 %3954
      %v3956 = vsel %vm644, %v3922, 0.0
      %3957 = vadd.xlane.f32.xlu0 %v3956
      %v3958 = vpop.xlane.xlu0 %3957
      %v3959 = vsel %vm644, %v3923, 0.0
      %3960 = vadd.xlane.f32.xlu0 %v3959
      %v3961 = vpop.xlane.xlu0 %3960
      %v3962 = vsel %vm644, %v3924, 0.0
      %3963 = vadd.xlane.f32.xlu0 %v3962
      %v3964 = vpop.xlane.xlu0 %3963
      %v3965 = vsel %vm644, %v3925, 0.0
      %3966 = vadd.xlane.f32.xlu0 %v3965
      %v3967 = vpop.xlane.xlu0 %3966
      %v3968 = vsel %vm644, %v3926, 0.0
      %3969 = vadd.xlane.f32.xlu0 %v3968
      %v3970 = vpop.xlane.xlu0 %3969
      %v3971 = vsel %vm644, %v3927, 0.0
      %3972 = vadd.xlane.f32.xlu0 %v3971
      %v3973 = vpop.xlane.xlu0 %3972
      %v3974 = vsel %vm644, %v3928, 0.0
      %3975 = vadd.xlane.f32.xlu0 %v3974
      %v3976 = vpop.xlane.xlu0 %3975
      %v3977 = vsel %vm644, %v3929, 0.0
      %3978 = vadd.xlane.f32.xlu0 %v3977
      %v3979 = vpop.xlane.xlu0 %3978
      %v3980 = vmul.f32 %v3934, %v693
      %v3981 = vmul.f32 %v3937, %v693
      %v3982 = vmul.f32 %v3940, %v693
      %v3983 = vmul.f32 %v3943, %v693
      %v3984 = vmul.f32 %v3946, %v693
      %v3985 = vmul.f32 %v3949, %v693
      %v3986 = vmul.f32 %v3952, %v693
      %v3987 = vmul.f32 %v3955, %v693
      %v3988 = vmul.f32 %v3958, %v693
      %v3989 = vmul.f32 %v3961, %v693
      %v3990 = vmul.f32 %v3964, %v693
      %v3991 = vmul.f32 %v3967, %v693
      %v3992 = vmul.f32 %v3970, %v693
      %v3993 = vmul.f32 %v3973, %v693
      %v3994 = vmul.f32 %v3976, %v693
      %v3995 = vmul.f32 %v3979, %v693
      %v3996 = vsub.f32 %v3914, %v3980
      %v3997 = vsub.f32 %v3915, %v3981
      %v3998 = vsub.f32 %v3916, %v3982
      %v3999 = vsub.f32 %v3917, %v3983
      %v4000 = vsub.f32 %v3918, %v3984
      %v4001 = vsub.f32 %v3919, %v3985
      %v4002 = vsub.f32 %v3920, %v3986
      %v4003 = vsub.f32 %v3921, %v3987
      %v4004 = vsub.f32 %v3922, %v3988
      %v4005 = vsub.f32 %v3923, %v3989
      %v4006 = vsub.f32 %v3924, %v3990
      %v4007 = vsub.f32 %v3925, %v3991
      %v4008 = vsub.f32 %v3926, %v3992
      %v4009 = vsub.f32 %v3927, %v3993
      %v4010 = vsub.f32 %v3928, %v3994
      %v4011 = vsub.f32 %v3929, %v3995
      %v4012 = vmul.f32 %v3996, %v3996
      %v4013 = vmul.f32 %v3997, %v3997
      %v4014 = vmul.f32 %v3998, %v3998
      %v4015 = vmul.f32 %v3999, %v3999
      %v4016 = vmul.f32 %v4000, %v4000
      %v4017 = vmul.f32 %v4001, %v4001
      %v4018 = vmul.f32 %v4002, %v4002
      %v4019 = vmul.f32 %v4003, %v4003
      %v4020 = vmul.f32 %v4004, %v4004
      %v4021 = vmul.f32 %v4005, %v4005
      %v4022 = vmul.f32 %v4006, %v4006
      %v4023 = vmul.f32 %v4007, %v4007
      %v4024 = vmul.f32 %v4008, %v4008
      %v4025 = vmul.f32 %v4009, %v4009
      %v4026 = vmul.f32 %v4010, %v4010
      %v4027 = vmul.f32 %v4011, %v4011
      %v4028 = vsel %vm644, %v4012, 0.0
      %4029 = vadd.xlane.f32.xlu0 %v4028
      %v4030 = vpop.xlane.xlu0 %4029
      %v4031 = vsel %vm644, %v4013, 0.0
      %4032 = vadd.xlane.f32.xlu0 %v4031
      %v4033 = vpop.xlane.xlu0 %4032
      %v4034 = vsel %vm644, %v4014, 0.0
      %4035 = vadd.xlane.f32.xlu0 %v4034
      %v4036 = vpop.xlane.xlu0 %4035
      %v4037 = vsel %vm644, %v4015, 0.0
      %4038 = vadd.xlane.f32.xlu0 %v4037
      %v4039 = vpop.xlane.xlu0 %4038
      %v4040 = vsel %vm644, %v4016, 0.0
      %4041 = vadd.xlane.f32.xlu0 %v4040
      %v4042 = vpop.xlane.xlu0 %4041
      %v4043 = vsel %vm644, %v4017, 0.0
      %4044 = vadd.xlane.f32.xlu0 %v4043
      %v4045 = vpop.xlane.xlu0 %4044
      %v4046 = vsel %vm644, %v4018, 0.0
      %4047 = vadd.xlane.f32.xlu0 %v4046
      %v4048 = vpop.xlane.xlu0 %4047
      %v4049 = vsel %vm644, %v4019, 0.0
      %4050 = vadd.xlane.f32.xlu0 %v4049
      %v4051 = vpop.xlane.xlu0 %4050
      %v4052 = vsel %vm644, %v4020, 0.0
      %4053 = vadd.xlane.f32.xlu0 %v4052
      %v4054 = vpop.xlane.xlu0 %4053
      %v4055 = vsel %vm644, %v4021, 0.0
      %4056 = vadd.xlane.f32.xlu0 %v4055
      %v4057 = vpop.xlane.xlu0 %4056
      %v4058 = vsel %vm644, %v4022, 0.0
      %4059 = vadd.xlane.f32.xlu0 %v4058
      %v4060 = vpop.xlane.xlu0 %4059
      %v4061 = vsel %vm644, %v4023, 0.0
      %4062 = vadd.xlane.f32.xlu0 %v4061
      %v4063 = vpop.xlane.xlu0 %4062
      %v4064 = vsel %vm644, %v4024, 0.0
      %4065 = vadd.xlane.f32.xlu0 %v4064
      %v4066 = vpop.xlane.xlu0 %4065
      %v4067 = vsel %vm644, %v4025, 0.0
      %4068 = vadd.xlane.f32.xlu0 %v4067
      %v4069 = vpop.xlane.xlu0 %4068
      %v4070 = vsel %vm644, %v4026, 0.0
      %4071 = vadd.xlane.f32.xlu0 %v4070
      %v4072 = vpop.xlane.xlu0 %4071
      %v4073 = vsel %vm644, %v4027, 0.0
      %4074 = vadd.xlane.f32.xlu0 %v4073
      %v4075 = vpop.xlane.xlu0 %4074
      %v4076 = vmul.f32 %v4030, %v693
      %v4077 = vmul.f32 %v4033, %v693
      %v4078 = vmul.f32 %v4036, %v693
      %v4079 = vmul.f32 %v4039, %v693
      %v4080 = vmul.f32 %v4042, %v693
      %v4081 = vmul.f32 %v4045, %v693
      %v4082 = vmul.f32 %v4048, %v693
      %v4083 = vmul.f32 %v4051, %v693
      %v4084 = vmul.f32 %v4054, %v693
      %v4085 = vmul.f32 %v4057, %v693
      %v4086 = vmul.f32 %v4060, %v693
      %v4087 = vmul.f32 %v4063, %v693
      %v4088 = vmul.f32 %v4066, %v693
      %v4089 = vmul.f32 %v4069, %v693
      %v4090 = vmul.f32 %v4072, %v693
      %v4091 = vmul.f32 %v4075, %v693
      %v4092 = vadd.f32 %v4076, 1e-05
      %v4093 = vadd.f32 %v4077, 1e-05
      %v4094 = vadd.f32 %v4078, 1e-05
      %v4095 = vadd.f32 %v4079, 1e-05
      %v4096 = vadd.f32 %v4080, 1e-05
      %v4097 = vadd.f32 %v4081, 1e-05
      %v4098 = vadd.f32 %v4082, 1e-05
      %v4099 = vadd.f32 %v4083, 1e-05
      %v4100 = vadd.f32 %v4084, 1e-05
      %v4101 = vadd.f32 %v4085, 1e-05
      %v4102 = vadd.f32 %v4086, 1e-05
      %v4103 = vadd.f32 %v4087, 1e-05
      %v4104 = vadd.f32 %v4088, 1e-05
      %v4105 = vadd.f32 %v4089, 1e-05
      %v4106 = vadd.f32 %v4090, 1e-05
      %v4107 = vadd.f32 %v4091, 1e-05
      %v4108 = vrsqrt.pop %v4092
      %v4109 = vrsqrt.pop %v4093
      %v4110 = vrsqrt.pop %v4094
      %v4111 = vrsqrt.pop %v4095
      %v4112 = vrsqrt.pop %v4096
      %v4113 = vrsqrt.pop %v4097
      %v4114 = vrsqrt.pop %v4098
      %v4115 = vrsqrt.pop %v4099
      %v4116 = vrsqrt.pop %v4100
      %v4117 = vrsqrt.pop %v4101
      %v4118 = vrsqrt.pop %v4102
      %v4119 = vrsqrt.pop %v4103
      %v4120 = vrsqrt.pop %v4104
      %v4121 = vrsqrt.pop %v4105
      %v4122 = vrsqrt.pop %v4106
      %v4123 = vrsqrt.pop %v4107
      %v4124 = vmul.f32 %v3996, %v4108
      %v4125 = vmul.f32 %v3997, %v4109
      %v4126 = vmul.f32 %v3998, %v4110
      %v4127 = vmul.f32 %v3999, %v4111
      %v4128 = vmul.f32 %v4000, %v4112
      %v4129 = vmul.f32 %v4001, %v4113
      %v4130 = vmul.f32 %v4002, %v4114
      %v4131 = vmul.f32 %v4003, %v4115
      %v4132 = vmul.f32 %v4004, %v4116
      %v4133 = vmul.f32 %v4005, %v4117
      %v4134 = vmul.f32 %v4006, %v4118
      %v4135 = vmul.f32 %v4007, %v4119
      %v4136 = vmul.f32 %v4008, %v4120
      %v4137 = vmul.f32 %v4009, %v4121
      %v4138 = vmul.f32 %v4010, %v4122
      %v4139 = vmul.f32 %v4011, %v4123
      %v4141 = vlaneseq
      %v4142 = vshrl.u32 %v4141, 7
      %v4143 = vsub.s32 0, %v4142
      %v4144 = vrot.slane %v3930, %v4143
      %v4146 = vmul.f32 %v4124, %v4144
      %v4147 = vmul.f32 %v4125, %v4144
      %v4148 = vmul.f32 %v4126, %v4144
      %v4149 = vmul.f32 %v4127, %v4144
      %v4150 = vmul.f32 %v4128, %v4144
      %v4151 = vmul.f32 %v4129, %v4144
      %v4152 = vmul.f32 %v4130, %v4144
      %v4153 = vmul.f32 %v4131, %v4144
      %v4154 = vmul.f32 %v4132, %v4144
      %v4155 = vmul.f32 %v4133, %v4144
      %v4156 = vmul.f32 %v4134, %v4144
      %v4157 = vmul.f32 %v4135, %v4144
      %v4158 = vmul.f32 %v4136, %v4144
      %v4159 = vmul.f32 %v4137, %v4144
      %v4160 = vmul.f32 %v4138, %v4144
      %v4161 = vmul.f32 %v4139, %v4144
      %v4163 = vlaneseq
      %v4164 = vshrl.u32 %v4163, 7
      %v4165 = vsub.s32 0, %v4164
      %v4166 = vrot.slane %v3931, %v4165
      %v4168 = vadd.f32 %v4146, %v4166
      %v4169 = vadd.f32 %v4147, %v4166
      %v4170 = vadd.f32 %v4148, %v4166
      %v4171 = vadd.f32 %v4149, %v4166
      %v4172 = vadd.f32 %v4150, %v4166
      %v4173 = vadd.f32 %v4151, %v4166
      %v4174 = vadd.f32 %v4152, %v4166
      %v4175 = vadd.f32 %v4153, %v4166
      %v4176 = vadd.f32 %v4154, %v4166
      %v4177 = vadd.f32 %v4155, %v4166
      %v4178 = vadd.f32 %v4156, %v4166
      %v4179 = vadd.f32 %v4157, %v4166
      %v4180 = vadd.f32 %v4158, %v4166
      %v4181 = vadd.f32 %v4159, %v4166
      %v4182 = vadd.f32 %v4160, %v4166
      %v4183 = vadd.f32 %v4161, %v4166
      %v4184 = vpack.c.bf16 %v4169, %v4168
      %v4185 = vpack.c.bf16 %v4171, %v4170
      %v4186 = vpack.c.bf16 %v4173, %v4172
      %v4187 = vpack.c.bf16 %v4175, %v4174
      %v4188 = vpack.c.bf16 %v4177, %v4176
      %v4189 = vpack.c.bf16 %v4179, %v4178
      %v4190 = vpack.c.bf16 %v4181, %v4180
      %v4191 = vpack.c.bf16 %v4183, %v4182
      %v4192 = vld [vmem:[%s14] sm:$0xf]
      %v4193 = vld [vmem:[%s14 + $0x4] sm:$0xf]
      %v4194 = vld [vmem:[%s14 + $0x8] sm:$0xf]
      %v4195 = vld [vmem:[%s14 + $0xc] sm:$0xf]
      %v4196 = vld [vmem:[%s15] sm:$0x1]
      %v4198 = vlaneseq
      %v4199 = vshrl.u32 %v4198, 7
      %v4200 = vsub.s32 0, %v4199
      %v4201 = vrot.slane %v4196, %v4200
      %v4207 = vunpack.c.l.b16 %v4192
      %v4208 = vunpack.c.l.b16 %v4193
      %v4209 = vunpack.c.l.b16 %v4194
      %v4210 = vunpack.c.l.b16 %v4195
      %v4211 = vpack.c.b16 %v4208, %v4207
      %v4212 = vpack.c.b16 %v4210, %v4209
      %v4216 = vsel %vm644, %v4184, 0
      %v4219 = vsel %vm644, %v4185, 0
      %v4222 = vsel %vm644, %v4186, 0
      %v4225 = vsel %vm644, %v4187, 0
      %v4228 = vsel %vm644, %v4188, 0
      %v4231 = vsel %vm644, %v4189, 0
      %v4234 = vsel %vm644, %v4190, 0
      %v4237 = vsel %vm644, %v4191, 0
      %4239 = vmatprep.subr.bf16.mxu0 0
      %4240 = vmatpush1.bf16.msra.mxu0 0
      %4241 = vmatprep.subr.bf16.mxu0 0
      %4242 = vmatpush1.bf16.msra.mxu0 0
      %4243 = vmatprep.subr.bf16.mxu0 0
      %4244 = vmatpush1.bf16.msra.mxu0 0
      %4245 = vmatprep.subr.bf16.mxu0 0
      %4246 = vmatpush1.bf16.msra.mxu0 0
      %4247 = vmatprep.subr.bf16.mxu0 0
      %4248 = vmatpush1.bf16.msra.mxu0 0
      %4249 = vmatprep.subr.bf16.mxu0 0
      %4250 = vmatpush1.bf16.msra.mxu0 0
      %4251 = vmatprep.subr.bf16.mxu0 0
      %4252 = vmatpush1.bf16.msra.mxu0 %v4212
      %4253 = vmatprep.subr.bf16.mxu0 0
      %4254 = vmatpush1.bf16.msra.mxu0 %v4211
      %4255 = vmatprep.subr.bf16.mxu0 0
      %4256 = vmatpush2.bf16.msra.mxu0 0
      %4257 = vmatprep.subr.bf16.mxu0 0
      %4258 = vmatpush2.bf16.msra.mxu0 0
      %4259 = vmatprep.subr.bf16.mxu0 0
      %4260 = vmatpush2.bf16.msra.mxu0 0
      %4261 = vmatprep.subr.bf16.mxu0 0
      %4262 = vmatpush2.bf16.msra.mxu0 0
      %4263 = vmatprep.subr.bf16.mxu0 0
      %4264 = vmatpush2.bf16.msra.mxu0 0
      %4265 = vmatprep.subr.bf16.mxu0 0
      %4266 = vmatpush2.bf16.msra.mxu0 0
      %4267 = vmatprep.subr.bf16.mxu0 0
      %4268 = vmatpush2.bf16.msra.mxu0 0
      %4269 = vmatprep.subr.bf16.mxu0 0
      %4270 = vmatpush2.bf16.msra.mxu0 0
      %4271 = vmatprep.mubr.bf16.mxu0 0
      %4272 = vmatmul.mubr.bf16.gmra.mxu0 %v4216
      %v4273 = vpop.f32.mrf.mxu0
      %v4274 = vadd.f32 %v4201, %v4273
      %v4275 = vpop.f32.mrf.mxu0
      %v4276 = vpop.f32.mrf.mxu0
      %v4277 = vadd.f32 %v4201, %v4276
      %v4278 = vpop.f32.mrf.mxu0
      %4279 = vmatprep.mubr.bf16.mxu0 0
      %4280 = vmatmul.mubr.bf16.gmra.mxu0 %v4219
      %v4281 = vpop.f32.mrf.mxu0
      %v4282 = vadd.f32 %v4201, %v4281
      %v4283 = vpop.f32.mrf.mxu0
      %v4284 = vpop.f32.mrf.mxu0
      %v4285 = vadd.f32 %v4201, %v4284
      %v4286 = vpop.f32.mrf.mxu0
      %4287 = vmatprep.mubr.bf16.mxu0 0
      %4288 = vmatmul.mubr.bf16.gmra.mxu0 %v4222
      %v4289 = vpop.f32.mrf.mxu0
      %v4290 = vadd.f32 %v4201, %v4289
      %v4291 = vpop.f32.mrf.mxu0
      %v4292 = vpop.f32.mrf.mxu0
      %v4293 = vadd.f32 %v4201, %v4292
      %v4294 = vpop.f32.mrf.mxu0
      %4295 = vmatprep.mubr.bf16.mxu0 0
      %4296 = vmatmul.mubr.bf16.gmra.mxu0 %v4225
      %v4297 = vpop.f32.mrf.mxu0
      %v4298 = vadd.f32 %v4201, %v4297
      %v4299 = vpop.f32.mrf.mxu0
      %v4300 = vpop.f32.mrf.mxu0
      %v4301 = vadd.f32 %v4201, %v4300
      %v4302 = vpop.f32.mrf.mxu0
      %4303 = vmatprep.mubr.bf16.mxu0 0
      %4304 = vmatmul.mubr.bf16.gmra.mxu0 %v4228
      %v4305 = vpop.f32.mrf.mxu0
      %v4306 = vadd.f32 %v4201, %v4305
      %v4307 = vpop.f32.mrf.mxu0
      %v4308 = vpop.f32.mrf.mxu0
      %v4309 = vadd.f32 %v4201, %v4308
      %v4310 = vpop.f32.mrf.mxu0
      %4311 = vmatprep.mubr.bf16.mxu0 0
      %4312 = vmatmul.mubr.bf16.gmra.mxu0 %v4231
      %v4313 = vpop.f32.mrf.mxu0
      %v4314 = vadd.f32 %v4201, %v4313
      %v4315 = vpop.f32.mrf.mxu0
      %v4316 = vpop.f32.mrf.mxu0
      %v4317 = vadd.f32 %v4201, %v4316
      %v4318 = vpop.f32.mrf.mxu0
      %4319 = vmatprep.mubr.bf16.mxu0 0
      %4320 = vmatmul.mubr.bf16.gmra.mxu0 %v4234
      %v4321 = vpop.f32.mrf.mxu0
      %v4322 = vadd.f32 %v4201, %v4321
      %v4323 = vpop.f32.mrf.mxu0
      %v4324 = vpop.f32.mrf.mxu0
      %v4325 = vadd.f32 %v4201, %v4324
      %v4326 = vpop.f32.mrf.mxu0
      %4327 = vmatprep.mubr.bf16.mxu0 0
      %4328 = vmatmul.mubr.bf16.gmra.mxu0 %v4237
      %v4329 = vpop.f32.mrf.mxu0
      %v4330 = vadd.f32 %v4201, %v4329
      %v4331 = vpop.f32.mrf.mxu0
      %v4332 = vpop.f32.mrf.mxu0
      %v4333 = vadd.f32 %v4201, %v4332
      %v4334 = vpop.f32.mrf.mxu0
      %4335 = vdwg.mxu0
      %v4336 = vmul.f32 %v4274, %v4274
      %v4337 = vmul.f32 %v4277, %v4277
      %v4338 = vmul.f32 %v4282, %v4282
      %v4339 = vmul.f32 %v4285, %v4285
      %v4340 = vmul.f32 %v4290, %v4290
      %v4341 = vmul.f32 %v4293, %v4293
      %v4342 = vmul.f32 %v4298, %v4298
      %v4343 = vmul.f32 %v4301, %v4301
      %v4344 = vmul.f32 %v4306, %v4306
      %v4345 = vmul.f32 %v4309, %v4309
      %v4346 = vmul.f32 %v4314, %v4314
      %v4347 = vmul.f32 %v4317, %v4317
      %v4348 = vmul.f32 %v4322, %v4322
      %v4349 = vmul.f32 %v4325, %v4325
      %v4350 = vmul.f32 %v4330, %v4330
      %v4351 = vmul.f32 %v4333, %v4333
      %v4352 = vmul.f32 %v4274, %v4336
      %v4353 = vmul.f32 %v4277, %v4337
      %v4354 = vmul.f32 %v4282, %v4338
      %v4355 = vmul.f32 %v4285, %v4339
      %v4356 = vmul.f32 %v4290, %v4340
      %v4357 = vmul.f32 %v4293, %v4341
      %v4358 = vmul.f32 %v4298, %v4342
      %v4359 = vmul.f32 %v4301, %v4343
      %v4360 = vmul.f32 %v4306, %v4344
      %v4361 = vmul.f32 %v4309, %v4345
      %v4362 = vmul.f32 %v4314, %v4346
      %v4363 = vmul.f32 %v4317, %v4347
      %v4364 = vmul.f32 %v4322, %v4348
      %v4365 = vmul.f32 %v4325, %v4349
      %v4366 = vmul.f32 %v4330, %v4350
      %v4367 = vmul.f32 %v4333, %v4351
      %v4368 = vmul.f32 %v4352, 0.044715
      %v4369 = vmul.f32 %v4353, 0.044715
      %v4370 = vmul.f32 %v4354, 0.044715
      %v4371 = vmul.f32 %v4355, 0.044715
      %v4372 = vmul.f32 %v4356, 0.044715
      %v4373 = vmul.f32 %v4357, 0.044715
      %v4374 = vmul.f32 %v4358, 0.044715
      %v4375 = vmul.f32 %v4359, 0.044715
      %v4376 = vmul.f32 %v4360, 0.044715
      %v4377 = vmul.f32 %v4361, 0.044715
      %v4378 = vmul.f32 %v4362, 0.044715
      %v4379 = vmul.f32 %v4363, 0.044715
      %v4380 = vmul.f32 %v4364, 0.044715
      %v4381 = vmul.f32 %v4365, 0.044715
      %v4382 = vmul.f32 %v4366, 0.044715
      %v4383 = vmul.f32 %v4367, 0.044715
      %v4384 = vadd.f32 %v4274, %v4368
      %v4385 = vadd.f32 %v4277, %v4369
      %v4386 = vadd.f32 %v4282, %v4370
      %v4387 = vadd.f32 %v4285, %v4371
      %v4388 = vadd.f32 %v4290, %v4372
      %v4389 = vadd.f32 %v4293, %v4373
      %v4390 = vadd.f32 %v4298, %v4374
      %v4391 = vadd.f32 %v4301, %v4375
      %v4392 = vadd.f32 %v4306, %v4376
      %v4393 = vadd.f32 %v4309, %v4377
      %v4394 = vadd.f32 %v4314, %v4378
      %v4395 = vadd.f32 %v4317, %v4379
      %v4396 = vadd.f32 %v4322, %v4380
      %v4397 = vadd.f32 %v4325, %v4381
      %v4398 = vadd.f32 %v4330, %v4382
      %v4399 = vadd.f32 %v4333, %v4383
      %v4400 = vmul.f32 %v4384, 0.7978846
      %v4401 = vmul.f32 %v4385, 0.7978846
      %v4402 = vmul.f32 %v4386, 0.7978846
      %v4403 = vmul.f32 %v4387, 0.7978846
      %v4404 = vmul.f32 %v4388, 0.7978846
      %v4405 = vmul.f32 %v4389, 0.7978846
      %v4406 = vmul.f32 %v4390, 0.7978846
      %v4407 = vmul.f32 %v4391, 0.7978846
      %v4408 = vmul.f32 %v4392, 0.7978846
      %v4409 = vmul.f32 %v4393, 0.7978846
      %v4410 = vmul.f32 %v4394, 0.7978846
      %v4411 = vmul.f32 %v4395, 0.7978846
      %v4412 = vmul.f32 %v4396, 0.7978846
      %v4413 = vmul.f32 %v4397, 0.7978846
      %v4414 = vmul.f32 %v4398, 0.7978846
      %v4415 = vmul.f32 %v4399, 0.7978846
      %v4416 = vtanh.pop %v4400
      %v4417 = vtanh.pop %v4401
      %v4418 = vtanh.pop %v4402
      %v4419 = vtanh.pop %v4403
      %v4420 = vtanh.pop %v4404
      %v4421 = vtanh.pop %v4405
      %v4422 = vtanh.pop %v4406
      %v4423 = vtanh.pop %v4407
      %v4424 = vtanh.pop %v4408
      %v4425 = vtanh.pop %v4409
      %v4426 = vtanh.pop %v4410
      %v4427 = vtanh.pop %v4411
      %v4428 = vtanh.pop %v4412
      %v4429 = vtanh.pop %v4413
      %v4430 = vtanh.pop %v4414
      %v4431 = vtanh.pop %v4415
      %v4432 = vadd.f32 %v4416, 1.0
      %v4433 = vadd.f32 %v4417, 1.0
      %v4434 = vadd.f32 %v4418, 1.0
      %v4435 = vadd.f32 %v4419, 1.0
      %v4436 = vadd.f32 %v4420, 1.0
      %v4437 = vadd.f32 %v4421, 1.0
      %v4438 = vadd.f32 %v4422, 1.0
      %v4439 = vadd.f32 %v4423, 1.0
      %v4440 = vadd.f32 %v4424, 1.0
      %v4441 = vadd.f32 %v4425, 1.0
      %v4442 = vadd.f32 %v4426, 1.0
      %v4443 = vadd.f32 %v4427, 1.0
      %v4444 = vadd.f32 %v4428, 1.0
      %v4445 = vadd.f32 %v4429, 1.0
      %v4446 = vadd.f32 %v4430, 1.0
      %v4447 = vadd.f32 %v4431, 1.0
      %v4448 = vmul.f32 %v4432, 0.5
      %v4449 = vmul.f32 %v4433, 0.5
      %v4450 = vmul.f32 %v4434, 0.5
      %v4451 = vmul.f32 %v4435, 0.5
      %v4452 = vmul.f32 %v4436, 0.5
      %v4453 = vmul.f32 %v4437, 0.5
      %v4454 = vmul.f32 %v4438, 0.5
      %v4455 = vmul.f32 %v4439, 0.5
      %v4456 = vmul.f32 %v4440, 0.5
      %v4457 = vmul.f32 %v4441, 0.5
      %v4458 = vmul.f32 %v4442, 0.5
      %v4459 = vmul.f32 %v4443, 0.5
      %v4460 = vmul.f32 %v4444, 0.5
      %v4461 = vmul.f32 %v4445, 0.5
      %v4462 = vmul.f32 %v4446, 0.5
      %v4463 = vmul.f32 %v4447, 0.5
      %v4464 = vmul.f32 %v4274, %v4448
      %v4465 = vmul.f32 %v4277, %v4449
      %v4466 = vmul.f32 %v4282, %v4450
      %v4467 = vmul.f32 %v4285, %v4451
      %v4468 = vmul.f32 %v4290, %v4452
      %v4469 = vmul.f32 %v4293, %v4453
      %v4470 = vmul.f32 %v4298, %v4454
      %v4471 = vmul.f32 %v4301, %v4455
      %v4472 = vmul.f32 %v4306, %v4456
      %v4473 = vmul.f32 %v4309, %v4457
      %v4474 = vmul.f32 %v4314, %v4458
      %v4475 = vmul.f32 %v4317, %v4459
      %v4476 = vmul.f32 %v4322, %v4460
      %v4477 = vmul.f32 %v4325, %v4461
      %v4478 = vmul.f32 %v4330, %v4462
      %v4479 = vmul.f32 %v4333, %v4463
      %v4480 = vpack.c.bf16 %v4465, %v4464
      %v4481 = vpack.c.bf16 %v4467, %v4466
      %v4482 = vpack.c.bf16 %v4469, %v4468
      %v4483 = vpack.c.bf16 %v4471, %v4470
      %v4484 = vpack.c.bf16 %v4473, %v4472
      %v4485 = vpack.c.bf16 %v4475, %v4474
      %v4486 = vpack.c.bf16 %v4477, %v4476
      %v4487 = vpack.c.bf16 %v4479, %v4478
      %v4488 = vld [vmem:[%s16] sm:$0xf]
      %v4489 = vld [vmem:[%s16 + $0x4] sm:$0xf]
      %v4490 = vld [vmem:[%s16 + $0x8] sm:$0xf]
      %v4491 = vld [vmem:[%s16 + $0xc] sm:$0xf]
      %v4492 = vld [vmem:[%s16 + $0x10] sm:$0xf]
      %v4493 = vld [vmem:[%s16 + $0x14] sm:$0xf]
      %v4494 = vld [vmem:[%s16 + $0x18] sm:$0xf]
      %v4495 = vld [vmem:[%s16 + $0x1c] sm:$0xf]
      %v4496 = vld [vmem:[%s16 + $0x20] sm:$0xf]
      %v4497 = vld [vmem:[%s16 + $0x24] sm:$0xf]
      %v4498 = vld [vmem:[%s16 + $0x28] sm:$0xf]
      %v4499 = vld [vmem:[%s16 + $0x2c] sm:$0xf]
      %v4500 = vld [vmem:[%s16 + $0x30] sm:$0xf]
      %v4501 = vld [vmem:[%s16 + $0x34] sm:$0xf]
      %v4502 = vld [vmem:[%s16 + $0x38] sm:$0xf]
      %v4503 = vld [vmem:[%s16 + $0x3c] sm:$0xf]
      %v4504 = vld [vmem:[%s17] sm:$0x1]
      %v4506 = vlaneseq
      %v4507 = vshrl.u32 %v4506, 7
      %v4508 = vsub.s32 0, %v4507
      %v4509 = vrot.slane %v4504, %v4508
      %v4527 = vunpack.c.l.b16 %v4488
      %v4528 = vunpack.c.l.b16 %v4489
      %v4529 = vunpack.c.l.b16 %v4490
      %v4530 = vunpack.c.l.b16 %v4491
      %v4531 = vunpack.c.l.b16 %v4492
      %v4532 = vunpack.c.l.b16 %v4493
      %v4533 = vunpack.c.l.b16 %v4494
      %v4534 = vunpack.c.l.b16 %v4495
      %v4535 = vunpack.c.l.b16 %v4496
      %v4536 = vunpack.c.l.b16 %v4497
      %v4537 = vunpack.c.l.b16 %v4498
      %v4538 = vunpack.c.l.b16 %v4499
      %v4539 = vunpack.c.l.b16 %v4500
      %v4540 = vunpack.c.l.b16 %v4501
      %v4541 = vunpack.c.l.b16 %v4502
      %v4542 = vunpack.c.l.b16 %v4503
      %v4543 = vpack.c.b16 %v4528, %v4527
      %v4544 = vpack.c.b16 %v4530, %v4529
      %v4545 = vpack.c.b16 %v4532, %v4531
      %v4546 = vpack.c.b16 %v4534, %v4533
      %v4547 = vpack.c.b16 %v4536, %v4535
      %v4548 = vpack.c.b16 %v4538, %v4537
      %v4549 = vpack.c.b16 %v4540, %v4539
      %v4550 = vpack.c.b16 %v4542, %v4541
      %4559 = vmatprep.subr.bf16.mxu0 0
      %4560 = vmatpush1.bf16.msra.mxu0 %v4550
      %4561 = vmatprep.subr.bf16.mxu0 0
      %4562 = vmatpush1.bf16.msra.mxu0 %v4549
      %4563 = vmatprep.subr.bf16.mxu0 0
      %4564 = vmatpush1.bf16.msra.mxu0 %v4548
      %4565 = vmatprep.subr.bf16.mxu0 0
      %4566 = vmatpush1.bf16.msra.mxu0 %v4547
      %4567 = vmatprep.subr.bf16.mxu0 0
      %4568 = vmatpush1.bf16.msra.mxu0 %v4546
      %4569 = vmatprep.subr.bf16.mxu0 0
      %4570 = vmatpush1.bf16.msra.mxu0 %v4545
      %4571 = vmatprep.subr.bf16.mxu0 0
      %4572 = vmatpush1.bf16.msra.mxu0 %v4544
      %4573 = vmatprep.subr.bf16.mxu0 0
      %4574 = vmatpush1.bf16.msra.mxu0 %v4543
      %4575 = vmatprep.subr.bf16.mxu0 0
      %4576 = vmatpush2.bf16.msra.mxu0 0
      %4577 = vmatprep.subr.bf16.mxu0 0
      %4578 = vmatpush2.bf16.msra.mxu0 0
      %4579 = vmatprep.subr.bf16.mxu0 0
      %4580 = vmatpush2.bf16.msra.mxu0 0
      %4581 = vmatprep.subr.bf16.mxu0 0
      %4582 = vmatpush2.bf16.msra.mxu0 0
      %4583 = vmatprep.subr.bf16.mxu0 0
      %4584 = vmatpush2.bf16.msra.mxu0 0
      %4585 = vmatprep.subr.bf16.mxu0 0
      %4586 = vmatpush2.bf16.msra.mxu0 0
      %4587 = vmatprep.subr.bf16.mxu0 0
      %4588 = vmatpush2.bf16.msra.mxu0 0
      %4589 = vmatprep.subr.bf16.mxu0 0
      %4590 = vmatpush2.bf16.msra.mxu0 0
      %4591 = vmatprep.mubr.bf16.mxu0 0
      %4592 = vmatmul.mubr.bf16.gmra.mxu0 %v4480
      %v4593 = vpop.f32.mrf.mxu0
      %v4594 = vadd.f32 %v4509, %v4593
      %v4595 = vpop.f32.mrf.mxu0
      %v4596 = vpop.f32.mrf.mxu0
      %v4597 = vadd.f32 %v4509, %v4596
      %v4598 = vpop.f32.mrf.mxu0
      %4599 = vmatprep.mubr.bf16.mxu0 0
      %4600 = vmatmul.mubr.bf16.gmra.mxu0 %v4481
      %v4601 = vpop.f32.mrf.mxu0
      %v4602 = vadd.f32 %v4509, %v4601
      %v4603 = vpop.f32.mrf.mxu0
      %v4604 = vpop.f32.mrf.mxu0
      %v4605 = vadd.f32 %v4509, %v4604
      %v4606 = vpop.f32.mrf.mxu0
      %4607 = vmatprep.mubr.bf16.mxu0 0
      %4608 = vmatmul.mubr.bf16.gmra.mxu0 %v4482
      %v4609 = vpop.f32.mrf.mxu0
      %v4610 = vadd.f32 %v4509, %v4609
      %v4611 = vpop.f32.mrf.mxu0
      %v4612 = vpop.f32.mrf.mxu0
      %v4613 = vadd.f32 %v4509, %v4612
      %v4614 = vpop.f32.mrf.mxu0
      %4615 = vmatprep.mubr.bf16.mxu0 0
      %4616 = vmatmul.mubr.bf16.gmra.mxu0 %v4483
      %v4617 = vpop.f32.mrf.mxu0
      %v4618 = vadd.f32 %v4509, %v4617
      %v4619 = vpop.f32.mrf.mxu0
      %v4620 = vpop.f32.mrf.mxu0
      %v4621 = vadd.f32 %v4509, %v4620
      %v4622 = vpop.f32.mrf.mxu0
      %4623 = vmatprep.mubr.bf16.mxu0 0
      %4624 = vmatmul.mubr.bf16.gmra.mxu0 %v4484
      %v4625 = vpop.f32.mrf.mxu0
      %v4626 = vadd.f32 %v4509, %v4625
      %v4627 = vpop.f32.mrf.mxu0
      %v4628 = vpop.f32.mrf.mxu0
      %v4629 = vadd.f32 %v4509, %v4628
      %v4630 = vpop.f32.mrf.mxu0
      %4631 = vmatprep.mubr.bf16.mxu0 0
      %4632 = vmatmul.mubr.bf16.gmra.mxu0 %v4485
      %v4633 = vpop.f32.mrf.mxu0
      %v4634 = vadd.f32 %v4509, %v4633
      %v4635 = vpop.f32.mrf.mxu0
      %v4636 = vpop.f32.mrf.mxu0
      %v4637 = vadd.f32 %v4509, %v4636
      %v4638 = vpop.f32.mrf.mxu0
      %4639 = vmatprep.mubr.bf16.mxu0 0
      %4640 = vmatmul.mubr.bf16.gmra.mxu0 %v4486
      %v4641 = vpop.f32.mrf.mxu0
      %v4642 = vadd.f32 %v4509, %v4641
      %v4643 = vpop.f32.mrf.mxu0
      %v4644 = vpop.f32.mrf.mxu0
      %v4645 = vadd.f32 %v4509, %v4644
      %v4646 = vpop.f32.mrf.mxu0
      %4647 = vmatprep.mubr.bf16.mxu0 0
      %4648 = vmatmul.mubr.bf16.gmra.mxu0 %v4487
      %v4649 = vpop.f32.mrf.mxu0
      %v4650 = vadd.f32 %v4509, %v4649
      %v4651 = vpop.f32.mrf.mxu0
      %v4652 = vpop.f32.mrf.mxu0
      %v4653 = vadd.f32 %v4509, %v4652
      %v4654 = vpop.f32.mrf.mxu0
      %4655 = vdwg.mxu0
      %v4656 = vadd.f32 %v3914, %v4594
      %v4657 = vadd.f32 %v3915, %v4597
      %v4658 = vadd.f32 %v3916, %v4602
      %v4659 = vadd.f32 %v3917, %v4605
      %v4660 = vadd.f32 %v3918, %v4610
      %v4661 = vadd.f32 %v3919, %v4613
      %v4662 = vadd.f32 %v3920, %v4618
      %v4663 = vadd.f32 %v3921, %v4621
      %v4664 = vadd.f32 %v3922, %v4626
      %v4665 = vadd.f32 %v3923, %v4629
      %v4666 = vadd.f32 %v3924, %v4634
      %v4667 = vadd.f32 %v3925, %v4637
      %v4668 = vadd.f32 %v3926, %v4642
      %v4669 = vadd.f32 %v3927, %v4645
      %v4670 = vadd.f32 %v3928, %v4650
      %v4671 = vadd.f32 %v3929, %v4653
      %4672 = vst.msk [vmem:[%s607] sm:$0xff] %vm644, %v4656
      %4673 = vst.msk [vmem:[%s607 + $0x8] sm:$0xff] %vm644, %v4657
      %4674 = vst.msk [vmem:[%s607 + $0x10] sm:$0xff] %vm644, %v4658
      %4675 = vst.msk [vmem:[%s607 + $0x18] sm:$0xff] %vm644, %v4659
      %4676 = vst.msk [vmem:[%s607 + $0x20] sm:$0xff] %vm644, %v4660
      %4677 = vst.msk [vmem:[%s607 + $0x28] sm:$0xff] %vm644, %v4661
      %4678 = vst.msk [vmem:[%s607 + $0x30] sm:$0xff] %vm644, %v4662
      %4679 = vst.msk [vmem:[%s607 + $0x38] sm:$0xff] %vm644, %v4663
      %4680 = vst.msk [vmem:[%s607 + $0x40] sm:$0xff] %vm644, %v4664
      %4681 = vst.msk [vmem:[%s607 + $0x48] sm:$0xff] %vm644, %v4665
      %4682 = vst.msk [vmem:[%s607 + $0x50] sm:$0xff] %vm644, %v4666
      %4683 = vst.msk [vmem:[%s607 + $0x58] sm:$0xff] %vm644, %v4667
      %4684 = vst.msk [vmem:[%s607 + $0x60] sm:$0xff] %vm644, %v4668
      %4685 = vst.msk [vmem:[%s607 + $0x68] sm:$0xff] %vm644, %v4669
      %4686 = vst.msk [vmem:[%s607 + $0x70] sm:$0xff] %vm644, %v4670
      %4687 = vst.msk [vmem:[%s607 + $0x78] sm:$0xff] %vm644, %v4671
      %s4688 = smul.u32 2, %s29
      %p4689 = scmp.lt.s32.totalorder %s4688, 3
      %s4690 = scalar_select %p4689, %s4688, 3
      %s4691 = smul.addr %s4690, 8
      %s4692 = smul.addr %s4691, 8
      %s4693 = scalar_lea.vmem %s18, %s4692
      // Predicated region
      $region93: #{vstsr_encoder_block_forward.1} parent=91 // pred_check
        %p4694 = pneg %p435
      $region94: #{vstsr_encoder_block_forward.1} parent=91 // pred_check_branch
        %4696 = sbr.rel (%p4694) target = $region96
      $region95: #{vstsr_encoder_block_forward.1} parent=91 // pred_region
        %s4697 = smul.u32 2, %s29
      $region96: #{vstsr_encoder_block_forward.1} parent=91 // pred_fallthru
        _
    $region92: #{vstsr_encoder_block_forward.1} parent=5 // pred_fallthru
      _
    %p4698 = scmp.le.s32.totalorder 2, %s24
    // Predicated region
    $region97: #{vstsr_encoder_block_forward.1} parent=5 // pred_check
      %p4699 = pneg %p4698
    $region98: #{vstsr_encoder_block_forward.1} parent=5 // pred_check_branch
      %4701 = sbr.rel (%p4699) target = $region100
    $region99: #{vstsr_encoder_block_forward.1} parent=5 // pred_region
      %s4702 = ssub.s32 %s24, 2
      // Predicated region
      $region101: #{vstsr_encoder_block_forward.1} parent=99 // pred_check
        %p4703 = pneg %p441
      $region102: #{vstsr_encoder_block_forward.1} parent=99 // pred_check_branch
        %4705 = sbr.rel (%p4703) target = $region104
      $region103: #{vstsr_encoder_block_forward.1} parent=99 // pred_region
        %s4706 = smul.u32 2, %s30
        %p4707 = scmp.lt.s32.totalorder %s4706, 3
        %s4708 = scalar_select %p4707, %s4706, 3
        %s4709 = smul.addr %s4708, 8
        %s4710 = smul.addr %s4709, 8
        %s4711 = scalar_lea.vmem %s18, %s4710
      $region104: #{vstsr_encoder_block_forward.1} parent=99 // pred_fallthru
        _
    $region100: #{vstsr_encoder_block_forward.1} parent=5 // pred_fallthru
      _
  $region6: #{vstsr_encoder_block_forward.1} parent=0 // loop_footer
    %s28 = sadd.s32 1, %s24
  $region7: #{vstsr_encoder_block_forward.1} parent=0 // loop_footer_branch
    %23 = sbr.rel target = $region3
  $region8: #{vstsr_encoder_block_forward.1} parent=0 // loop_exit
    _

</llo_original>
